<compile_context>
chip_gen: v7x
topology: tpu7x:2x2x1
jax: 0.10.0
libtpu: 0.0.40
codegen_flags: <defaults>
</compile_context>

<pallas_src>
import functools

import jax
import jax.numpy as jnp
from jax.experimental import pallas as pl
from jax.experimental.pallas import tpu as pltpu


# -----------------------------------------------------------------------------
# Pallas kernel: conv1(k2,s2,p2)+ReLU -> conv2(k3,s1,p1)+ReLU -> conv3(k1,s1,p1)
# -----------------------------------------------------------------------------
def _dict_encoder_kernel(a1_ref, w1_ref, b1_ref, w2_ref, b2_ref, w3_ref, b3_ref,
                         key_ref, h1_ref):
    """One grid step = one block of P patches, all three convs as big-M matmuls.

    a1_ref : (6, P, KC)     conv1 im2col (conv1-out-row, patch, taps), compute dtype
    w1_ref : (KC, 256)      block-diag conv1 weights mapped onto the canvas
    b1_ref : (1, 256)       f32
    w2_ref : (3, 256, 256)  conv2 weights, the 3 dj taps pre-folded per di tap
    b2_ref : (1, 256)       f32
    w3_ref : (256, 512)     block-diag 1x1 conv3 weights (per canvas column)
    b3_ref : (1, 512)       f32
    key_ref: (6, P, 512)    INTERIOR key-canvas rows 1..6 (row, patch, col*64),
                            stored in the compute dtype.  Border rows 0/7 are
                            pure bias and are rebuilt in the glue.
    h1_ref : (8, P, 256)    scratch: conv1 activation canvas with zero border rows
    """
    p = h1_ref.shape[1]
    kc = a1_ref.shape[-1]
    f32 = jnp.float32
    cdt = h1_ref.dtype                        # MXU-operand (compute) dtype

    # Zero only the two border rows of the h1 canvas (conv2's zero padding).
    # Rows 1..6 are fully rewritten below, and the block-diagonal weights /
    # biases are zero outside lanes 32:224, so interior column borders come out
    # zero from the matmuls themselves.  Done unconditionally (two cheap row
    # stores) instead of under @pl.when(program_id == 0): with the "parallel"
    # grid axis each megacore TensorCore owns its own scratch copy and might
    # never see grid index 0.
    zero_row = jnp.zeros((p, 256), cdt)
    h1_ref[0] = zero_row
    h1_ref[7] = zero_row

    # ---- conv1 (k=2, s=2, pad=2) + ReLU: one (6P, KC) x (KC, 256) matmul ----
    a1 = a1_ref[...].reshape(6 * p, kc)
    h1 = jnp.dot(a1, w1_ref[...], preferred_element_type=f32) + b1_ref[...]
    h1 = jnp.maximum(h1, 0.0).astype(cdt)
    h1_ref[pl.ds(1, 6)] = h1.reshape(6, p, 256)      # canvas rows 1..6

    # ---- conv2 (k=3, s=1, pad=1) + ReLU: 3 (6P, 256) x (256, 256) matmuls ---
    # dj taps are pre-summed into w2_ref[di] (disjoint block-diagonal support),
    # so only the 3 row-shifted di taps remain; bias added once.  Kept as 3
    # unrolled dots on purpose: the VPU adds are free filler while the kernel
    # is store/MXU bound, and concatenating the shifted windows would cost
    # extra VMEM copies.
    acc = b2_ref[...]                         # (1, 256), broadcasts in the add
    for di in range(3):                       # static unroll
        rows = h1_ref[pl.ds(di, 6)].reshape(6 * p, 256)
        acc = acc + jnp.dot(rows, w2_ref[di], preferred_element_type=f32)
    h2 = jnp.maximum(acc, 0.0).astype(cdt)    # (6P, 256), borders stay zero

    # ---- conv3 (k=1, s=1, pad=1): interior rows only, in one matmul ---------
    # Border key rows (0 and 7) see only zero padding -> pure bias; they are
    # NOT written here (saves 25% of the output HBM writeback) and are added
    # back in the JAX glue.  Interior-row border columns come out as bias from
    # the zero h2 lanes 0:32 / 224:256 plus b3.
    key = jnp.dot(h2, w3_ref[...], preferred_element_type=f32) + b3_ref[...]
    key_ref[...] = key.reshape(6, p, 512).astype(key_ref.dtype)


# -----------------------------------------------------------------------------
# Glue: patch extraction (interpolate + unfold) and value assembly
# -----------------------------------------------------------------------------
def _extract_patches(x):
    """x: (b, c, h, w) -> patches (b*49, c, 8, 8), matching F.interpolate+unfold."""
    b, c, h, w = x.shape
    # nearest-neighbor resize to 32x32 (PyTorch F.interpolate default mode)
    ri = (jnp.arange(32) * h) // 32
    ci = (jnp.arange(32) * w) // 32
    x32 = x[:, :, ri, :][:, :, :, ci]                    # (b, c, 32, 32)
    # unfold(kernel=8, stride=4) -> 7x7 = 49 patches per image, row-major
    idx = (4 * jnp.arange(7))[:, None] + jnp.arange(8)[None, :]   # (7, 8)
    xp = x32[:, :, idx, :]                               # (b, c, 7, 8, 32)
    xp = xp[:, :, :, :, idx]                             # (b, c, 7, 8, 7, 8)
    xp = jnp.transpose(xp, (0, 2, 4, 1, 3, 5))           # (b, 7, 7, c, 8, 8)
    return xp.reshape(b * 49, c, 8, 8)


def _assemble_value(x_patch, v, key, b):
    """Concatenate [patch, viewpoint, pos_x, pos_y, key] along channels."""
    l = 49
    l_ids = jnp.arange(l)
    ones = jnp.ones((1, 1, 8, 8), jnp.float32)
    # pos_*.repeat(b, ...) in torch tiles the 49-long pattern b times.
    pos_x = jnp.tile((l_ids % 7).astype(jnp.float32), b)[:, None, None, None] * ones
    pos_y = jnp.tile((l_ids // 7).astype(jnp.float32), b)[:, None, None, None] * ones
    # v.view(b,-1,1,1).repeat(l,1,8,8) in torch tiles the batch l times.
    v_full = jnp.tile(v, (l, 1))[:, :, None, None] * jnp.ones((1, 1, 8, 8), v.dtype)
    return jnp.concatenate([x_patch, v_full, pos_x, pos_y, key], axis=1)


def _round_up(x, m):
    return ((x + m - 1) // m) * m


# -----------------------------------------------------------------------------
# Pallas-backed DictionaryEncoder forward
# -----------------------------------------------------------------------------
def dictionary_encoder(x, v, params, *, patch_block=256,
                       compute_dtype=jnp.bfloat16):
    w1, b1, w2, b2, w3, b3 = params          # PyTorch-layout (OIHW) weights
    b, c = x.shape[0], x.shape[1]

    x_patch = _extract_patches(x)            # (N, c, 8, 8), N = b*49
    n = x_patch.shape[0]

    # --- glue: conv1 im2col over the zero-padded 12x12 patch ----------------
    # K dim stays at kc = 24*c (no 128 padding): a block dim equal to the full
    # array extent is legal, and the padding was dead a1 HBM bytes.
    kc = 24 * c
    xpad = jnp.pad(x_patch, ((0, 0), (0, 0), (2, 2), (2, 2)))   # (N, c, 12, 12)
    xr = xpad.reshape(n, c, 6, 2, 6, 2)                          # (n,c,i,di,j,dj)
    a1 = jnp.transpose(xr, (2, 0, 4, 3, 5, 1)).reshape(6, n, kc)

    # Patch tile: cap at patch_block, but also keep >=2 grid steps so the
    # "parallel" axis can feed both TensorCores on v7x.  Multiple of 16 so
    # both f32 (8) and bf16 (16) sublane tilings are satisfied.
    p = max(16, min(_round_up(patch_block, 16), _round_up(-(-n // 2), 16)))
    n_pad = _round_up(n, p)
    a1 = jnp.pad(a1, ((0, 0), (0, n_pad - n), (0, 0))).astype(compute_dtype)

    # --- glue: pack conv weights as block-diagonal canvas matmuls -----------
    eye6 = jnp.eye(6, dtype=jnp.float32)
    w1mat = jnp.transpose(w1, (2, 3, 1, 0)).reshape(4 * c, 32)   # (di,dj,ic)xoc
    w1row = jnp.zeros((kc, 256), jnp.float32)
    w1row = w1row.at[:, 32:224].set(jnp.kron(eye6, w1mat))
    b1row = jnp.zeros((1, 256), jnp.float32).at[:, 32:224].set(jnp.tile(b1, 6))

    # conv2: fold the 3 dj taps (disjoint block-diagonal support) per di tap.
    w2fold = []
    for di in range(3):
        t = jnp.zeros((256, 256), jnp.float32)
        for dj in range(3):
            blk = jnp.kron(eye6, w2[:, :, di, dj].T)             # (192, 192)
            t = t.at[dj * 32:(dj + 6) * 32, 32:224].add(blk)
        w2fold.append(t)
    w2fold = jnp.stack(w2fold)                                   # (3, 256, 256)
    b2row = jnp.zeros((1, 256), jnp.float32).at[:, 32:224].set(jnp.tile(b2, 6))

    w3blk = jnp.kron(jnp.eye(8, dtype=jnp.float32), w3[:, :, 0, 0].T)  # (256, 512)
    b3row = jnp.tile(b3, 8)[None, :]                                   # (1, 512) f32

    w1row = w1row.astype(compute_dtype)
    w2fold = w2fold.astype(compute_dtype)
    w3blk = w3blk.astype(compute_dtype)

    # Key canvas stored in the compute dtype: on the bf16 path this halves the
    # dominant HBM writeback; the f32 path keeps f32 stores.
    out_dtype = jnp.dtype(compute_dtype)
    c_item = jnp.dtype(compute_dtype).itemsize
    w_elems = kc * 256 + 3 * 256 * 256 + 256 * 512
    cost = pl.CostEstimate(
        flops=int(2 * 6 * n_pad * w_elems),
        transcendentals=0,
        bytes_accessed=int(6 * n_pad * kc * c_item            # a1 reads
                           + w_elems * c_item                 # weights
                           + (256 + 256 + 512) * 4            # f32 biases
                           + 6 * n_pad * 512 * out_dtype.itemsize))  # key writes

    grid = (n_pad // p,)
    key_canvas = pl.pallas_call(
        _dict_encoder_kernel,
        out_shape=jax.ShapeDtypeStruct((6, n_pad, 512), out_dtype),
        grid=grid,
        in_specs=[
            pl.BlockSpec((6, p, kc), lambda g: (0, g, 0)),
            pl.BlockSpec((kc, 256), lambda g: (0, 0)),
            pl.BlockSpec((1, 256), lambda g: (0, 0)),
            pl.BlockSpec((3, 256, 256), lambda g: (0, 0, 0)),
            pl.BlockSpec((1, 256), lambda g: (0, 0)),
            pl.BlockSpec((256, 512), lambda g: (0, 0)),
            pl.BlockSpec((1, 512), lambda g: (0, 0)),
        ],
        out_specs=pl.BlockSpec((6, p, 512), lambda g: (0, g, 0)),
        scratch_shapes=[pltpu.VMEM((8, p, 256), compute_dtype)],
        compiler_params=pltpu.CompilerParams(
            dimension_semantics=("parallel",),
            vmem_limit_bytes=48 * 1024 * 1024),   # headroom, stays under v7x's 64 MiB
        cost_estimate=cost,
    )(a1, w1row, b1row, w2fold, b2row, w3blk, b3row)

    # --- glue: rebuild pure-bias border rows, canvas -> NCHW key -------------
    key_int = key_canvas[:, :n].astype(jnp.float32)                 # (6, n, 512)
    border = jnp.broadcast_to(b3row[:, None, :], (1, n, 512))       # rows 0 and 7
    key8 = jnp.concatenate([border, key_int, border], axis=0)       # (8, n, 512)
    key = jnp.transpose(key8.reshape(8, n, 8, 64), (1, 3, 0, 2))    # (N,64,8,8)
    value = _assemble_value(x_patch, v, key, b)
    return key, value


# -----------------------------------------------------------------------------
# Pure-JAX reference (for correctness check of the Pallas conv stack)
# -----------------------------------------------------------------------------
def dictionary_encoder_reference(x, v, params):
    w1, b1, w2, b2, w3, b3 = params
    b = x.shape[0]
    x_patch = _extract_patches(x)

    def conv(z, w, bb, s, pad):
        y = jax.lax.conv_general_dilated(
            z, w, window_strides=(s, s), padding=((pad, pad), (pad, pad)),
            dimension_numbers=("NCHW", "OIHW", "NCHW"))
        return y + bb[None, :, None, None]

    h = jax.nn.relu(conv(x_patch, w1, b1, 2, 2))
    h = jax.nn.relu(conv(h, w2, b2, 1, 1))
    key = conv(h, w3, b3, 1, 1)
    value = _assemble_value(x_patch, v, key, b)
    return key, value


if __name__ == "__main__":
    rng = jax.random.PRNGKey(0)
    ks = jax.random.split(rng, 8)
    b, c, h, w, vdim = 2, 4, 16, 16, 7

    x = jax.random.normal(ks[0], (b, c, h, w), jnp.float32)
    v = jax.random.normal(ks[1], (b, vdim), jnp.float32)

    # Deterministic synthetic parameters (PyTorch OIHW conv layout).
    params = (
        0.1 * jax.random.normal(ks[2], (32, c, 2, 2), jnp.float32),
        0.1 * jax.random.normal(ks[3], (32,), jnp.float32),
        0.1 * jax.random.normal(ks[4], (32, 32, 3, 3), jnp.float32),
        0.1 * jax.random.normal(ks[5], (32,), jnp.float32),
        0.1 * jax.random.normal(ks[6], (64, 32, 1, 1), jnp.float32),
        0.1 * jax.random.normal(ks[7], (64,), jnp.float32),
    )

    run_f32 = jax.jit(functools.partial(dictionary_encoder,
                                        compute_dtype=jnp.float32))
    run_bf16 = jax.jit(functools.partial(dictionary_encoder,
                                         compute_dtype=jnp.bfloat16))

    key_gold, value_gold = dictionary_encoder_reference(x, v, params)

    # f32 MXU-operand / f32-store path: tight match against the dense reference.
    key32, value32 = run_f32(x, v, params)
    jax.block_until_ready((key32, value32))
    assert key32.shape == (b * 49, 64, 8, 8), key32.shape
    assert value32.shape == (b * 49, c + vdim + 2 + 64, 8, 8), value32.shape
    assert jnp.allclose(key32, key_gold, atol=1e-3, rtol=1e-3)
    assert jnp.allclose(value32, value_gold, atol=1e-3, rtol=1e-3)

    # bf16 MXU-operand + bf16-store fast path (default): f32 accumulation,
    # looser tolerance.
    key16, value16 = run_bf16(x, v, params)
    jax.block_until_ready((key16, value16))
    assert key16.shape == (b * 49, 64, 8, 8), key16.shape
    assert value16.shape == (b * 49, c + vdim + 2 + 64, 8, 8), value16.shape
    assert jnp.allclose(key16, key_gold, atol=5e-2, rtol=5e-2)
    assert jnp.allclose(value16, value_gold, atol=5e-2, rtol=5e-2)

    print("KERNEL_OK")
</pallas_src>

<mosaic_0001>
module attributes {stable_mosaic.version = 11 : i64} {
  func.func @_dict_encoder_kernel(%arg0: i32, %arg1: memref<6x64x96xf32, #tpu.memory_space<vmem>>, %arg2: memref<96x256xf32, #tpu.memory_space<vmem>>, %arg3: memref<1x256xf32, #tpu.memory_space<vmem>>, %arg4: memref<3x256x256xf32, #tpu.memory_space<vmem>>, %arg5: memref<1x256xf32, #tpu.memory_space<vmem>>, %arg6: memref<256x512xf32, #tpu.memory_space<vmem>>, %arg7: memref<1x512xf32, #tpu.memory_space<vmem>>, %arg8: memref<6x64x512xf32, #tpu.memory_space<vmem>>, %arg9: memref<8x64x256xf32, #tpu.memory_space<vmem>>) attributes {dimension_semantics = [#tpu.dimension_semantics<parallel>], iteration_bounds = array<i64: 2>, scalar_prefetch = 0 : i64, scratch_operands = 1 : i64, tpu.core_type = #tpu.core_type<tc>, window_params = [{transform_indices = @transform_0, window_bounds = array<i64: 6, 64, 96>}, {pipeline_mode = #tpu.pipeline_mode<synchronous>, transform_indices = @transform_1, window_bounds = array<i64: 96, 256>}, {pipeline_mode = #tpu.pipeline_mode<synchronous>, transform_indices = @transform_2, window_bounds = array<i64: 1, 256>}, {pipeline_mode = #tpu.pipeline_mode<synchronous>, transform_indices = @transform_3, window_bounds = array<i64: 3, 256, 256>}, {pipeline_mode = #tpu.pipeline_mode<synchronous>, transform_indices = @transform_4, window_bounds = array<i64: 1, 256>}, {pipeline_mode = #tpu.pipeline_mode<synchronous>, transform_indices = @transform_5, window_bounds = array<i64: 256, 512>}, {pipeline_mode = #tpu.pipeline_mode<synchronous>, transform_indices = @transform_6, window_bounds = array<i64: 1, 512>}, {transform_indices = @transform_7, window_bounds = array<i64: 6, 64, 512>}]} {
    %cst = arith.constant 0.000000e+00 : f32
    %0 = vector.broadcast %cst : f32 to vector<64x256xf32>
    %c0 = arith.constant 0 : index
    %c0_0 = arith.constant 0 : index
    %c0_1 = arith.constant 0 : index
    %1 = vector.load %arg9[%c0, %c0_0, %c0_1] : memref<8x64x256xf32, #tpu.memory_space<vmem>>, vector<1x64x256xf32>
    %2 = vector.shape_cast %1 : vector<1x64x256xf32> to vector<64x256xf32>
    %3 = vector.shape_cast %0 : vector<64x256xf32> to vector<1x64x256xf32>
    tpu.vector_store %arg9[%c0, %c0_0, %c0_1], %3 {strides = array<i32>} : memref<8x64x256xf32, #tpu.memory_space<vmem>>, vector<1x64x256xf32>,
    %c7 = arith.constant 7 : index
    %c0_2 = arith.constant 0 : index
    %c0_3 = arith.constant 0 : index
    %4 = vector.load %arg9[%c7, %c0_2, %c0_3] : memref<8x64x256xf32, #tpu.memory_space<vmem>>, vector<1x64x256xf32>
    %5 = vector.shape_cast %4 : vector<1x64x256xf32> to vector<64x256xf32>
    %6 = vector.shape_cast %0 : vector<64x256xf32> to vector<1x64x256xf32>
    tpu.vector_store %arg9[%c7, %c0_2, %c0_3], %6 {strides = array<i32>} : memref<8x64x256xf32, #tpu.memory_space<vmem>>, vector<1x64x256xf32>,
    %c0_4 = arith.constant 0 : index
    %c0_5 = arith.constant 0 : index
    %c0_6 = arith.constant 0 : index
    %7 = vector.load %arg1[%c0_4, %c0_5, %c0_6] : memref<6x64x96xf32, #tpu.memory_space<vmem>>, vector<6x64x96xf32>
    %8 = vector.shape_cast %7 : vector<6x64x96xf32> to vector<384x96xf32>
    %c0_7 = arith.constant 0 : index
    %c0_8 = arith.constant 0 : index
    %9 = vector.load %arg2[%c0_7, %c0_8] : memref<96x256xf32, #tpu.memory_space<vmem>>, vector<96x256xf32>
    %cst_9 = arith.constant dense<0.000000e+00> : vector<384x256xf32>
    %10 = tpu.matmul %8, %9, %cst_9 {dimension_numbers = #tpu.dot_dimension_numbers<[1], [0], [0], [1], [0, 0, 1, 1], [], []>} : vector<384x96xf32>, vector<96x256xf32>, vector<384x256xf32> -> vector<384x256xf32>
    %c0_10 = arith.constant 0 : index
    %c0_11 = arith.constant 0 : index
    %11 = vector.load %arg3[%c0_10, %c0_11] : memref<1x256xf32, #tpu.memory_space<vmem>>, vector<1x256xf32>
    %12 = vector.broadcast %11 : vector<1x256xf32> to vector<384x256xf32>
    %13 = arith.addf %10, %12 : vector<384x256xf32>
    %cst_12 = arith.constant 0.000000e+00 : f32
    %14 = vector.broadcast %cst_12 : f32 to vector<384x256xf32>
    %15 = arith.maximumf %13, %14 : vector<384x256xf32>
    %16 = vector.shape_cast %15 : vector<384x256xf32> to vector<6x64x256xf32>
    %c1 = arith.constant 1 : index
    %c0_13 = arith.constant 0 : index
    %c0_14 = arith.constant 0 : index
    %17 = vector.load %arg9[%c1, %c0_13, %c0_14] : memref<8x64x256xf32, #tpu.memory_space<vmem>>, vector<6x64x256xf32>
    tpu.vector_store %arg9[%c1, %c0_13, %c0_14], %16 {strides = array<i32>} : memref<8x64x256xf32, #tpu.memory_space<vmem>>, vector<6x64x256xf32>,
    %c0_15 = arith.constant 0 : index
    %c0_16 = arith.constant 0 : index
    %18 = vector.load %arg5[%c0_15, %c0_16] : memref<1x256xf32, #tpu.memory_space<vmem>>, vector<1x256xf32>
    %c0_17 = arith.constant 0 : index
    %c0_18 = arith.constant 0 : index
    %c0_19 = arith.constant 0 : index
    %19 = vector.load %arg9[%c0_17, %c0_18, %c0_19] : memref<8x64x256xf32, #tpu.memory_space<vmem>>, vector<6x64x256xf32>
    %20 = vector.shape_cast %19 : vector<6x64x256xf32> to vector<384x256xf32>
    %c0_20 = arith.constant 0 : index
    %c0_21 = arith.constant 0 : index
    %c0_22 = arith.constant 0 : index
    %21 = vector.load %arg4[%c0_20, %c0_21, %c0_22] : memref<3x256x256xf32, #tpu.memory_space<vmem>>, vector<1x256x256xf32>
    %22 = vector.shape_cast %21 : vector<1x256x256xf32> to vector<256x256xf32>
    %cst_23 = arith.constant dense<0.000000e+00> : vector<384x256xf32>
    %23 = tpu.matmul %20, %22, %cst_23 {dimension_numbers = #tpu.dot_dimension_numbers<[1], [0], [0], [1], [0, 0, 1, 1], [], []>} : vector<384x256xf32>, vector<256x256xf32>, vector<384x256xf32> -> vector<384x256xf32>
    %24 = vector.broadcast %18 : vector<1x256xf32> to vector<384x256xf32>
    %25 = arith.addf %24, %23 : vector<384x256xf32>
    %c1_24 = arith.constant 1 : index
    %c0_25 = arith.constant 0 : index
    %c0_26 = arith.constant 0 : index
    %26 = vector.load %arg9[%c1_24, %c0_25, %c0_26] : memref<8x64x256xf32, #tpu.memory_space<vmem>>, vector<6x64x256xf32>
    %27 = vector.shape_cast %26 : vector<6x64x256xf32> to vector<384x256xf32>
    %c1_27 = arith.constant 1 : index
    %c0_28 = arith.constant 0 : index
    %c0_29 = arith.constant 0 : index
    %28 = vector.load %arg4[%c1_27, %c0_28, %c0_29] : memref<3x256x256xf32, #tpu.memory_space<vmem>>, vector<1x256x256xf32>
    %29 = vector.shape_cast %28 : vector<1x256x256xf32> to vector<256x256xf32>
    %cst_30 = arith.constant dense<0.000000e+00> : vector<384x256xf32>
    %30 = tpu.matmul %27, %29, %cst_30 {dimension_numbers = #tpu.dot_dimension_numbers<[1], [0], [0], [1], [0, 0, 1, 1], [], []>} : vector<384x256xf32>, vector<256x256xf32>, vector<384x256xf32> -> vector<384x256xf32>
    %31 = arith.addf %25, %30 : vector<384x256xf32>
    %c2 = arith.constant 2 : index
    %c0_31 = arith.constant 0 : index
    %c0_32 = arith.constant 0 : index
    %32 = vector.load %arg9[%c2, %c0_31, %c0_32] : memref<8x64x256xf32, #tpu.memory_space<vmem>>, vector<6x64x256xf32>
    %33 = vector.shape_cast %32 : vector<6x64x256xf32> to vector<384x256xf32>
    %c2_33 = arith.constant 2 : index
    %c0_34 = arith.constant 0 : index
    %c0_35 = arith.constant 0 : index
    %34 = vector.load %arg4[%c2_33, %c0_34, %c0_35] : memref<3x256x256xf32, #tpu.memory_space<vmem>>, vector<1x256x256xf32>
    %35 = vector.shape_cast %34 : vector<1x256x256xf32> to vector<256x256xf32>
    %cst_36 = arith.constant dense<0.000000e+00> : vector<384x256xf32>
    %36 = tpu.matmul %33, %35, %cst_36 {dimension_numbers = #tpu.dot_dimension_numbers<[1], [0], [0], [1], [0, 0, 1, 1], [], []>} : vector<384x256xf32>, vector<256x256xf32>, vector<384x256xf32> -> vector<384x256xf32>
    %37 = arith.addf %31, %36 : vector<384x256xf32>
    %cst_37 = arith.constant 0.000000e+00 : f32
    %38 = vector.broadcast %cst_37 : f32 to vector<384x256xf32>
    %39 = arith.maximumf %37, %38 : vector<384x256xf32>
    %c0_38 = arith.constant 0 : index
    %c0_39 = arith.constant 0 : index
    %40 = vector.load %arg6[%c0_38, %c0_39] : memref<256x512xf32, #tpu.memory_space<vmem>>, vector<256x512xf32>
    %cst_40 = arith.constant dense<0.000000e+00> : vector<384x512xf32>
    %41 = tpu.matmul %39, %40, %cst_40 {dimension_numbers = #tpu.dot_dimension_numbers<[1], [0], [0], [1], [0, 0, 1, 1], [], []>} : vector<384x256xf32>, vector<256x512xf32>, vector<384x512xf32> -> vector<384x512xf32>
    %c0_41 = arith.constant 0 : index
    %c0_42 = arith.constant 0 : index
    %42 = vector.load %arg7[%c0_41, %c0_42] : memref<1x512xf32, #tpu.memory_space<vmem>>, vector<1x512xf32>
    %43 = vector.broadcast %42 : vector<1x512xf32> to vector<384x512xf32>
    %44 = arith.addf %41, %43 : vector<384x512xf32>
    %45 = vector.shape_cast %44 : vector<384x512xf32> to vector<6x64x512xf32>
    %c0_43 = arith.constant 0 : index
    %c0_44 = arith.constant 0 : index
    %c0_45 = arith.constant 0 : index
    %46 = vector.load %arg8[%c0_43, %c0_44, %c0_45] : memref<6x64x512xf32, #tpu.memory_space<vmem>>, vector<6x64x512xf32>
    tpu.vector_store %arg8[%c0_43, %c0_44, %c0_45], %45 {strides = array<i32>} : memref<6x64x512xf32, #tpu.memory_space<vmem>>, vector<6x64x512xf32>,
    return
  }
  func.func @transform_0(%arg0: i32) -> (i32, i32, i32) {
    %c0_i32 = arith.constant 0 : i32
    %c0_i32_0 = arith.constant 0 : i32
    %c0_i32_1 = arith.constant 0 : i32
    return %c0_i32, %arg0, %c0_i32_0 : i32, i32, i32
  }
  func.func @transform_1(%arg0: i32) -> (i32, i32) {
    %c0_i32 = arith.constant 0 : i32
    %c0_i32_0 = arith.constant 0 : i32
    %c0_i32_1 = arith.constant 0 : i32
    return %c0_i32, %c0_i32_0 : i32, i32
  }
  func.func @transform_2(%arg0: i32) -> (i32, i32) {
    %c0_i32 = arith.constant 0 : i32
    %c0_i32_0 = arith.constant 0 : i32
    %c0_i32_1 = arith.constant 0 : i32
    return %c0_i32, %c0_i32_0 : i32, i32
  }
  func.func @transform_3(%arg0: i32) -> (i32, i32, i32) {
    %c0_i32 = arith.constant 0 : i32
    %c0_i32_0 = arith.constant 0 : i32
    %c0_i32_1 = arith.constant 0 : i32
    %c0_i32_2 = arith.constant 0 : i32
    return %c0_i32, %c0_i32_0, %c0_i32_1 : i32, i32, i32
  }
  func.func @transform_4(%arg0: i32) -> (i32, i32) {
    %c0_i32 = arith.constant 0 : i32
    %c0_i32_0 = arith.constant 0 : i32
    %c0_i32_1 = arith.constant 0 : i32
    return %c0_i32, %c0_i32_0 : i32, i32
  }
  func.func @transform_5(%arg0: i32) -> (i32, i32) {
    %c0_i32 = arith.constant 0 : i32
    %c0_i32_0 = arith.constant 0 : i32
    %c0_i32_1 = arith.constant 0 : i32
    return %c0_i32, %c0_i32_0 : i32, i32
  }
  func.func @transform_6(%arg0: i32) -> (i32, i32) {
    %c0_i32 = arith.constant 0 : i32
    %c0_i32_0 = arith.constant 0 : i32
    %c0_i32_1 = arith.constant 0 : i32
    return %c0_i32, %c0_i32_0 : i32, i32
  }
  func.func @transform_7(%arg0: i32) -> (i32, i32, i32) {
    %c0_i32 = arith.constant 0 : i32
    %c0_i32_0 = arith.constant 0 : i32
    %c0_i32_1 = arith.constant 0 : i32
    return %c0_i32, %arg0, %c0_i32_0 : i32, i32, i32
  }
}

</mosaic_0001>

<llo_original>
// kernel: tile.44
$region0: #{tile.44}
  #allocation0 [shape = 's32[1]{0}', space=sflag, size = 0x4, scoped, tag = 'scoped memory for tile.44']
  %s0 = inlined_call_operand.vmem [shape: f32[64], index: 0, kind: input, shape index: {}]
  %s1 = inlined_call_operand.vmem [shape: f32[8,64], index: 1, kind: output, shape index: {}]
  // Predicated region
  $region2: #{tile.44} parent=0 // pred_check
    _
  $region3: #{tile.44} parent=0 // pred_check_branch
    %3 = sbr.rel (0) target = $region5
  $region4: #{tile.44} parent=0 // pred_region
    _
  $region5: #{tile.44} parent=0 // pred_fallthru
    _
  %v4 = vld [vmem:[%s0] ss:$0 sm:$0xff]
  %5 = vst [vmem:[%s1] sm:$0xff] %v4

// kernel: tile.45
$region0: #{tile.45}
  %s0 = inlined_call_operand.vmem [shape: f32[8,64], index: 0, kind: input, shape index: {}]
  %s1 = inlined_call_operand.vmem [shape: f32[1,512], index: 1, kind: output, shape index: {}]
  $region1: #{tile.45} parent=0
    #allocation0 [shape = 'u8[16384]{0}', space=vmem, size = 0x4000, scoped, tag = 'scoped mem for output reshape']
    %v2 = vld [vmem:[%s0] ss:$2 sm:$0xf]
    %vm3 = vcmask 523264
    %4 = vst.msk [vmem:[#allocation0] ss:$8 sm:$0xf] %vm3, %v2
    %s5 = scalar_lea.vmem %s0, 1
    %v6 = vld [vmem:[%s5] ss:$2 sm:$0xf]
    %7 = vrot.lane.b32.xlu0 %v6, 64
    %v8 = vpop.permute.xlu0 %7
    %vm9 = vcmask 1048064
    %10 = vst.msk [vmem:[#allocation0] ss:$8 sm:$0xf] %vm9, %v8
    %s12 = sshllo.u32 0, 1
    %v14 = vld [vmem:[#allocation0] sm:%s12]
    %s15 = sshllo.u32 0, 1
    %16 = vst [vmem:[%s1] sm:%s15] %v14
    %s17 = scalar_lea.vmem [#allocation0], 8
    %v18 = vld [vmem:[%s17] sm:%s12]
    %s19 = sshllo.u32 0, 1
    %s20 = scalar_lea.vmem %s1, 1
    %21 = vst [vmem:[%s20] sm:%s19] %v18
    %s22 = scalar_lea.vmem [#allocation0], 16
    %v23 = vld [vmem:[%s22] sm:%s12]
    %s24 = sshllo.u32 0, 1
    %s25 = smul.addr 1, 2
    %s26 = scalar_lea.vmem %s1, %s25
    %27 = vst [vmem:[%s26] sm:%s24] %v23
    %s28 = scalar_lea.vmem [#allocation0], 24
    %v29 = vld [vmem:[%s28] sm:%s12]
    %s30 = sshllo.u32 0, 1
    %s31 = smul.addr 1, 3
    %s32 = scalar_lea.vmem %s1, %s31
    %33 = vst [vmem:[%s32] sm:%s30] %v29

// kernel: dictionary_encoder.1
$region0: #{dictionary_encoder.1}
  #allocation0 [shape = 'u32[]', space=smem, size = 0x4, offset = 0x4, fixed_abs, tag = 'smem constant byte address 0x4 - core index']
  #allocation1 [shape = 'u32[144,128]{1,0:T(1,128)}', space=vmem, size = 0x12000, scoped, tag = 'internal scratch']
  #allocation2 [shape = 'f32[8,64,256]{2,1,0:T(8,128)}', space=vmem, size = 0x80000, scoped, tag = 'scratch operand']
  %s0 = inlined_call_operand.vmem [shape: f32[6,128,96], index: 0, kind: input, shape index: {}]
  %s1 = inlined_call_operand.vmem [shape: f32[96,256], index: 1, kind: input, shape index: {}]
  %s2 = inlined_call_operand.vmem [shape: f32[1,256], index: 2, kind: input, shape index: {}]
  %s3 = inlined_call_operand.vmem [shape: f32[3,256,256], index: 3, kind: input, shape index: {}]
  %s4 = inlined_call_operand.vmem [shape: f32[1,256], index: 4, kind: input, shape index: {}]
  %s5 = inlined_call_operand.vmem [shape: f32[256,512], index: 5, kind: input, shape index: {}]
  %s6 = inlined_call_operand.vmem [shape: f32[1,512], index: 6, kind: input, shape index: {}]
  %s7 = inlined_call_operand.vmem [shape: f32[6,128,512], index: 7, kind: output, shape index: {}]
  %s8 = sld [smem:[#allocation0]]
  $region118: #{dictionary_encoder.1} parent=0
    _
  %s10 = ssub.s32 1, %s8
  %s11 = scalar_select 0, %s10, %s8
  $region1: #{dictionary_encoder.1} parent=0
    #allocation3 [shape = 'u8[393216]{0}', space=vmem, size = 0x60000, scoped, tag = 'input window, operand 0']
    #allocation4 [shape = 'u8[1572864]{0}', space=vmem, size = 0x180000, scoped, tag = 'output window, operand 0']
    loop: start=0, step=1, limit=4
    $region2: #{dictionary_encoder.1} parent=1 // loop_pre_header
      _
    $region3: #{dictionary_encoder.1} parent=1 // loop_header
      %s13 = sphi 0, %s17
      %p14 = scmp.ge.s32.totalorder %s13, 4
      %s23 = sphi 0, %s25
      %s26 = sphi 0, %s23
      %s27 = sphi 0, %s26
      %s43 = sphi 0, %s27
      %s47 = sphi 0, %s47
      %s49 = sphi 0, %s47
      %s50 = sphi 0, %s49
      %s64 = sphi 0, %s50
      %s68 = sphi 0, %s68
      %s70 = sphi 0, %s68
      %s71 = sphi 0, %s70
      %s85 = sphi 0, %s71
      %s89 = sphi 0, %s89
      %s91 = sphi 0, %s89
      %s92 = sphi 0, %s91
      %s106 = sphi 0, %s92
      %s110 = sphi 0, %s110
      %s112 = sphi 0, %s110
      %s113 = sphi 0, %s112
      %s127 = sphi 0, %s113
      %s131 = sphi 0, %s131
      %s133 = sphi 0, %s131
      %s134 = sphi 0, %s133
      %s148 = sphi 0, %s134
      %s152 = sphi 0, %s152
      %s154 = sphi 0, %s152
      %s155 = sphi 0, %s154
      %s169 = sphi 0, %s155
      %s175 = sphi 0, %s177
      %s178 = sphi 0, %s175
      %s179 = sphi 0, %s178
      %s195 = sphi 0, %s179
    $region4: #{dictionary_encoder.1} parent=1 // loop_header_branch
      %16 = sbr.rel (%p14) target = $region8
    $region5: #{dictionary_encoder.1} parent=1 // loop_body
      %s18 = ssub.s32 %s13, 1
      %s19 = ssub.s32 %s13, 2
      %s20 = sadd.s32 %s13, 1
      %s21 = ssub.s32 %s13, %s20
      %p22 = scmp.eq.s32.totalorder %s21, 0
      %s24 = sadd.s32 %s23, 1
      %s25 = scalar_select %p22, %s23, %s24
      %p28 = pneg %p22
      %p29 = scmp.eq.s32.totalorder %s13, 1
      %p30 = por %p28, %p29
      %p31 = scmp.ne.s32.totalorder %s23, %s26
      %p32 = scmp.eq.s32.totalorder %s13, 0
      %p33 = por %p31, %p32
      %p34 = scmp.ne.s32.totalorder %s23, %s26
      %p35 = scmp.eq.s32.totalorder %s18, 1
      %p36 = por %p34, %p35
      %p37 = scmp.ne.s32.totalorder %s26, %s27
      %p38 = scmp.eq.s32.totalorder %s18, 0
      %p39 = por %p37, %p38
      %p40 = scmp.ne.s32.totalorder %s26, %s27
      %p41 = scmp.eq.s32.totalorder %s19, 1
      %p42 = por %p40, %p41
      %p44 = scmp.ne.s32.totalorder %s27, %s43
      %p45 = scmp.eq.s32.totalorder %s19, 0
      %p46 = por %p44, %p45
      %s48 = sadd.s32 %s47, 1
      %p51 = scmp.eq.s32.totalorder %s13, 1
      %p52 = scmp.ne.s32.totalorder %s47, %s49
      %p53 = scmp.eq.s32.totalorder %s13, 0
      %p54 = por %p52, %p53
      %p55 = scmp.ne.s32.totalorder %s47, %s49
      %p56 = scmp.eq.s32.totalorder %s18, 1
      %p57 = por %p55, %p56
      %p58 = scmp.ne.s32.totalorder %s49, %s50
      %p59 = scmp.eq.s32.totalorder %s18, 0
      %p60 = por %p58, %p59
      %p61 = scmp.ne.s32.totalorder %s49, %s50
      %p62 = scmp.eq.s32.totalorder %s19, 1
      %p63 = por %p61, %p62
      %p65 = scmp.ne.s32.totalorder %s50, %s64
      %p66 = scmp.eq.s32.totalorder %s19, 0
      %p67 = por %p65, %p66
      %s69 = sadd.s32 %s68, 1
      %p72 = scmp.eq.s32.totalorder %s13, 1
      %p73 = scmp.ne.s32.totalorder %s68, %s70
      %p74 = scmp.eq.s32.totalorder %s13, 0
      %p75 = por %p73, %p74
      %p76 = scmp.ne.s32.totalorder %s68, %s70
      %p77 = scmp.eq.s32.totalorder %s18, 1
      %p78 = por %p76, %p77
      %p79 = scmp.ne.s32.totalorder %s70, %s71
      %p80 = scmp.eq.s32.totalorder %s18, 0
      %p81 = por %p79, %p80
      %p82 = scmp.ne.s32.totalorder %s70, %s71
      %p83 = scmp.eq.s32.totalorder %s19, 1
      %p84 = por %p82, %p83
      %p86 = scmp.ne.s32.totalorder %s71, %s85
      %p87 = scmp.eq.s32.totalorder %s19, 0
      %p88 = por %p86, %p87
      %s90 = sadd.s32 %s89, 1
      %p93 = scmp.eq.s32.totalorder %s13, 1
      %p94 = scmp.ne.s32.totalorder %s89, %s91
      %p95 = scmp.eq.s32.totalorder %s13, 0
      %p96 = por %p94, %p95
      %p97 = scmp.ne.s32.totalorder %s89, %s91
      %p98 = scmp.eq.s32.totalorder %s18, 1
      %p99 = por %p97, %p98
      %p100 = scmp.ne.s32.totalorder %s91, %s92
      %p101 = scmp.eq.s32.totalorder %s18, 0
      %p102 = por %p100, %p101
      %p103 = scmp.ne.s32.totalorder %s91, %s92
      %p104 = scmp.eq.s32.totalorder %s19, 1
      %p105 = por %p103, %p104
      %p107 = scmp.ne.s32.totalorder %s92, %s106
      %p108 = scmp.eq.s32.totalorder %s19, 0
      %p109 = por %p107, %p108
      %s111 = sadd.s32 %s110, 1
      %p114 = scmp.eq.s32.totalorder %s13, 1
      %p115 = scmp.ne.s32.totalorder %s110, %s112
      %p116 = scmp.eq.s32.totalorder %s13, 0
      %p117 = por %p115, %p116
      %p118 = scmp.ne.s32.totalorder %s110, %s112
      %p119 = scmp.eq.s32.totalorder %s18, 1
      %p120 = por %p118, %p119
      %p121 = scmp.ne.s32.totalorder %s112, %s113
      %p122 = scmp.eq.s32.totalorder %s18, 0
      %p123 = por %p121, %p122
      %p124 = scmp.ne.s32.totalorder %s112, %s113
      %p125 = scmp.eq.s32.totalorder %s19, 1
      %p126 = por %p124, %p125
      %p128 = scmp.ne.s32.totalorder %s113, %s127
      %p129 = scmp.eq.s32.totalorder %s19, 0
      %p130 = por %p128, %p129
      %s132 = sadd.s32 %s131, 1
      %p135 = scmp.eq.s32.totalorder %s13, 1
      %p136 = scmp.ne.s32.totalorder %s131, %s133
      %p137 = scmp.eq.s32.totalorder %s13, 0
      %p138 = por %p136, %p137
      %p139 = scmp.ne.s32.totalorder %s131, %s133
      %p140 = scmp.eq.s32.totalorder %s18, 1
      %p141 = por %p139, %p140
      %p142 = scmp.ne.s32.totalorder %s133, %s134
      %p143 = scmp.eq.s32.totalorder %s18, 0
      %p144 = por %p142, %p143
      %p145 = scmp.ne.s32.totalorder %s133, %s134
      %p146 = scmp.eq.s32.totalorder %s19, 1
      %p147 = por %p145, %p146
      %p149 = scmp.ne.s32.totalorder %s134, %s148
      %p150 = scmp.eq.s32.totalorder %s19, 0
      %p151 = por %p149, %p150
      %s153 = sadd.s32 %s152, 1
      %p156 = scmp.eq.s32.totalorder %s13, 1
      %p157 = scmp.ne.s32.totalorder %s152, %s154
      %p158 = scmp.eq.s32.totalorder %s13, 0
      %p159 = por %p157, %p158
      %p160 = scmp.ne.s32.totalorder %s152, %s154
      %p161 = scmp.eq.s32.totalorder %s18, 1
      %p162 = por %p160, %p161
      %p163 = scmp.ne.s32.totalorder %s154, %s155
      %p164 = scmp.eq.s32.totalorder %s18, 0
      %p165 = por %p163, %p164
      %p166 = scmp.ne.s32.totalorder %s154, %s155
      %p167 = scmp.eq.s32.totalorder %s19, 1
      %p168 = por %p166, %p167
      %p170 = scmp.ne.s32.totalorder %s155, %s169
      %p171 = scmp.eq.s32.totalorder %s19, 0
      %p172 = por %p170, %p171
      %s173 = ssub.s32 %s13, %s20
      %p174 = scmp.eq.s32.totalorder %s173, 0
      %s176 = sadd.s32 %s175, 1
      %s177 = scalar_select %p174, %s175, %s176
      %p180 = pneg %p174
      %p181 = scmp.eq.s32.totalorder %s13, 1
      %p182 = por %p180, %p181
      %p183 = scmp.ne.s32.totalorder %s175, %s178
      %p184 = scmp.eq.s32.totalorder %s13, 0
      %p185 = por %p183, %p184
      %p186 = scmp.ne.s32.totalorder %s175, %s178
      %p187 = scmp.eq.s32.totalorder %s18, 1
      %p188 = por %p186, %p187
      %p189 = scmp.ne.s32.totalorder %s178, %s179
      %p190 = scmp.eq.s32.totalorder %s18, 0
      %p191 = por %p189, %p190
      %p192 = scmp.ne.s32.totalorder %s178, %s179
      %p193 = scmp.eq.s32.totalorder %s19, 1
      %p194 = por %p192, %p193
      %p196 = scmp.ne.s32.totalorder %s179, %s195
      %p197 = scmp.eq.s32.totalorder %s19, 0
      %p198 = por %p196, %p197
      %p199 = scmp.le.s32.totalorder 1, %s13
      %p200 = scmp.lt.s32.totalorder %s13, 3
      %p201 = pnand %p199, %p200
      %p202 = pneg %p201
      // Predicated region
      $region9: #{dictionary_encoder.1} parent=5 // pred_check
        _
      $region10: #{dictionary_encoder.1} parent=5 // pred_check_branch
        %204 = sbr.rel (%p201) target = $region12
      $region11: #{dictionary_encoder.1} parent=5 // pred_region
        %s205 = ssub.s32 %s13, 1
        // Predicated region
        $region13: #{dictionary_encoder.1} parent=11 // pred_check
          %p206 = pneg %p60
        $region14: #{dictionary_encoder.1} parent=11 // pred_check_branch
          %208 = sbr.rel (%p206) target = $region16
        $region15: #{dictionary_encoder.1} parent=11 // pred_region
          _
        $region16: #{dictionary_encoder.1} parent=11 // pred_fallthru
          _
        // Predicated region
        $region17: #{dictionary_encoder.1} parent=11 // pred_check
          %p209 = pneg %p81
        $region18: #{dictionary_encoder.1} parent=11 // pred_check_branch
          %211 = sbr.rel (%p209) target = $region20
        $region19: #{dictionary_encoder.1} parent=11 // pred_region
          _
        $region20: #{dictionary_encoder.1} parent=11 // pred_fallthru
          _
        // Predicated region
        $region21: #{dictionary_encoder.1} parent=11 // pred_check
          %p212 = pneg %p102
        $region22: #{dictionary_encoder.1} parent=11 // pred_check_branch
          %214 = sbr.rel (%p212) target = $region24
        $region23: #{dictionary_encoder.1} parent=11 // pred_region
          _
        $region24: #{dictionary_encoder.1} parent=11 // pred_fallthru
          _
        // Predicated region
        $region25: #{dictionary_encoder.1} parent=11 // pred_check
          %p215 = pneg %p123
        $region26: #{dictionary_encoder.1} parent=11 // pred_check_branch
          %217 = sbr.rel (%p215) target = $region28
        $region27: #{dictionary_encoder.1} parent=11 // pred_region
          _
        $region28: #{dictionary_encoder.1} parent=11 // pred_fallthru
          _
        // Predicated region
        $region29: #{dictionary_encoder.1} parent=11 // pred_check
          %p218 = pneg %p144
        $region30: #{dictionary_encoder.1} parent=11 // pred_check_branch
          %220 = sbr.rel (%p218) target = $region32
        $region31: #{dictionary_encoder.1} parent=11 // pred_region
          _
        $region32: #{dictionary_encoder.1} parent=11 // pred_fallthru
          _
        // Predicated region
        $region33: #{dictionary_encoder.1} parent=11 // pred_check
          %p221 = pneg %p165
        $region34: #{dictionary_encoder.1} parent=11 // pred_check_branch
          %223 = sbr.rel (%p221) target = $region36
        $region35: #{dictionary_encoder.1} parent=11 // pred_region
          _
        $region36: #{dictionary_encoder.1} parent=11 // pred_fallthru
          _
      $region12: #{dictionary_encoder.1} parent=5 // pred_fallthru
        _
      %p224 = scmp.lt.s32.totalorder %s13, 2
      // Predicated region
      $region37: #{dictionary_encoder.1} parent=5 // pred_check
        %p225 = pneg %p224
      $region38: #{dictionary_encoder.1} parent=5 // pred_check_branch
        %227 = sbr.rel (%p225) target = $region40
      $region39: #{dictionary_encoder.1} parent=5 // pred_region
        // Predicated region
        $region41: #{dictionary_encoder.1} parent=39 // pred_check
          %p228 = pneg %p33
        $region42: #{dictionary_encoder.1} parent=39 // pred_check_branch
          %230 = sbr.rel (%p228) target = $region44
        $region43: #{dictionary_encoder.1} parent=39 // pred_region
          %s231 = sand.u32 %s23, 1
          %s232 = sand.u32 %s23, 1
          %s233 = smul.addr %s232, 384
          %s234 = scalar_lea.vmem [#allocation3], %s233
          %s235 = smul.u32 8, %s13
          %s236 = smul.addr %s235, 8
          %s237 = scalar_lea.vmem %s0, %s236
          // Predicated region
          $region45: #{dictionary_encoder.1} parent=43 // pred_check
            _
          $region46: #{dictionary_encoder.1} parent=43 // pred_check_branch
            %239 = sbr.rel (0) target = $region48
          $region47: #{dictionary_encoder.1} parent=43 // pred_region
            // Predicated region
            $region49: #{dictionary_encoder.1} parent=47 // pred_check
              _
            $region50: #{dictionary_encoder.1} parent=47 // pred_check_branch
              %241 = sbr.rel (0) target = $region52
            $region51: #{dictionary_encoder.1} parent=47 // pred_region
              // Predicated region
              $region64: #{dictionary_encoder.1} parent=51 // pred_check
                _
              $region65: #{dictionary_encoder.1} parent=51 // pred_check_branch
                %350 = sbr.rel (0) target = $region67
              $region66: #{dictionary_encoder.1} parent=51 // pred_region
                loop: start=0, step=1, limit=1
                $region68: #{dictionary_encoder.1} parent=66 // loop_pre_header
                  _
                $region69: #{dictionary_encoder.1} parent=66 // loop_header
                  %s352 = sphi 0, %s356
                  %p353 = scmp.ge.s32.totalorder %s352, 1
                  %s357 = sphi %s237, %s237
                  %s358 = sphi %s234, %s234
                $region70: #{dictionary_encoder.1} parent=66 // loop_header_branch
                  %355 = sbr.rel (%p353) target = $region74
                $region71: #{dictionary_encoder.1} parent=66 // loop_body
                  %v359 = vld [vmem:[%s357] sm:$0xff]
                  %360 = vst [vmem:[%s358] sm:$0xff] %v359
                  %v361 = vld [vmem:[%s357 + $0x8] sm:$0xff]
                  %362 = vst [vmem:[%s358 + $0x8] sm:$0xff] %v361
                  %v363 = vld [vmem:[%s357 + $0x10] sm:$0xff]
                  %364 = vst [vmem:[%s358 + $0x10] sm:$0xff] %v363
                  %v365 = vld [vmem:[%s357 + $0x18] sm:$0xff]
                  %366 = vst [vmem:[%s358 + $0x18] sm:$0xff] %v365
                  %v367 = vld [vmem:[%s357 + $0x20] sm:$0xff]
                  %368 = vst [vmem:[%s358 + $0x20] sm:$0xff] %v367
                  %v369 = vld [vmem:[%s357 + $0x28] sm:$0xff]
                  %370 = vst [vmem:[%s358 + $0x28] sm:$0xff] %v369
                  %v371 = vld [vmem:[%s357 + $0x30] sm:$0xff]
                  %372 = vst [vmem:[%s358 + $0x30] sm:$0xff] %v371
                  %v373 = vld [vmem:[%s357 + $0x38] sm:$0xff]
                  %374 = vst [vmem:[%s358 + $0x38] sm:$0xff] %v373
                  %v375 = vld [vmem:[%s357 + $0x80] sm:$0xff]
                  %376 = vst [vmem:[%s358 + $0x40] sm:$0xff] %v375
                  %v377 = vld [vmem:[%s357 + $0x88] sm:$0xff]
                  %378 = vst [vmem:[%s358 + $0x48] sm:$0xff] %v377
                  %v379 = vld [vmem:[%s357 + $0x90] sm:$0xff]
                  %380 = vst [vmem:[%s358 + $0x50] sm:$0xff] %v379
                  %v381 = vld [vmem:[%s357 + $0x98] sm:$0xff]
                  %382 = vst [vmem:[%s358 + $0x58] sm:$0xff] %v381
                  %v383 = vld [vmem:[%s357 + $0xa0] sm:$0xff]
                  %384 = vst [vmem:[%s358 + $0x60] sm:$0xff] %v383
                  %v385 = vld [vmem:[%s357 + $0xa8] sm:$0xff]
                  %386 = vst [vmem:[%s358 + $0x68] sm:$0xff] %v385
                  %v387 = vld [vmem:[%s357 + $0xb0] sm:$0xff]
                  %388 = vst [vmem:[%s358 + $0x70] sm:$0xff] %v387
                  %v389 = vld [vmem:[%s357 + $0xb8] sm:$0xff]
                  %390 = vst [vmem:[%s358 + $0x78] sm:$0xff] %v389
                  %v391 = vld [vmem:[%s357 + $0x100] sm:$0xff]
                  %392 = vst [vmem:[%s358 + $0x80] sm:$0xff] %v391
                  %v393 = vld [vmem:[%s357 + $0x108] sm:$0xff]
                  %394 = vst [vmem:[%s358 + $0x88] sm:$0xff] %v393
                  %v395 = vld [vmem:[%s357 + $0x110] sm:$0xff]
                  %396 = vst [vmem:[%s358 + $0x90] sm:$0xff] %v395
                  %v397 = vld [vmem:[%s357 + $0x118] sm:$0xff]
                  %398 = vst [vmem:[%s358 + $0x98] sm:$0xff] %v397
                  %v399 = vld [vmem:[%s357 + $0x120] sm:$0xff]
                  %400 = vst [vmem:[%s358 + $0xa0] sm:$0xff] %v399
                  %v401 = vld [vmem:[%s357 + $0x128] sm:$0xff]
                  %402 = vst [vmem:[%s358 + $0xa8] sm:$0xff] %v401
                  %v403 = vld [vmem:[%s357 + $0x130] sm:$0xff]
                  %404 = vst [vmem:[%s358 + $0xb0] sm:$0xff] %v403
                  %v405 = vld [vmem:[%s357 + $0x138] sm:$0xff]
                  %406 = vst [vmem:[%s358 + $0xb8] sm:$0xff] %v405
                  %v407 = vld [vmem:[%s357 + $0x180] sm:$0xff]
                  %408 = vst [vmem:[%s358 + $0xc0] sm:$0xff] %v407
                  %v409 = vld [vmem:[%s357 + $0x188] sm:$0xff]
                  %410 = vst [vmem:[%s358 + $0xc8] sm:$0xff] %v409
                  %v411 = vld [vmem:[%s357 + $0x190] sm:$0xff]
                  %412 = vst [vmem:[%s358 + $0xd0] sm:$0xff] %v411
                  %v413 = vld [vmem:[%s357 + $0x198] sm:$0xff]
                  %414 = vst [vmem:[%s358 + $0xd8] sm:$0xff] %v413
                  %v415 = vld [vmem:[%s357 + $0x1a0] sm:$0xff]
                  %416 = vst [vmem:[%s358 + $0xe0] sm:$0xff] %v415
                  %v417 = vld [vmem:[%s357 + $0x1a8] sm:$0xff]
                  %418 = vst [vmem:[%s358 + $0xe8] sm:$0xff] %v417
                  %v419 = vld [vmem:[%s357 + $0x1b0] sm:$0xff]
                  %420 = vst [vmem:[%s358 + $0xf0] sm:$0xff] %v419
                  %v421 = vld [vmem:[%s357 + $0x1b8] sm:$0xff]
                  %422 = vst [vmem:[%s358 + $0xf8] sm:$0xff] %v421
                  %v423 = vld [vmem:[%s357 + $0x200] sm:$0xff]
                  %424 = vst [vmem:[%s358 + $0x100] sm:$0xff] %v423
                  %v425 = vld [vmem:[%s357 + $0x208] sm:$0xff]
                  %426 = vst [vmem:[%s358 + $0x108] sm:$0xff] %v425
                  %v427 = vld [vmem:[%s357 + $0x210] sm:$0xff]
                  %428 = vst [vmem:[%s358 + $0x110] sm:$0xff] %v427
                  %v429 = vld [vmem:[%s357 + $0x218] sm:$0xff]
                  %430 = vst [vmem:[%s358 + $0x118] sm:$0xff] %v429
                  %v431 = vld [vmem:[%s357 + $0x220] sm:$0xff]
                  %432 = vst [vmem:[%s358 + $0x120] sm:$0xff] %v431
                  %v433 = vld [vmem:[%s357 + $0x228] sm:$0xff]
                  %434 = vst [vmem:[%s358 + $0x128] sm:$0xff] %v433
                  %v435 = vld [vmem:[%s357 + $0x230] sm:$0xff]
                  %436 = vst [vmem:[%s358 + $0x130] sm:$0xff] %v435
                  %v437 = vld [vmem:[%s357 + $0x238] sm:$0xff]
                  %438 = vst [vmem:[%s358 + $0x138] sm:$0xff] %v437
                  %v439 = vld [vmem:[%s357 + $0x280] sm:$0xff]
                  %440 = vst [vmem:[%s358 + $0x140] sm:$0xff] %v439
                  %v441 = vld [vmem:[%s357 + $0x288] sm:$0xff]
                  %442 = vst [vmem:[%s358 + $0x148] sm:$0xff] %v441
                  %v443 = vld [vmem:[%s357 + $0x290] sm:$0xff]
                  %444 = vst [vmem:[%s358 + $0x150] sm:$0xff] %v443
                  %v445 = vld [vmem:[%s357 + $0x298] sm:$0xff]
                  %446 = vst [vmem:[%s358 + $0x158] sm:$0xff] %v445
                  %v447 = vld [vmem:[%s357 + $0x2a0] sm:$0xff]
                  %448 = vst [vmem:[%s358 + $0x160] sm:$0xff] %v447
                  %v449 = vld [vmem:[%s357 + $0x2a8] sm:$0xff]
                  %450 = vst [vmem:[%s358 + $0x168] sm:$0xff] %v449
                  %v451 = vld [vmem:[%s357 + $0x2b0] sm:$0xff]
                  %452 = vst [vmem:[%s358 + $0x170] sm:$0xff] %v451
                  %v453 = vld [vmem:[%s357 + $0x2b8] sm:$0xff]
                  %454 = vst [vmem:[%s358 + $0x178] sm:$0xff] %v453
                $region72: #{dictionary_encoder.1} parent=66 // loop_footer
                  %s356 = sadd.s32 1, %s352
                $region73: #{dictionary_encoder.1} parent=66 // loop_footer_branch
                  %351 = sbr.rel target = $region69
                $region74: #{dictionary_encoder.1} parent=66 // loop_exit
                  _
              $region67: #{dictionary_encoder.1} parent=51 // pred_fallthru
                _
              // Predicated region
              $region75: #{dictionary_encoder.1} parent=51 // pred_check
                _
              $region76: #{dictionary_encoder.1} parent=51 // pred_check_branch
                %456 = sbr.rel target = $region78
              $region77: #{dictionary_encoder.1} parent=51 // pred_region
                _
              $region78: #{dictionary_encoder.1} parent=51 // pred_fallthru
                _
            $region52: #{dictionary_encoder.1} parent=47 // pred_fallthru
              _
            // Predicated region
            $region53: #{dictionary_encoder.1} parent=47 // pred_check
              _
            $region54: #{dictionary_encoder.1} parent=47 // pred_check_branch
              %243 = sbr.rel target = $region56
            $region55: #{dictionary_encoder.1} parent=47 // pred_region
              loop: start=0, step=1, limit=1
              $region57: #{dictionary_encoder.1} parent=55 // loop_pre_header
                _
              $region58: #{dictionary_encoder.1} parent=55 // loop_header
                %s246 = sphi 0, %s250
                %p247 = scmp.ge.s32.totalorder %s246, 1
                %s251 = sphi %s237, %s237
                %s252 = sphi %s234, %s234
              $region59: #{dictionary_encoder.1} parent=55 // loop_header_branch
                %249 = sbr.rel (%p247) target = $region63
              $region60: #{dictionary_encoder.1} parent=55 // loop_body
                %v253 = vld [vmem:[%s251] sm:$0xff]
                %254 = vst [vmem:[%s252] sm:$0xff] %v253
                %v255 = vld [vmem:[%s251 + $0x8] sm:$0xff]
                %256 = vst [vmem:[%s252 + $0x8] sm:$0xff] %v255
                %v257 = vld [vmem:[%s251 + $0x10] sm:$0xff]
                %258 = vst [vmem:[%s252 + $0x10] sm:$0xff] %v257
                %v259 = vld [vmem:[%s251 + $0x18] sm:$0xff]
                %260 = vst [vmem:[%s252 + $0x18] sm:$0xff] %v259
                %v261 = vld [vmem:[%s251 + $0x20] sm:$0xff]
                %262 = vst [vmem:[%s252 + $0x20] sm:$0xff] %v261
                %v263 = vld [vmem:[%s251 + $0x28] sm:$0xff]
                %264 = vst [vmem:[%s252 + $0x28] sm:$0xff] %v263
                %v265 = vld [vmem:[%s251 + $0x30] sm:$0xff]
                %266 = vst [vmem:[%s252 + $0x30] sm:$0xff] %v265
                %v267 = vld [vmem:[%s251 + $0x38] sm:$0xff]
                %268 = vst [vmem:[%s252 + $0x38] sm:$0xff] %v267
                %v269 = vld [vmem:[%s251 + $0x80] sm:$0xff]
                %270 = vst [vmem:[%s252 + $0x40] sm:$0xff] %v269
                %v271 = vld [vmem:[%s251 + $0x88] sm:$0xff]
                %272 = vst [vmem:[%s252 + $0x48] sm:$0xff] %v271
                %v273 = vld [vmem:[%s251 + $0x90] sm:$0xff]
                %274 = vst [vmem:[%s252 + $0x50] sm:$0xff] %v273
                %v275 = vld [vmem:[%s251 + $0x98] sm:$0xff]
                %276 = vst [vmem:[%s252 + $0x58] sm:$0xff] %v275
                %v277 = vld [vmem:[%s251 + $0xa0] sm:$0xff]
                %278 = vst [vmem:[%s252 + $0x60] sm:$0xff] %v277
                %v279 = vld [vmem:[%s251 + $0xa8] sm:$0xff]
                %280 = vst [vmem:[%s252 + $0x68] sm:$0xff] %v279
                %v281 = vld [vmem:[%s251 + $0xb0] sm:$0xff]
                %282 = vst [vmem:[%s252 + $0x70] sm:$0xff] %v281
                %v283 = vld [vmem:[%s251 + $0xb8] sm:$0xff]
                %284 = vst [vmem:[%s252 + $0x78] sm:$0xff] %v283
                %v285 = vld [vmem:[%s251 + $0x100] sm:$0xff]
                %286 = vst [vmem:[%s252 + $0x80] sm:$0xff] %v285
                %v287 = vld [vmem:[%s251 + $0x108] sm:$0xff]
                %288 = vst [vmem:[%s252 + $0x88] sm:$0xff] %v287
                %v289 = vld [vmem:[%s251 + $0x110] sm:$0xff]
                %290 = vst [vmem:[%s252 + $0x90] sm:$0xff] %v289
                %v291 = vld [vmem:[%s251 + $0x118] sm:$0xff]
                %292 = vst [vmem:[%s252 + $0x98] sm:$0xff] %v291
                %v293 = vld [vmem:[%s251 + $0x120] sm:$0xff]
                %294 = vst [vmem:[%s252 + $0xa0] sm:$0xff] %v293
                %v295 = vld [vmem:[%s251 + $0x128] sm:$0xff]
                %296 = vst [vmem:[%s252 + $0xa8] sm:$0xff] %v295
                %v297 = vld [vmem:[%s251 + $0x130] sm:$0xff]
                %298 = vst [vmem:[%s252 + $0xb0] sm:$0xff] %v297
                %v299 = vld [vmem:[%s251 + $0x138] sm:$0xff]
                %300 = vst [vmem:[%s252 + $0xb8] sm:$0xff] %v299
                %v301 = vld [vmem:[%s251 + $0x180] sm:$0xff]
                %302 = vst [vmem:[%s252 + $0xc0] sm:$0xff] %v301
                %v303 = vld [vmem:[%s251 + $0x188] sm:$0xff]
                %304 = vst [vmem:[%s252 + $0xc8] sm:$0xff] %v303
                %v305 = vld [vmem:[%s251 + $0x190] sm:$0xff]
                %306 = vst [vmem:[%s252 + $0xd0] sm:$0xff] %v305
                %v307 = vld [vmem:[%s251 + $0x198] sm:$0xff]
                %308 = vst [vmem:[%s252 + $0xd8] sm:$0xff] %v307
                %v309 = vld [vmem:[%s251 + $0x1a0] sm:$0xff]
                %310 = vst [vmem:[%s252 + $0xe0] sm:$0xff] %v309
                %v311 = vld [vmem:[%s251 + $0x1a8] sm:$0xff]
                %312 = vst [vmem:[%s252 + $0xe8] sm:$0xff] %v311
                %v313 = vld [vmem:[%s251 + $0x1b0] sm:$0xff]
                %314 = vst [vmem:[%s252 + $0xf0] sm:$0xff] %v313
                %v315 = vld [vmem:[%s251 + $0x1b8] sm:$0xff]
                %316 = vst [vmem:[%s252 + $0xf8] sm:$0xff] %v315
                %v317 = vld [vmem:[%s251 + $0x200] sm:$0xff]
                %318 = vst [vmem:[%s252 + $0x100] sm:$0xff] %v317
                %v319 = vld [vmem:[%s251 + $0x208] sm:$0xff]
                %320 = vst [vmem:[%s252 + $0x108] sm:$0xff] %v319
                %v321 = vld [vmem:[%s251 + $0x210] sm:$0xff]
                %322 = vst [vmem:[%s252 + $0x110] sm:$0xff] %v321
                %v323 = vld [vmem:[%s251 + $0x218] sm:$0xff]
                %324 = vst [vmem:[%s252 + $0x118] sm:$0xff] %v323
                %v325 = vld [vmem:[%s251 + $0x220] sm:$0xff]
                %326 = vst [vmem:[%s252 + $0x120] sm:$0xff] %v325
                %v327 = vld [vmem:[%s251 + $0x228] sm:$0xff]
                %328 = vst [vmem:[%s252 + $0x128] sm:$0xff] %v327
                %v329 = vld [vmem:[%s251 + $0x230] sm:$0xff]
                %330 = vst [vmem:[%s252 + $0x130] sm:$0xff] %v329
                %v331 = vld [vmem:[%s251 + $0x238] sm:$0xff]
                %332 = vst [vmem:[%s252 + $0x138] sm:$0xff] %v331
                %v333 = vld [vmem:[%s251 + $0x280] sm:$0xff]
                %334 = vst [vmem:[%s252 + $0x140] sm:$0xff] %v333
                %v335 = vld [vmem:[%s251 + $0x288] sm:$0xff]
                %336 = vst [vmem:[%s252 + $0x148] sm:$0xff] %v335
                %v337 = vld [vmem:[%s251 + $0x290] sm:$0xff]
                %338 = vst [vmem:[%s252 + $0x150] sm:$0xff] %v337
                %v339 = vld [vmem:[%s251 + $0x298] sm:$0xff]
                %340 = vst [vmem:[%s252 + $0x158] sm:$0xff] %v339
                %v341 = vld [vmem:[%s251 + $0x2a0] sm:$0xff]
                %342 = vst [vmem:[%s252 + $0x160] sm:$0xff] %v341
                %v343 = vld [vmem:[%s251 + $0x2a8] sm:$0xff]
                %344 = vst [vmem:[%s252 + $0x168] sm:$0xff] %v343
                %v345 = vld [vmem:[%s251 + $0x2b0] sm:$0xff]
                %346 = vst [vmem:[%s252 + $0x170] sm:$0xff] %v345
                %v347 = vld [vmem:[%s251 + $0x2b8] sm:$0xff]
                %348 = vst [vmem:[%s252 + $0x178] sm:$0xff] %v347
              $region61: #{dictionary_encoder.1} parent=55 // loop_footer
                %s250 = sadd.s32 1, %s246
              $region62: #{dictionary_encoder.1} parent=55 // loop_footer_branch
                %245 = sbr.rel target = $region58
              $region63: #{dictionary_encoder.1} parent=55 // loop_exit
                _
            $region56: #{dictionary_encoder.1} parent=47 // pred_fallthru
              _
          $region48: #{dictionary_encoder.1} parent=43 // pred_fallthru
            _
          %457 = vnop
        $region44: #{dictionary_encoder.1} parent=39 // pred_fallthru
          _
      $region40: #{dictionary_encoder.1} parent=5 // pred_fallthru
        _
      %p458 = scmp.le.s32.totalorder 1, %s13
      %p459 = scmp.lt.s32.totalorder %s13, 3
      %p460 = pnand %p458, %p459
      %p461 = pneg %p460
      // Predicated region
      $region79: #{dictionary_encoder.1} parent=5 // pred_check
        _
      $region80: #{dictionary_encoder.1} parent=5 // pred_check_branch
        %463 = sbr.rel (%p460) target = $region82
      $region81: #{dictionary_encoder.1} parent=5 // pred_region
        %s464 = ssub.s32 %s13, 1
        %s465 = sand.u32 %s26, 1
        %s466 = sand.u32 %s26, 1
        %s467 = smul.addr %s466, 384
        %s468 = scalar_lea.vmem [#allocation3], %s467
        // Predicated region
        $region83: #{dictionary_encoder.1} parent=81 // pred_check
          %p469 = pneg %p39
        $region84: #{dictionary_encoder.1} parent=81 // pred_check_branch
          %471 = sbr.rel (%p469) target = $region86
        $region85: #{dictionary_encoder.1} parent=81 // pred_region
          _
        $region86: #{dictionary_encoder.1} parent=81 // pred_fallthru
          _
        %s472 = sand.u32 %s26, 1
        %s473 = sand.u32 %s26, 1
        %s474 = smul.addr %s473, 384
        %s475 = scalar_lea.vmem [#allocation3], %s474
        %p476 = pneg %p39
        %p477 = pneg %p36
        %p478 = pneg %p60
        %p479 = pneg %p57
        %p480 = pneg %p81
        %p481 = pneg %p78
        %p482 = pneg %p102
        %p483 = pneg %p99
        %p484 = pneg %p123
        %p485 = pneg %p120
        %p486 = pneg %p144
        %p487 = pneg %p141
        %p488 = pneg %p165
        %p489 = pneg %p162
        %p490 = pneg %p191
        %p491 = pneg %p188
        %s492 = sand.u32 %s178, 1
        %s493 = sand.u32 %s178, 1
        %s494 = smul.addr %s493, 1536
        %s495 = scalar_lea.vmem [#allocation4], %s494
        %s496 = smul.u32 8, %s18
        %s497 = smul.u32 8, %s18
        %498 = vst [vmem:[#allocation2] sm:$0xff] 0.0
        %499 = vst [vmem:[#allocation2 + $0x8] sm:$0xff] 0.0
        %500 = vst [vmem:[#allocation2 + $0x10] sm:$0xff] 0.0
        %501 = vst [vmem:[#allocation2 + $0x18] sm:$0xff] 0.0
        %502 = vst [vmem:[#allocation2 + $0x20] sm:$0xff] 0.0
        %503 = vst [vmem:[#allocation2 + $0x28] sm:$0xff] 0.0
        %504 = vst [vmem:[#allocation2 + $0x30] sm:$0xff] 0.0
        %505 = vst [vmem:[#allocation2 + $0x38] sm:$0xff] 0.0
        %506 = vst [vmem:[#allocation2 + $0x40] sm:$0xff] 0.0
        %507 = vst [vmem:[#allocation2 + $0x48] sm:$0xff] 0.0
        %508 = vst [vmem:[#allocation2 + $0x50] sm:$0xff] 0.0
        %509 = vst [vmem:[#allocation2 + $0x58] sm:$0xff] 0.0
        %510 = vst [vmem:[#allocation2 + $0x60] sm:$0xff] 0.0
        %511 = vst [vmem:[#allocation2 + $0x68] sm:$0xff] 0.0
        %512 = vst [vmem:[#allocation2 + $0x70] sm:$0xff] 0.0
        %513 = vst [vmem:[#allocation2 + $0x78] sm:$0xff] 0.0
        %s514 = scalar_lea.vmem [#allocation2], 896
        %515 = vst [vmem:[%s514] sm:$0xff] 0.0
        %516 = vst [vmem:[%s514 + $0x8] sm:$0xff] 0.0
        %517 = vst [vmem:[%s514 + $0x10] sm:$0xff] 0.0
        %518 = vst [vmem:[%s514 + $0x18] sm:$0xff] 0.0
        %519 = vst [vmem:[%s514 + $0x20] sm:$0xff] 0.0
        %520 = vst [vmem:[%s514 + $0x28] sm:$0xff] 0.0
        %521 = vst [vmem:[%s514 + $0x30] sm:$0xff] 0.0
        %522 = vst [vmem:[%s514 + $0x38] sm:$0xff] 0.0
        %523 = vst [vmem:[%s514 + $0x40] sm:$0xff] 0.0
        %524 = vst [vmem:[%s514 + $0x48] sm:$0xff] 0.0
        %525 = vst [vmem:[%s514 + $0x50] sm:$0xff] 0.0
        %526 = vst [vmem:[%s514 + $0x58] sm:$0xff] 0.0
        %527 = vst [vmem:[%s514 + $0x60] sm:$0xff] 0.0
        %528 = vst [vmem:[%s514 + $0x68] sm:$0xff] 0.0
        %529 = vst [vmem:[%s514 + $0x70] sm:$0xff] 0.0
        %530 = vst [vmem:[%s514 + $0x78] sm:$0xff] 0.0
        %v531 = vld [vmem:[%s468] sm:$0xff]
        %v532 = vld [vmem:[%s468 + $0x8] sm:$0xff]
        %v533 = vld [vmem:[%s468 + $0x10] sm:$0xff]
        %v534 = vld [vmem:[%s468 + $0x18] sm:$0xff]
        %v535 = vld [vmem:[%s468 + $0x20] sm:$0xff]
        %v536 = vld [vmem:[%s468 + $0x28] sm:$0xff]
        %v537 = vld [vmem:[%s468 + $0x30] sm:$0xff]
        %v538 = vld [vmem:[%s468 + $0x38] sm:$0xff]
        %v539 = vld [vmem:[%s468 + $0x40] sm:$0xff]
        %v540 = vld [vmem:[%s468 + $0x48] sm:$0xff]
        %v541 = vld [vmem:[%s468 + $0x50] sm:$0xff]
        %v542 = vld [vmem:[%s468 + $0x58] sm:$0xff]
        %v543 = vld [vmem:[%s468 + $0x60] sm:$0xff]
        %v544 = vld [vmem:[%s468 + $0x68] sm:$0xff]
        %v545 = vld [vmem:[%s468 + $0x70] sm:$0xff]
        %v546 = vld [vmem:[%s468 + $0x78] sm:$0xff]
        %v547 = vld [vmem:[%s468 + $0x80] sm:$0xff]
        %v548 = vld [vmem:[%s468 + $0x88] sm:$0xff]
        %v549 = vld [vmem:[%s468 + $0x90] sm:$0xff]
        %v550 = vld [vmem:[%s468 + $0x98] sm:$0xff]
        %v551 = vld [vmem:[%s468 + $0xa0] sm:$0xff]
        %v552 = vld [vmem:[%s468 + $0xa8] sm:$0xff]
        %v553 = vld [vmem:[%s468 + $0xb0] sm:$0xff]
        %v554 = vld [vmem:[%s468 + $0xb8] sm:$0xff]
        %v555 = vld [vmem:[%s468 + $0xc0] sm:$0xff]
        %v556 = vld [vmem:[%s468 + $0xc8] sm:$0xff]
        %v557 = vld [vmem:[%s468 + $0xd0] sm:$0xff]
        %v558 = vld [vmem:[%s468 + $0xd8] sm:$0xff]
        %v559 = vld [vmem:[%s468 + $0xe0] sm:$0xff]
        %v560 = vld [vmem:[%s468 + $0xe8] sm:$0xff]
        %v561 = vld [vmem:[%s468 + $0xf0] sm:$0xff]
        %v562 = vld [vmem:[%s468 + $0xf8] sm:$0xff]
        %v563 = vld [vmem:[%s468 + $0x100] sm:$0xff]
        %v564 = vld [vmem:[%s468 + $0x108] sm:$0xff]
        %v565 = vld [vmem:[%s468 + $0x110] sm:$0xff]
        %v566 = vld [vmem:[%s468 + $0x118] sm:$0xff]
        %v567 = vld [vmem:[%s468 + $0x120] sm:$0xff]
        %v568 = vld [vmem:[%s468 + $0x128] sm:$0xff]
        %v569 = vld [vmem:[%s468 + $0x130] sm:$0xff]
        %v570 = vld [vmem:[%s468 + $0x138] sm:$0xff]
        %v571 = vld [vmem:[%s468 + $0x140] sm:$0xff]
        %v572 = vld [vmem:[%s468 + $0x148] sm:$0xff]
        %v573 = vld [vmem:[%s468 + $0x150] sm:$0xff]
        %v574 = vld [vmem:[%s468 + $0x158] sm:$0xff]
        %v575 = vld [vmem:[%s468 + $0x160] sm:$0xff]
        %v576 = vld [vmem:[%s468 + $0x168] sm:$0xff]
        %v577 = vld [vmem:[%s468 + $0x170] sm:$0xff]
        %v578 = vld [vmem:[%s468 + $0x178] sm:$0xff]
        %v579 = vld [vmem:[%s1] sm:$0xff]
        %v580 = vld [vmem:[%s1 + $0x8] sm:$0xff]
        %v581 = vld [vmem:[%s1 + $0x10] sm:$0xff]
        %v582 = vld [vmem:[%s1 + $0x18] sm:$0xff]
        %v583 = vld [vmem:[%s1 + $0x20] sm:$0xff]
        %v584 = vld [vmem:[%s1 + $0x28] sm:$0xff]
        %v585 = vld [vmem:[%s1 + $0x30] sm:$0xff]
        %v586 = vld [vmem:[%s1 + $0x38] sm:$0xff]
        %v587 = vld [vmem:[%s1 + $0x40] sm:$0xff]
        %v588 = vld [vmem:[%s1 + $0x48] sm:$0xff]
        %v589 = vld [vmem:[%s1 + $0x50] sm:$0xff]
        %v590 = vld [vmem:[%s1 + $0x58] sm:$0xff]
        %v591 = vld [vmem:[%s1 + $0x60] sm:$0xff]
        %v592 = vld [vmem:[%s1 + $0x68] sm:$0xff]
        %v593 = vld [vmem:[%s1 + $0x70] sm:$0xff]
        %v594 = vld [vmem:[%s1 + $0x78] sm:$0xff]
        %v595 = vld [vmem:[%s1 + $0x80] sm:$0xff]
        %v596 = vld [vmem:[%s1 + $0x88] sm:$0xff]
        %v597 = vld [vmem:[%s1 + $0x90] sm:$0xff]
        %v598 = vld [vmem:[%s1 + $0x98] sm:$0xff]
        %v599 = vld [vmem:[%s1 + $0xa0] sm:$0xff]
        %v600 = vld [vmem:[%s1 + $0xa8] sm:$0xff]
        %v601 = vld [vmem:[%s1 + $0xb0] sm:$0xff]
        %v602 = vld [vmem:[%s1 + $0xb8] sm:$0xff]
        %v603 = vld [vmem:[%s2] sm:$0x3]
        %v605 = vlaneseq
        %v606 = vshrl.u32 %v605, 7
        %v607 = vsub.s32 0, %v606
        %v608 = vrot.slane %v603, %v607
        %v609 = vlaneseq
        %v610 = vshrl.u32 %v609, 7
        %v611 = vsub.s32 1, %v610
        %v612 = vrot.slane %v603, %v611
        %vm615 = vcmask 785408
        %v617 = vsel %vm615, %v531, 0
        %v620 = vsel %vm615, %v532, 0
        %v623 = vsel %vm615, %v533, 0
        %v626 = vsel %vm615, %v534, 0
        %v629 = vsel %vm615, %v535, 0
        %v632 = vsel %vm615, %v536, 0
        %v635 = vsel %vm615, %v537, 0
        %v638 = vsel %vm615, %v538, 0
        %v641 = vsel %vm615, %v539, 0
        %v644 = vsel %vm615, %v540, 0
        %v647 = vsel %vm615, %v541, 0
        %v650 = vsel %vm615, %v542, 0
        %v653 = vsel %vm615, %v543, 0
        %v656 = vsel %vm615, %v544, 0
        %v659 = vsel %vm615, %v545, 0
        %v662 = vsel %vm615, %v546, 0
        %v665 = vsel %vm615, %v547, 0
        %v668 = vsel %vm615, %v548, 0
        %v671 = vsel %vm615, %v549, 0
        %v674 = vsel %vm615, %v550, 0
        %v677 = vsel %vm615, %v551, 0
        %v680 = vsel %vm615, %v552, 0
        %v683 = vsel %vm615, %v553, 0
        %v686 = vsel %vm615, %v554, 0
        %v689 = vsel %vm615, %v555, 0
        %v692 = vsel %vm615, %v556, 0
        %v695 = vsel %vm615, %v557, 0
        %v698 = vsel %vm615, %v558, 0
        %v701 = vsel %vm615, %v559, 0
        %v704 = vsel %vm615, %v560, 0
        %v707 = vsel %vm615, %v561, 0
        %v710 = vsel %vm615, %v562, 0
        %v713 = vsel %vm615, %v563, 0
        %v716 = vsel %vm615, %v564, 0
        %v719 = vsel %vm615, %v565, 0
        %v722 = vsel %vm615, %v566, 0
        %v725 = vsel %vm615, %v567, 0
        %v728 = vsel %vm615, %v568, 0
        %v731 = vsel %vm615, %v569, 0
        %v734 = vsel %vm615, %v570, 0
        %v737 = vsel %vm615, %v571, 0
        %v740 = vsel %vm615, %v572, 0
        %v743 = vsel %vm615, %v573, 0
        %v746 = vsel %vm615, %v574, 0
        %v749 = vsel %vm615, %v575, 0
        %v752 = vsel %vm615, %v576, 0
        %v755 = vsel %vm615, %v577, 0
        %v758 = vsel %vm615, %v578, 0
        %760 = vmatprep.subr.mxu0 %v580
        %761 = vmatpush1.msra.mxu0 %v579
        %762 = vmatprep.subr.mxu0 %v582
        %763 = vmatpush1.msra.mxu0 %v581
        %764 = vmatprep.subr.mxu0 %v584
        %765 = vmatpush1.msra.mxu0 %v583
        %766 = vmatprep.subr.mxu0 %v586
        %767 = vmatpush1.msra.mxu0 %v585
        %768 = vmatprep.subr.mxu0 %v588
        %769 = vmatpush1.msra.mxu0 %v587
        %770 = vmatprep.subr.mxu0 %v590
        %771 = vmatpush1.msra.mxu0 %v589
        %772 = vmatprep.subr.mxu0 %v592
        %773 = vmatpush1.msra.mxu0 %v591
        %774 = vmatprep.subr.mxu0 %v594
        %775 = vmatpush1.msra.mxu0 %v593
        %776 = vmatprep.subr.mxu0 %v596
        %777 = vmatpush1.msra.mxu0 %v595
        %778 = vmatprep.subr.mxu0 %v598
        %779 = vmatpush1.msra.mxu0 %v597
        %780 = vmatprep.subr.mxu0 %v600
        %781 = vmatpush1.msra.mxu0 %v599
        %782 = vmatprep.subr.mxu0 %v602
        %783 = vmatpush1.msra.mxu0 %v601
        %784 = vmatprep.subr.mxu0 0.0
        %785 = vmatpush1.msra.mxu0 0.0
        %786 = vmatprep.subr.mxu0 0.0
        %787 = vmatpush1.msra.mxu0 0.0
        %788 = vmatprep.subr.mxu0 0.0
        %789 = vmatpush1.msra.mxu0 0.0
        %790 = vmatprep.subr.mxu0 0.0
        %791 = vmatpush1.msra.mxu0 0.0
        %792 = vmatprep.subr.mxu0 0.0
        %793 = vmatpush1.msra.mxu0 0.0
        %794 = vmatprep.subr.mxu0 0.0
        %795 = vmatpush1.msra.mxu0 0.0
        %796 = vmatprep.subr.mxu0 0.0
        %797 = vmatpush1.msra.mxu0 0.0
        %798 = vmatprep.subr.mxu0 0.0
        %799 = vmatpush1.msra.mxu0 0.0
        %800 = vmatprep.subr.mxu0 0.0
        %801 = vmatpush1.msra.mxu0 0.0
        %802 = vmatprep.subr.mxu0 0.0
        %803 = vmatpush1.msra.mxu0 0.0
        %804 = vmatprep.subr.mxu0 0.0
        %805 = vmatpush1.msra.mxu0 0.0
        %806 = vmatprep.subr.mxu0 0.0
        %807 = vmatpush1.msra.mxu0 0.0
        %808 = vmatprep.subr.mxu0 0.0
        %809 = vmatpush1.msra.mxu0 0.0
        %810 = vmatprep.subr.mxu0 0.0
        %811 = vmatpush1.msra.mxu0 0.0
        %812 = vmatprep.subr.mxu0 0.0
        %813 = vmatpush1.msra.mxu0 0.0
        %814 = vmatprep.subr.mxu0 0.0
        %815 = vmatpush1.msra.mxu0 0.0
        %816 = vmatprep.subr.mxu0 0.0
        %817 = vmatpush1.msra.mxu0 0.0
        %818 = vmatprep.subr.mxu0 0.0
        %819 = vmatpush1.msra.mxu0 0.0
        %820 = vmatprep.subr.mxu0 0.0
        %821 = vmatpush1.msra.mxu0 0.0
        %822 = vmatprep.subr.mxu0 0.0
        %823 = vmatpush1.msra.mxu0 0.0
        %824 = vmatprep.mubr.f32.mxu0 0.0
        %825 = vmatmul.mubr.f32.gmra.mrb[0].mxu0 %v617
        %v826 = vpop.f32.mrb[0].mxu0
        %v827 = vadd.f32 %v608, %v826
        %v828 = vpop.f32.mrb[0].mxu0
        %v829 = vadd.f32 %v612, %v828
        %830 = vmatprep.mubr.f32.mxu0 0.0
        %831 = vmatmul.mubr.f32.gmra.mrb[0].mxu0 %v620
        %v832 = vpop.f32.mrb[0].mxu0
        %v833 = vadd.f32 %v608, %v832
        %v834 = vpop.f32.mrb[0].mxu0
        %v835 = vadd.f32 %v612, %v834
        %836 = vmatprep.mubr.f32.mxu0 0.0
        %837 = vmatmul.mubr.f32.gmra.mrb[0].mxu0 %v623
        %v838 = vpop.f32.mrb[0].mxu0
        %v839 = vadd.f32 %v608, %v838
        %v840 = vpop.f32.mrb[0].mxu0
        %v841 = vadd.f32 %v612, %v840
        %842 = vmatprep.mubr.f32.mxu0 0.0
        %843 = vmatmul.mubr.f32.gmra.mrb[0].mxu0 %v626
        %v844 = vpop.f32.mrb[0].mxu0
        %v845 = vadd.f32 %v608, %v844
        %v846 = vpop.f32.mrb[0].mxu0
        %v847 = vadd.f32 %v612, %v846
        %848 = vmatprep.mubr.f32.mxu0 0.0
        %849 = vmatmul.mubr.f32.gmra.mrb[0].mxu0 %v629
        %v850 = vpop.f32.mrb[0].mxu0
        %v851 = vadd.f32 %v608, %v850
        %v852 = vpop.f32.mrb[0].mxu0
        %v853 = vadd.f32 %v612, %v852
        %854 = vmatprep.mubr.f32.mxu0 0.0
        %855 = vmatmul.mubr.f32.gmra.mrb[0].mxu0 %v632
        %v856 = vpop.f32.mrb[0].mxu0
        %v857 = vadd.f32 %v608, %v856
        %v858 = vpop.f32.mrb[0].mxu0
        %v859 = vadd.f32 %v612, %v858
        %860 = vmatprep.mubr.f32.mxu0 0.0
        %861 = vmatmul.mubr.f32.gmra.mrb[0].mxu0 %v635
        %v862 = vpop.f32.mrb[0].mxu0
        %v863 = vadd.f32 %v608, %v862
        %v864 = vpop.f32.mrb[0].mxu0
        %v865 = vadd.f32 %v612, %v864
        %866 = vmatprep.mubr.f32.mxu0 0.0
        %867 = vmatmul.mubr.f32.gmra.mrb[0].mxu0 %v638
        %v868 = vpop.f32.mrb[0].mxu0
        %v869 = vadd.f32 %v608, %v868
        %v870 = vpop.f32.mrb[0].mxu0
        %v871 = vadd.f32 %v612, %v870
        %872 = vmatprep.mubr.f32.mxu0 0.0
        %873 = vmatmul.mubr.f32.gmra.mrb[0].mxu0 %v641
        %v874 = vpop.f32.mrb[0].mxu0
        %v875 = vadd.f32 %v608, %v874
        %v876 = vpop.f32.mrb[0].mxu0
        %v877 = vadd.f32 %v612, %v876
        %878 = vmatprep.mubr.f32.mxu0 0.0
        %879 = vmatmul.mubr.f32.gmra.mrb[0].mxu0 %v644
        %v880 = vpop.f32.mrb[0].mxu0
        %v881 = vadd.f32 %v608, %v880
        %v882 = vpop.f32.mrb[0].mxu0
        %v883 = vadd.f32 %v612, %v882
        %884 = vmatprep.mubr.f32.mxu0 0.0
        %885 = vmatmul.mubr.f32.gmra.mrb[0].mxu0 %v647
        %v886 = vpop.f32.mrb[0].mxu0
        %v887 = vadd.f32 %v608, %v886
        %v888 = vpop.f32.mrb[0].mxu0
        %v889 = vadd.f32 %v612, %v888
        %890 = vmatprep.mubr.f32.mxu0 0.0
        %891 = vmatmul.mubr.f32.gmra.mrb[0].mxu0 %v650
        %v892 = vpop.f32.mrb[0].mxu0
        %v893 = vadd.f32 %v608, %v892
        %v894 = vpop.f32.mrb[0].mxu0
        %v895 = vadd.f32 %v612, %v894
        %896 = vmatprep.mubr.f32.mxu0 0.0
        %897 = vmatmul.mubr.f32.gmra.mrb[0].mxu0 %v653
        %v898 = vpop.f32.mrb[0].mxu0
        %v899 = vadd.f32 %v608, %v898
        %v900 = vpop.f32.mrb[0].mxu0
        %v901 = vadd.f32 %v612, %v900
        %902 = vmatprep.mubr.f32.mxu0 0.0
        %903 = vmatmul.mubr.f32.gmra.mrb[0].mxu0 %v656
        %v904 = vpop.f32.mrb[0].mxu0
        %v905 = vadd.f32 %v608, %v904
        %v906 = vpop.f32.mrb[0].mxu0
        %v907 = vadd.f32 %v612, %v906
        %908 = vmatprep.mubr.f32.mxu0 0.0
        %909 = vmatmul.mubr.f32.gmra.mrb[0].mxu0 %v659
        %v910 = vpop.f32.mrb[0].mxu0
        %v911 = vadd.f32 %v608, %v910
        %v912 = vpop.f32.mrb[0].mxu0
        %v913 = vadd.f32 %v612, %v912
        %914 = vmatprep.mubr.f32.mxu0 0.0
        %915 = vmatmul.mubr.f32.gmra.mrb[0].mxu0 %v662
        %v916 = vpop.f32.mrb[0].mxu0
        %v917 = vadd.f32 %v608, %v916
        %v918 = vpop.f32.mrb[0].mxu0
        %v919 = vadd.f32 %v612, %v918
        %920 = vmatprep.mubr.f32.mxu0 0.0
        %921 = vmatmul.mubr.f32.gmra.mrb[0].mxu0 %v665
        %v922 = vpop.f32.mrb[0].mxu0
        %v923 = vadd.f32 %v608, %v922
        %v924 = vpop.f32.mrb[0].mxu0
        %v925 = vadd.f32 %v612, %v924
        %926 = vmatprep.mubr.f32.mxu0 0.0
        %927 = vmatmul.mubr.f32.gmra.mrb[0].mxu0 %v668
        %v928 = vpop.f32.mrb[0].mxu0
        %v929 = vadd.f32 %v608, %v928
        %v930 = vpop.f32.mrb[0].mxu0
        %v931 = vadd.f32 %v612, %v930
        %932 = vmatprep.mubr.f32.mxu0 0.0
        %933 = vmatmul.mubr.f32.gmra.mrb[0].mxu0 %v671
        %v934 = vpop.f32.mrb[0].mxu0
        %v935 = vadd.f32 %v608, %v934
        %v936 = vpop.f32.mrb[0].mxu0
        %v937 = vadd.f32 %v612, %v936
        %938 = vmatprep.mubr.f32.mxu0 0.0
        %939 = vmatmul.mubr.f32.gmra.mrb[0].mxu0 %v674
        %v940 = vpop.f32.mrb[0].mxu0
        %v941 = vadd.f32 %v608, %v940
        %v942 = vpop.f32.mrb[0].mxu0
        %v943 = vadd.f32 %v612, %v942
        %944 = vmatprep.mubr.f32.mxu0 0.0
        %945 = vmatmul.mubr.f32.gmra.mrb[0].mxu0 %v677
        %v946 = vpop.f32.mrb[0].mxu0
        %v947 = vadd.f32 %v608, %v946
        %v948 = vpop.f32.mrb[0].mxu0
        %v949 = vadd.f32 %v612, %v948
        %950 = vmatprep.mubr.f32.mxu0 0.0
        %951 = vmatmul.mubr.f32.gmra.mrb[0].mxu0 %v680
        %v952 = vpop.f32.mrb[0].mxu0
        %v953 = vadd.f32 %v608, %v952
        %v954 = vpop.f32.mrb[0].mxu0
        %v955 = vadd.f32 %v612, %v954
        %956 = vmatprep.mubr.f32.mxu0 0.0
        %957 = vmatmul.mubr.f32.gmra.mrb[0].mxu0 %v683
        %v958 = vpop.f32.mrb[0].mxu0
        %v959 = vadd.f32 %v608, %v958
        %v960 = vpop.f32.mrb[0].mxu0
        %v961 = vadd.f32 %v612, %v960
        %962 = vmatprep.mubr.f32.mxu0 0.0
        %963 = vmatmul.mubr.f32.gmra.mrb[0].mxu0 %v686
        %v964 = vpop.f32.mrb[0].mxu0
        %v965 = vadd.f32 %v608, %v964
        %v966 = vpop.f32.mrb[0].mxu0
        %v967 = vadd.f32 %v612, %v966
        %968 = vmatprep.mubr.f32.mxu0 0.0
        %969 = vmatmul.mubr.f32.gmra.mrb[0].mxu0 %v689
        %v970 = vpop.f32.mrb[0].mxu0
        %v971 = vadd.f32 %v608, %v970
        %v972 = vpop.f32.mrb[0].mxu0
        %v973 = vadd.f32 %v612, %v972
        %974 = vmatprep.mubr.f32.mxu0 0.0
        %975 = vmatmul.mubr.f32.gmra.mrb[0].mxu0 %v692
        %v976 = vpop.f32.mrb[0].mxu0
        %v977 = vadd.f32 %v608, %v976
        %v978 = vpop.f32.mrb[0].mxu0
        %v979 = vadd.f32 %v612, %v978
        %980 = vmatprep.mubr.f32.mxu0 0.0
        %981 = vmatmul.mubr.f32.gmra.mrb[0].mxu0 %v695
        %v982 = vpop.f32.mrb[0].mxu0
        %v983 = vadd.f32 %v608, %v982
        %v984 = vpop.f32.mrb[0].mxu0
        %v985 = vadd.f32 %v612, %v984
        %986 = vmatprep.mubr.f32.mxu0 0.0
        %987 = vmatmul.mubr.f32.gmra.mrb[0].mxu0 %v698
        %v988 = vpop.f32.mrb[0].mxu0
        %v989 = vadd.f32 %v608, %v988
        %v990 = vpop.f32.mrb[0].mxu0
        %v991 = vadd.f32 %v612, %v990
        %992 = vmatprep.mubr.f32.mxu0 0.0
        %993 = vmatmul.mubr.f32.gmra.mrb[0].mxu0 %v701
        %v994 = vpop.f32.mrb[0].mxu0
        %v995 = vadd.f32 %v608, %v994
        %v996 = vpop.f32.mrb[0].mxu0
        %v997 = vadd.f32 %v612, %v996
        %998 = vmatprep.mubr.f32.mxu0 0.0
        %999 = vmatmul.mubr.f32.gmra.mrb[0].mxu0 %v704
        %v1000 = vpop.f32.mrb[0].mxu0
        %v1001 = vadd.f32 %v608, %v1000
        %v1002 = vpop.f32.mrb[0].mxu0
        %v1003 = vadd.f32 %v612, %v1002
        %1004 = vmatprep.mubr.f32.mxu0 0.0
        %1005 = vmatmul.mubr.f32.gmra.mrb[0].mxu0 %v707
        %v1006 = vpop.f32.mrb[0].mxu0
        %v1007 = vadd.f32 %v608, %v1006
        %v1008 = vpop.f32.mrb[0].mxu0
        %v1009 = vadd.f32 %v612, %v1008
        %1010 = vmatprep.mubr.f32.mxu0 0.0
        %1011 = vmatmul.mubr.f32.gmra.mrb[0].mxu0 %v710
        %v1012 = vpop.f32.mrb[0].mxu0
        %v1013 = vadd.f32 %v608, %v1012
        %v1014 = vpop.f32.mrb[0].mxu0
        %v1015 = vadd.f32 %v612, %v1014
        %1016 = vmatprep.mubr.f32.mxu0 0.0
        %1017 = vmatmul.mubr.f32.gmra.mrb[0].mxu0 %v713
        %v1018 = vpop.f32.mrb[0].mxu0
        %v1019 = vadd.f32 %v608, %v1018
        %v1020 = vpop.f32.mrb[0].mxu0
        %v1021 = vadd.f32 %v612, %v1020
        %1022 = vmatprep.mubr.f32.mxu0 0.0
        %1023 = vmatmul.mubr.f32.gmra.mrb[0].mxu0 %v716
        %v1024 = vpop.f32.mrb[0].mxu0
        %v1025 = vadd.f32 %v608, %v1024
        %v1026 = vpop.f32.mrb[0].mxu0
        %v1027 = vadd.f32 %v612, %v1026
        %1028 = vmatprep.mubr.f32.mxu0 0.0
        %1029 = vmatmul.mubr.f32.gmra.mrb[0].mxu0 %v719
        %v1030 = vpop.f32.mrb[0].mxu0
        %v1031 = vadd.f32 %v608, %v1030
        %v1032 = vpop.f32.mrb[0].mxu0
        %v1033 = vadd.f32 %v612, %v1032
        %1034 = vmatprep.mubr.f32.mxu0 0.0
        %1035 = vmatmul.mubr.f32.gmra.mrb[0].mxu0 %v722
        %v1036 = vpop.f32.mrb[0].mxu0
        %v1037 = vadd.f32 %v608, %v1036
        %v1038 = vpop.f32.mrb[0].mxu0
        %v1039 = vadd.f32 %v612, %v1038
        %1040 = vmatprep.mubr.f32.mxu0 0.0
        %1041 = vmatmul.mubr.f32.gmra.mrb[0].mxu0 %v725
        %v1042 = vpop.f32.mrb[0].mxu0
        %v1043 = vadd.f32 %v608, %v1042
        %v1044 = vpop.f32.mrb[0].mxu0
        %v1045 = vadd.f32 %v612, %v1044
        %1046 = vmatprep.mubr.f32.mxu0 0.0
        %1047 = vmatmul.mubr.f32.gmra.mrb[0].mxu0 %v728
        %v1048 = vpop.f32.mrb[0].mxu0
        %v1049 = vadd.f32 %v608, %v1048
        %v1050 = vpop.f32.mrb[0].mxu0
        %v1051 = vadd.f32 %v612, %v1050
        %1052 = vmatprep.mubr.f32.mxu0 0.0
        %1053 = vmatmul.mubr.f32.gmra.mrb[0].mxu0 %v731
        %v1054 = vpop.f32.mrb[0].mxu0
        %v1055 = vadd.f32 %v608, %v1054
        %v1056 = vpop.f32.mrb[0].mxu0
        %v1057 = vadd.f32 %v612, %v1056
        %1058 = vmatprep.mubr.f32.mxu0 0.0
        %1059 = vmatmul.mubr.f32.gmra.mrb[0].mxu0 %v734
        %v1060 = vpop.f32.mrb[0].mxu0
        %v1061 = vadd.f32 %v608, %v1060
        %v1062 = vpop.f32.mrb[0].mxu0
        %v1063 = vadd.f32 %v612, %v1062
        %1064 = vmatprep.mubr.f32.mxu0 0.0
        %1065 = vmatmul.mubr.f32.gmra.mrb[0].mxu0 %v737
        %v1066 = vpop.f32.mrb[0].mxu0
        %v1067 = vadd.f32 %v608, %v1066
        %v1068 = vpop.f32.mrb[0].mxu0
        %v1069 = vadd.f32 %v612, %v1068
        %1070 = vmatprep.mubr.f32.mxu0 0.0
        %1071 = vmatmul.mubr.f32.gmra.mrb[0].mxu0 %v740
        %v1072 = vpop.f32.mrb[0].mxu0
        %v1073 = vadd.f32 %v608, %v1072
        %v1074 = vpop.f32.mrb[0].mxu0
        %v1075 = vadd.f32 %v612, %v1074
        %1076 = vmatprep.mubr.f32.mxu0 0.0
        %1077 = vmatmul.mubr.f32.gmra.mrb[0].mxu0 %v743
        %v1078 = vpop.f32.mrb[0].mxu0
        %v1079 = vadd.f32 %v608, %v1078
        %v1080 = vpop.f32.mrb[0].mxu0
        %v1081 = vadd.f32 %v612, %v1080
        %1082 = vmatprep.mubr.f32.mxu0 0.0
        %1083 = vmatmul.mubr.f32.gmra.mrb[0].mxu0 %v746
        %v1084 = vpop.f32.mrb[0].mxu0
        %v1085 = vadd.f32 %v608, %v1084
        %v1086 = vpop.f32.mrb[0].mxu0
        %v1087 = vadd.f32 %v612, %v1086
        %1088 = vmatprep.mubr.f32.mxu0 0.0
        %1089 = vmatmul.mubr.f32.gmra.mrb[0].mxu0 %v749
        %v1090 = vpop.f32.mrb[0].mxu0
        %v1091 = vadd.f32 %v608, %v1090
        %v1092 = vpop.f32.mrb[0].mxu0
        %v1093 = vadd.f32 %v612, %v1092
        %1094 = vmatprep.mubr.f32.mxu0 0.0
        %1095 = vmatmul.mubr.f32.gmra.mrb[0].mxu0 %v752
        %v1096 = vpop.f32.mrb[0].mxu0
        %v1097 = vadd.f32 %v608, %v1096
        %v1098 = vpop.f32.mrb[0].mxu0
        %v1099 = vadd.f32 %v612, %v1098
        %1100 = vmatprep.mubr.f32.mxu0 0.0
        %1101 = vmatmul.mubr.f32.gmra.mrb[0].mxu0 %v755
        %v1102 = vpop.f32.mrb[0].mxu0
        %v1103 = vadd.f32 %v608, %v1102
        %v1104 = vpop.f32.mrb[0].mxu0
        %v1105 = vadd.f32 %v612, %v1104
        %1106 = vmatprep.mubr.f32.mxu0 0.0
        %1107 = vmatmul.mubr.f32.gmra.mrb[0].mxu0 %v758
        %v1108 = vpop.f32.mrb[0].mxu0
        %v1109 = vadd.f32 %v608, %v1108
        %v1110 = vpop.f32.mrb[0].mxu0
        %v1111 = vadd.f32 %v612, %v1110
        %1112 = vdwg.mxu0
        %v1113 = vmax.f32 %v827, 0.0
        %v1114 = vmax.f32 %v829, 0.0
        %v1115 = vmax.f32 %v833, 0.0
        %v1116 = vmax.f32 %v835, 0.0
        %v1117 = vmax.f32 %v839, 0.0
        %v1118 = vmax.f32 %v841, 0.0
        %v1119 = vmax.f32 %v845, 0.0
        %v1120 = vmax.f32 %v847, 0.0
        %v1121 = vmax.f32 %v851, 0.0
        %v1122 = vmax.f32 %v853, 0.0
        %v1123 = vmax.f32 %v857, 0.0
        %v1124 = vmax.f32 %v859, 0.0
        %v1125 = vmax.f32 %v863, 0.0
        %v1126 = vmax.f32 %v865, 0.0
        %v1127 = vmax.f32 %v869, 0.0
        %v1128 = vmax.f32 %v871, 0.0
        %v1129 = vmax.f32 %v875, 0.0
        %v1130 = vmax.f32 %v877, 0.0
        %v1131 = vmax.f32 %v881, 0.0
        %v1132 = vmax.f32 %v883, 0.0
        %v1133 = vmax.f32 %v887, 0.0
        %v1134 = vmax.f32 %v889, 0.0
        %v1135 = vmax.f32 %v893, 0.0
        %v1136 = vmax.f32 %v895, 0.0
        %v1137 = vmax.f32 %v899, 0.0
        %v1138 = vmax.f32 %v901, 0.0
        %v1139 = vmax.f32 %v905, 0.0
        %v1140 = vmax.f32 %v907, 0.0
        %v1141 = vmax.f32 %v911, 0.0
        %v1142 = vmax.f32 %v913, 0.0
        %v1143 = vmax.f32 %v917, 0.0
        %v1144 = vmax.f32 %v919, 0.0
        %v1145 = vmax.f32 %v923, 0.0
        %v1146 = vmax.f32 %v925, 0.0
        %v1147 = vmax.f32 %v929, 0.0
        %v1148 = vmax.f32 %v931, 0.0
        %v1149 = vmax.f32 %v935, 0.0
        %v1150 = vmax.f32 %v937, 0.0
        %v1151 = vmax.f32 %v941, 0.0
        %v1152 = vmax.f32 %v943, 0.0
        %v1153 = vmax.f32 %v947, 0.0
        %v1154 = vmax.f32 %v949, 0.0
        %v1155 = vmax.f32 %v953, 0.0
        %v1156 = vmax.f32 %v955, 0.0
        %v1157 = vmax.f32 %v959, 0.0
        %v1158 = vmax.f32 %v961, 0.0
        %v1159 = vmax.f32 %v965, 0.0
        %v1160 = vmax.f32 %v967, 0.0
        %v1161 = vmax.f32 %v971, 0.0
        %v1162 = vmax.f32 %v973, 0.0
        %v1163 = vmax.f32 %v977, 0.0
        %v1164 = vmax.f32 %v979, 0.0
        %v1165 = vmax.f32 %v983, 0.0
        %v1166 = vmax.f32 %v985, 0.0
        %v1167 = vmax.f32 %v989, 0.0
        %v1168 = vmax.f32 %v991, 0.0
        %v1169 = vmax.f32 %v995, 0.0
        %v1170 = vmax.f32 %v997, 0.0
        %v1171 = vmax.f32 %v1001, 0.0
        %v1172 = vmax.f32 %v1003, 0.0
        %v1173 = vmax.f32 %v1007, 0.0
        %v1174 = vmax.f32 %v1009, 0.0
        %v1175 = vmax.f32 %v1013, 0.0
        %v1176 = vmax.f32 %v1015, 0.0
        %v1177 = vmax.f32 %v1019, 0.0
        %v1178 = vmax.f32 %v1021, 0.0
        %v1179 = vmax.f32 %v1025, 0.0
        %v1180 = vmax.f32 %v1027, 0.0
        %v1181 = vmax.f32 %v1031, 0.0
        %v1182 = vmax.f32 %v1033, 0.0
        %v1183 = vmax.f32 %v1037, 0.0
        %v1184 = vmax.f32 %v1039, 0.0
        %v1185 = vmax.f32 %v1043, 0.0
        %v1186 = vmax.f32 %v1045, 0.0
        %v1187 = vmax.f32 %v1049, 0.0
        %v1188 = vmax.f32 %v1051, 0.0
        %v1189 = vmax.f32 %v1055, 0.0
        %v1190 = vmax.f32 %v1057, 0.0
        %v1191 = vmax.f32 %v1061, 0.0
        %v1192 = vmax.f32 %v1063, 0.0
        %v1193 = vmax.f32 %v1067, 0.0
        %v1194 = vmax.f32 %v1069, 0.0
        %v1195 = vmax.f32 %v1073, 0.0
        %v1196 = vmax.f32 %v1075, 0.0
        %v1197 = vmax.f32 %v1079, 0.0
        %v1198 = vmax.f32 %v1081, 0.0
        %v1199 = vmax.f32 %v1085, 0.0
        %v1200 = vmax.f32 %v1087, 0.0
        %v1201 = vmax.f32 %v1091, 0.0
        %v1202 = vmax.f32 %v1093, 0.0
        %v1203 = vmax.f32 %v1097, 0.0
        %v1204 = vmax.f32 %v1099, 0.0
        %v1205 = vmax.f32 %v1103, 0.0
        %v1206 = vmax.f32 %v1105, 0.0
        %v1207 = vmax.f32 %v1109, 0.0
        %v1208 = vmax.f32 %v1111, 0.0
        %s1209 = scalar_lea.vmem [#allocation2], 128
        %1210 = vst [vmem:[%s1209] sm:$0xff] %v1113
        %1211 = vst [vmem:[%s1209 + $0x8] sm:$0xff] %v1114
        %1212 = vst [vmem:[%s1209 + $0x10] sm:$0xff] %v1115
        %1213 = vst [vmem:[%s1209 + $0x18] sm:$0xff] %v1116
        %1214 = vst [vmem:[%s1209 + $0x20] sm:$0xff] %v1117
        %1215 = vst [vmem:[%s1209 + $0x28] sm:$0xff] %v1118
        %1216 = vst [vmem:[%s1209 + $0x30] sm:$0xff] %v1119
        %1217 = vst [vmem:[%s1209 + $0x38] sm:$0xff] %v1120
        %1218 = vst [vmem:[%s1209 + $0x40] sm:$0xff] %v1121
        %1219 = vst [vmem:[%s1209 + $0x48] sm:$0xff] %v1122
        %1220 = vst [vmem:[%s1209 + $0x50] sm:$0xff] %v1123
        %1221 = vst [vmem:[%s1209 + $0x58] sm:$0xff] %v1124
        %1222 = vst [vmem:[%s1209 + $0x60] sm:$0xff] %v1125
        %1223 = vst [vmem:[%s1209 + $0x68] sm:$0xff] %v1126
        %1224 = vst [vmem:[%s1209 + $0x70] sm:$0xff] %v1127
        %1225 = vst [vmem:[%s1209 + $0x78] sm:$0xff] %v1128
        %1226 = vst [vmem:[%s1209 + $0x80] sm:$0xff] %v1129
        %1227 = vst [vmem:[%s1209 + $0x88] sm:$0xff] %v1130
        %1228 = vst [vmem:[%s1209 + $0x90] sm:$0xff] %v1131
        %1229 = vst [vmem:[%s1209 + $0x98] sm:$0xff] %v1132
        %1230 = vst [vmem:[%s1209 + $0xa0] sm:$0xff] %v1133
        %1231 = vst [vmem:[%s1209 + $0xa8] sm:$0xff] %v1134
        %1232 = vst [vmem:[%s1209 + $0xb0] sm:$0xff] %v1135
        %1233 = vst [vmem:[%s1209 + $0xb8] sm:$0xff] %v1136
        %1234 = vst [vmem:[%s1209 + $0xc0] sm:$0xff] %v1137
        %1235 = vst [vmem:[%s1209 + $0xc8] sm:$0xff] %v1138
        %1236 = vst [vmem:[%s1209 + $0xd0] sm:$0xff] %v1139
        %1237 = vst [vmem:[%s1209 + $0xd8] sm:$0xff] %v1140
        %1238 = vst [vmem:[%s1209 + $0xe0] sm:$0xff] %v1141
        %1239 = vst [vmem:[%s1209 + $0xe8] sm:$0xff] %v1142
        %1240 = vst [vmem:[%s1209 + $0xf0] sm:$0xff] %v1143
        %1241 = vst [vmem:[%s1209 + $0xf8] sm:$0xff] %v1144
        %1242 = vst [vmem:[%s1209 + $0x100] sm:$0xff] %v1145
        %1243 = vst [vmem:[%s1209 + $0x108] sm:$0xff] %v1146
        %1244 = vst [vmem:[%s1209 + $0x110] sm:$0xff] %v1147
        %1245 = vst [vmem:[%s1209 + $0x118] sm:$0xff] %v1148
        %1246 = vst [vmem:[%s1209 + $0x120] sm:$0xff] %v1149
        %1247 = vst [vmem:[%s1209 + $0x128] sm:$0xff] %v1150
        %1248 = vst [vmem:[%s1209 + $0x130] sm:$0xff] %v1151
        %1249 = vst [vmem:[%s1209 + $0x138] sm:$0xff] %v1152
        %1250 = vst [vmem:[%s1209 + $0x140] sm:$0xff] %v1153
        %1251 = vst [vmem:[%s1209 + $0x148] sm:$0xff] %v1154
        %1252 = vst [vmem:[%s1209 + $0x150] sm:$0xff] %v1155
        %1253 = vst [vmem:[%s1209 + $0x158] sm:$0xff] %v1156
        %1254 = vst [vmem:[%s1209 + $0x160] sm:$0xff] %v1157
        %1255 = vst [vmem:[%s1209 + $0x168] sm:$0xff] %v1158
        %1256 = vst [vmem:[%s1209 + $0x170] sm:$0xff] %v1159
        %1257 = vst [vmem:[%s1209 + $0x178] sm:$0xff] %v1160
        %1258 = vst [vmem:[%s1209 + $0x180] sm:$0xff] %v1161
        %1259 = vst [vmem:[%s1209 + $0x188] sm:$0xff] %v1162
        %1260 = vst [vmem:[%s1209 + $0x190] sm:$0xff] %v1163
        %1261 = vst [vmem:[%s1209 + $0x198] sm:$0xff] %v1164
        %1262 = vst [vmem:[%s1209 + $0x1a0] sm:$0xff] %v1165
        %1263 = vst [vmem:[%s1209 + $0x1a8] sm:$0xff] %v1166
        %1264 = vst [vmem:[%s1209 + $0x1b0] sm:$0xff] %v1167
        %1265 = vst [vmem:[%s1209 + $0x1b8] sm:$0xff] %v1168
        %1266 = vst [vmem:[%s1209 + $0x1c0] sm:$0xff] %v1169
        %1267 = vst [vmem:[%s1209 + $0x1c8] sm:$0xff] %v1170
        %1268 = vst [vmem:[%s1209 + $0x1d0] sm:$0xff] %v1171
        %1269 = vst [vmem:[%s1209 + $0x1d8] sm:$0xff] %v1172
        %1270 = vst [vmem:[%s1209 + $0x1e0] sm:$0xff] %v1173
        %1271 = vst [vmem:[%s1209 + $0x1e8] sm:$0xff] %v1174
        %1272 = vst [vmem:[%s1209 + $0x1f0] sm:$0xff] %v1175
        %1273 = vst [vmem:[%s1209 + $0x1f8] sm:$0xff] %v1176
        %1274 = vst [vmem:[%s1209 + $0x200] sm:$0xff] %v1177
        %1275 = vst [vmem:[%s1209 + $0x208] sm:$0xff] %v1178
        %1276 = vst [vmem:[%s1209 + $0x210] sm:$0xff] %v1179
        %1277 = vst [vmem:[%s1209 + $0x218] sm:$0xff] %v1180
        %1278 = vst [vmem:[%s1209 + $0x220] sm:$0xff] %v1181
        %1279 = vst [vmem:[%s1209 + $0x228] sm:$0xff] %v1182
        %1280 = vst [vmem:[%s1209 + $0x230] sm:$0xff] %v1183
        %1281 = vst [vmem:[%s1209 + $0x238] sm:$0xff] %v1184
        %1282 = vst [vmem:[%s1209 + $0x240] sm:$0xff] %v1185
        %1283 = vst [vmem:[%s1209 + $0x248] sm:$0xff] %v1186
        %1284 = vst [vmem:[%s1209 + $0x250] sm:$0xff] %v1187
        %1285 = vst [vmem:[%s1209 + $0x258] sm:$0xff] %v1188
        %1286 = vst [vmem:[%s1209 + $0x260] sm:$0xff] %v1189
        %1287 = vst [vmem:[%s1209 + $0x268] sm:$0xff] %v1190
        %1288 = vst [vmem:[%s1209 + $0x270] sm:$0xff] %v1191
        %1289 = vst [vmem:[%s1209 + $0x278] sm:$0xff] %v1192
        %1290 = vst [vmem:[%s1209 + $0x280] sm:$0xff] %v1193
        %1291 = vst [vmem:[%s1209 + $0x288] sm:$0xff] %v1194
        %1292 = vst [vmem:[%s1209 + $0x290] sm:$0xff] %v1195
        %1293 = vst [vmem:[%s1209 + $0x298] sm:$0xff] %v1196
        %1294 = vst [vmem:[%s1209 + $0x2a0] sm:$0xff] %v1197
        %1295 = vst [vmem:[%s1209 + $0x2a8] sm:$0xff] %v1198
        %1296 = vst [vmem:[%s1209 + $0x2b0] sm:$0xff] %v1199
        %1297 = vst [vmem:[%s1209 + $0x2b8] sm:$0xff] %v1200
        %1298 = vst [vmem:[%s1209 + $0x2c0] sm:$0xff] %v1201
        %1299 = vst [vmem:[%s1209 + $0x2c8] sm:$0xff] %v1202
        %1300 = vst [vmem:[%s1209 + $0x2d0] sm:$0xff] %v1203
        %1301 = vst [vmem:[%s1209 + $0x2d8] sm:$0xff] %v1204
        %1302 = vst [vmem:[%s1209 + $0x2e0] sm:$0xff] %v1205
        %1303 = vst [vmem:[%s1209 + $0x2e8] sm:$0xff] %v1206
        %1304 = vst [vmem:[%s1209 + $0x2f0] sm:$0xff] %v1207
        %1305 = vst [vmem:[%s1209 + $0x2f8] sm:$0xff] %v1208
        %v1306 = vld [vmem:[%s4] sm:$0x3]
        %v1307 = vld [vmem:[#allocation2] sm:$0xff]
        %v1308 = vld [vmem:[#allocation2 + $0x8] sm:$0xff]
        %v1309 = vld [vmem:[#allocation2 + $0x10] sm:$0xff]
        %v1310 = vld [vmem:[#allocation2 + $0x18] sm:$0xff]
        %v1311 = vld [vmem:[#allocation2 + $0x20] sm:$0xff]
        %v1312 = vld [vmem:[#allocation2 + $0x28] sm:$0xff]
        %v1313 = vld [vmem:[#allocation2 + $0x30] sm:$0xff]
        %v1314 = vld [vmem:[#allocation2 + $0x38] sm:$0xff]
        %v1315 = vld [vmem:[#allocation2 + $0x40] sm:$0xff]
        %v1316 = vld [vmem:[#allocation2 + $0x48] sm:$0xff]
        %v1317 = vld [vmem:[#allocation2 + $0x50] sm:$0xff]
        %v1318 = vld [vmem:[#allocation2 + $0x58] sm:$0xff]
        %v1319 = vld [vmem:[#allocation2 + $0x60] sm:$0xff]
        %v1320 = vld [vmem:[#allocation2 + $0x68] sm:$0xff]
        %v1321 = vld [vmem:[#allocation2 + $0x70] sm:$0xff]
        %v1322 = vld [vmem:[#allocation2 + $0x78] sm:$0xff]
        %v1323 = vld [vmem:[#allocation2 + $0x80] sm:$0xff]
        %v1324 = vld [vmem:[#allocation2 + $0x88] sm:$0xff]
        %v1325 = vld [vmem:[#allocation2 + $0x90] sm:$0xff]
        %v1326 = vld [vmem:[#allocation2 + $0x98] sm:$0xff]
        %v1327 = vld [vmem:[#allocation2 + $0xa0] sm:$0xff]
        %v1328 = vld [vmem:[#allocation2 + $0xa8] sm:$0xff]
        %v1329 = vld [vmem:[#allocation2 + $0xb0] sm:$0xff]
        %v1330 = vld [vmem:[#allocation2 + $0xb8] sm:$0xff]
        %v1331 = vld [vmem:[#allocation2 + $0xc0] sm:$0xff]
        %v1332 = vld [vmem:[#allocation2 + $0xc8] sm:$0xff]
        %v1333 = vld [vmem:[#allocation2 + $0xd0] sm:$0xff]
        %v1334 = vld [vmem:[#allocation2 + $0xd8] sm:$0xff]
        %v1335 = vld [vmem:[#allocation2 + $0xe0] sm:$0xff]
        %v1336 = vld [vmem:[#allocation2 + $0xe8] sm:$0xff]
        %v1337 = vld [vmem:[#allocation2 + $0xf0] sm:$0xff]
        %v1338 = vld [vmem:[#allocation2 + $0xf8] sm:$0xff]
        %v1339 = vld [vmem:[#allocation2 + $0x100] sm:$0xff]
        %v1340 = vld [vmem:[#allocation2 + $0x108] sm:$0xff]
        %v1341 = vld [vmem:[#allocation2 + $0x110] sm:$0xff]
        %v1342 = vld [vmem:[#allocation2 + $0x118] sm:$0xff]
        %v1343 = vld [vmem:[#allocation2 + $0x120] sm:$0xff]
        %v1344 = vld [vmem:[#allocation2 + $0x128] sm:$0xff]
        %v1345 = vld [vmem:[#allocation2 + $0x130] sm:$0xff]
        %v1346 = vld [vmem:[#allocation2 + $0x138] sm:$0xff]
        %v1347 = vld [vmem:[#allocation2 + $0x140] sm:$0xff]
        %v1348 = vld [vmem:[#allocation2 + $0x148] sm:$0xff]
        %v1349 = vld [vmem:[#allocation2 + $0x150] sm:$0xff]
        %v1350 = vld [vmem:[#allocation2 + $0x158] sm:$0xff]
        %v1351 = vld [vmem:[#allocation2 + $0x160] sm:$0xff]
        %v1352 = vld [vmem:[#allocation2 + $0x168] sm:$0xff]
        %v1353 = vld [vmem:[#allocation2 + $0x170] sm:$0xff]
        %v1354 = vld [vmem:[#allocation2 + $0x178] sm:$0xff]
        %v1355 = vld [vmem:[#allocation2 + $0x180] sm:$0xff]
        %v1356 = vld [vmem:[#allocation2 + $0x188] sm:$0xff]
        %v1357 = vld [vmem:[#allocation2 + $0x190] sm:$0xff]
        %v1358 = vld [vmem:[#allocation2 + $0x198] sm:$0xff]
        %v1359 = vld [vmem:[#allocation2 + $0x1a0] sm:$0xff]
        %v1360 = vld [vmem:[#allocation2 + $0x1a8] sm:$0xff]
        %v1361 = vld [vmem:[#allocation2 + $0x1b0] sm:$0xff]
        %v1362 = vld [vmem:[#allocation2 + $0x1b8] sm:$0xff]
        %v1363 = vld [vmem:[#allocation2 + $0x1c0] sm:$0xff]
        %v1364 = vld [vmem:[#allocation2 + $0x1c8] sm:$0xff]
        %v1365 = vld [vmem:[#allocation2 + $0x1d0] sm:$0xff]
        %v1366 = vld [vmem:[#allocation2 + $0x1d8] sm:$0xff]
        %v1367 = vld [vmem:[#allocation2 + $0x1e0] sm:$0xff]
        %v1368 = vld [vmem:[#allocation2 + $0x1e8] sm:$0xff]
        %v1369 = vld [vmem:[#allocation2 + $0x1f0] sm:$0xff]
        %v1370 = vld [vmem:[#allocation2 + $0x1f8] sm:$0xff]
        %v1371 = vld [vmem:[#allocation2 + $0x200] sm:$0xff]
        %v1372 = vld [vmem:[#allocation2 + $0x208] sm:$0xff]
        %v1373 = vld [vmem:[#allocation2 + $0x210] sm:$0xff]
        %v1374 = vld [vmem:[#allocation2 + $0x218] sm:$0xff]
        %v1375 = vld [vmem:[#allocation2 + $0x220] sm:$0xff]
        %v1376 = vld [vmem:[#allocation2 + $0x228] sm:$0xff]
        %v1377 = vld [vmem:[#allocation2 + $0x230] sm:$0xff]
        %v1378 = vld [vmem:[#allocation2 + $0x238] sm:$0xff]
        %v1379 = vld [vmem:[#allocation2 + $0x240] sm:$0xff]
        %v1380 = vld [vmem:[#allocation2 + $0x248] sm:$0xff]
        %v1381 = vld [vmem:[#allocation2 + $0x250] sm:$0xff]
        %v1382 = vld [vmem:[#allocation2 + $0x258] sm:$0xff]
        %v1383 = vld [vmem:[#allocation2 + $0x260] sm:$0xff]
        %v1384 = vld [vmem:[#allocation2 + $0x268] sm:$0xff]
        %v1385 = vld [vmem:[#allocation2 + $0x270] sm:$0xff]
        %v1386 = vld [vmem:[#allocation2 + $0x278] sm:$0xff]
        %v1387 = vld [vmem:[#allocation2 + $0x280] sm:$0xff]
        %v1388 = vld [vmem:[#allocation2 + $0x288] sm:$0xff]
        %v1389 = vld [vmem:[#allocation2 + $0x290] sm:$0xff]
        %v1390 = vld [vmem:[#allocation2 + $0x298] sm:$0xff]
        %v1391 = vld [vmem:[#allocation2 + $0x2a0] sm:$0xff]
        %v1392 = vld [vmem:[#allocation2 + $0x2a8] sm:$0xff]
        %v1393 = vld [vmem:[#allocation2 + $0x2b0] sm:$0xff]
        %v1394 = vld [vmem:[#allocation2 + $0x2b8] sm:$0xff]
        %v1395 = vld [vmem:[#allocation2 + $0x2c0] sm:$0xff]
        %v1396 = vld [vmem:[#allocation2 + $0x2c8] sm:$0xff]
        %v1397 = vld [vmem:[#allocation2 + $0x2d0] sm:$0xff]
        %v1398 = vld [vmem:[#allocation2 + $0x2d8] sm:$0xff]
        %v1399 = vld [vmem:[#allocation2 + $0x2e0] sm:$0xff]
        %v1400 = vld [vmem:[#allocation2 + $0x2e8] sm:$0xff]
        %v1401 = vld [vmem:[#allocation2 + $0x2f0] sm:$0xff]
        %v1402 = vld [vmem:[#allocation2 + $0x2f8] sm:$0xff]
        %v1403 = vld [vmem:[%s3] sm:$0xff]
        %v1404 = vld [vmem:[%s3 + $0x8] sm:$0xff]
        %v1405 = vld [vmem:[%s3 + $0x10] sm:$0xff]
        %v1406 = vld [vmem:[%s3 + $0x18] sm:$0xff]
        %v1407 = vld [vmem:[%s3 + $0x20] sm:$0xff]
        %v1408 = vld [vmem:[%s3 + $0x28] sm:$0xff]
        %v1409 = vld [vmem:[%s3 + $0x30] sm:$0xff]
        %v1410 = vld [vmem:[%s3 + $0x38] sm:$0xff]
        %v1411 = vld [vmem:[%s3 + $0x40] sm:$0xff]
        %v1412 = vld [vmem:[%s3 + $0x48] sm:$0xff]
        %v1413 = vld [vmem:[%s3 + $0x50] sm:$0xff]
        %v1414 = vld [vmem:[%s3 + $0x58] sm:$0xff]
        %v1415 = vld [vmem:[%s3 + $0x60] sm:$0xff]
        %v1416 = vld [vmem:[%s3 + $0x68] sm:$0xff]
        %v1417 = vld [vmem:[%s3 + $0x70] sm:$0xff]
        %v1418 = vld [vmem:[%s3 + $0x78] sm:$0xff]
        %v1419 = vld [vmem:[%s3 + $0x80] sm:$0xff]
        %v1420 = vld [vmem:[%s3 + $0x88] sm:$0xff]
        %v1421 = vld [vmem:[%s3 + $0x90] sm:$0xff]
        %v1422 = vld [vmem:[%s3 + $0x98] sm:$0xff]
        %v1423 = vld [vmem:[%s3 + $0xa0] sm:$0xff]
        %v1424 = vld [vmem:[%s3 + $0xa8] sm:$0xff]
        %v1425 = vld [vmem:[%s3 + $0xb0] sm:$0xff]
        %v1426 = vld [vmem:[%s3 + $0xb8] sm:$0xff]
        %v1427 = vld [vmem:[%s3 + $0xc0] sm:$0xff]
        %v1428 = vld [vmem:[%s3 + $0xc8] sm:$0xff]
        %v1429 = vld [vmem:[%s3 + $0xd0] sm:$0xff]
        %v1430 = vld [vmem:[%s3 + $0xd8] sm:$0xff]
        %v1431 = vld [vmem:[%s3 + $0xe0] sm:$0xff]
        %v1432 = vld [vmem:[%s3 + $0xe8] sm:$0xff]
        %v1433 = vld [vmem:[%s3 + $0xf0] sm:$0xff]
        %v1434 = vld [vmem:[%s3 + $0xf8] sm:$0xff]
        %v1435 = vld [vmem:[%s3 + $0x100] sm:$0xff]
        %v1436 = vld [vmem:[%s3 + $0x108] sm:$0xff]
        %v1437 = vld [vmem:[%s3 + $0x110] sm:$0xff]
        %v1438 = vld [vmem:[%s3 + $0x118] sm:$0xff]
        %v1439 = vld [vmem:[%s3 + $0x120] sm:$0xff]
        %v1440 = vld [vmem:[%s3 + $0x128] sm:$0xff]
        %v1441 = vld [vmem:[%s3 + $0x130] sm:$0xff]
        %v1442 = vld [vmem:[%s3 + $0x138] sm:$0xff]
        %v1443 = vld [vmem:[%s3 + $0x140] sm:$0xff]
        %v1444 = vld [vmem:[%s3 + $0x148] sm:$0xff]
        %v1445 = vld [vmem:[%s3 + $0x150] sm:$0xff]
        %v1446 = vld [vmem:[%s3 + $0x158] sm:$0xff]
        %v1447 = vld [vmem:[%s3 + $0x160] sm:$0xff]
        %v1448 = vld [vmem:[%s3 + $0x168] sm:$0xff]
        %v1449 = vld [vmem:[%s3 + $0x170] sm:$0xff]
        %v1450 = vld [vmem:[%s3 + $0x178] sm:$0xff]
        %v1451 = vld [vmem:[%s3 + $0x180] sm:$0xff]
        %v1452 = vld [vmem:[%s3 + $0x188] sm:$0xff]
        %v1453 = vld [vmem:[%s3 + $0x190] sm:$0xff]
        %v1454 = vld [vmem:[%s3 + $0x198] sm:$0xff]
        %v1455 = vld [vmem:[%s3 + $0x1a0] sm:$0xff]
        %v1456 = vld [vmem:[%s3 + $0x1a8] sm:$0xff]
        %v1457 = vld [vmem:[%s3 + $0x1b0] sm:$0xff]
        %v1458 = vld [vmem:[%s3 + $0x1b8] sm:$0xff]
        %v1459 = vld [vmem:[%s3 + $0x1c0] sm:$0xff]
        %v1460 = vld [vmem:[%s3 + $0x1c8] sm:$0xff]
        %v1461 = vld [vmem:[%s3 + $0x1d0] sm:$0xff]
        %v1462 = vld [vmem:[%s3 + $0x1d8] sm:$0xff]
        %v1463 = vld [vmem:[%s3 + $0x1e0] sm:$0xff]
        %v1464 = vld [vmem:[%s3 + $0x1e8] sm:$0xff]
        %v1465 = vld [vmem:[%s3 + $0x1f0] sm:$0xff]
        %v1466 = vld [vmem:[%s3 + $0x1f8] sm:$0xff]
        %1467 = vmatprep.subr.mxu0 %v1404
        %1468 = vmatpush1.msra.mxu0 %v1403
        %1469 = vmatprep.subr.mxu0 %v1406
        %1470 = vmatpush1.msra.mxu0 %v1405
        %1471 = vmatprep.subr.mxu0 %v1408
        %1472 = vmatpush1.msra.mxu0 %v1407
        %1473 = vmatprep.subr.mxu0 %v1410
        %1474 = vmatpush1.msra.mxu0 %v1409
        %1475 = vmatprep.subr.mxu0 %v1412
        %1476 = vmatpush1.msra.mxu0 %v1411
        %1477 = vmatprep.subr.mxu0 %v1414
        %1478 = vmatpush1.msra.mxu0 %v1413
        %1479 = vmatprep.subr.mxu0 %v1416
        %1480 = vmatpush1.msra.mxu0 %v1415
        %1481 = vmatprep.subr.mxu0 %v1418
        %1482 = vmatpush1.msra.mxu0 %v1417
        %1483 = vmatprep.subr.mxu0 %v1420
        %1484 = vmatpush1.msra.mxu0 %v1419
        %1485 = vmatprep.subr.mxu0 %v1422
        %1486 = vmatpush1.msra.mxu0 %v1421
        %1487 = vmatprep.subr.mxu0 %v1424
        %1488 = vmatpush1.msra.mxu0 %v1423
        %1489 = vmatprep.subr.mxu0 %v1426
        %1490 = vmatpush1.msra.mxu0 %v1425
        %1491 = vmatprep.subr.mxu0 %v1428
        %1492 = vmatpush1.msra.mxu0 %v1427
        %1493 = vmatprep.subr.mxu0 %v1430
        %1494 = vmatpush1.msra.mxu0 %v1429
        %1495 = vmatprep.subr.mxu0 %v1432
        %1496 = vmatpush1.msra.mxu0 %v1431
        %1497 = vmatprep.subr.mxu0 %v1434
        %1498 = vmatpush1.msra.mxu0 %v1433
        %1499 = vmatprep.subr.mxu0 %v1436
        %1500 = vmatpush1.msra.mxu0 %v1435
        %1501 = vmatprep.subr.mxu0 %v1438
        %1502 = vmatpush1.msra.mxu0 %v1437
        %1503 = vmatprep.subr.mxu0 %v1440
        %1504 = vmatpush1.msra.mxu0 %v1439
        %1505 = vmatprep.subr.mxu0 %v1442
        %1506 = vmatpush1.msra.mxu0 %v1441
        %1507 = vmatprep.subr.mxu0 %v1444
        %1508 = vmatpush1.msra.mxu0 %v1443
        %1509 = vmatprep.subr.mxu0 %v1446
        %1510 = vmatpush1.msra.mxu0 %v1445
        %1511 = vmatprep.subr.mxu0 %v1448
        %1512 = vmatpush1.msra.mxu0 %v1447
        %1513 = vmatprep.subr.mxu0 %v1450
        %1514 = vmatpush1.msra.mxu0 %v1449
        %1515 = vmatprep.subr.mxu0 %v1452
        %1516 = vmatpush1.msra.mxu0 %v1451
        %1517 = vmatprep.subr.mxu0 %v1454
        %1518 = vmatpush1.msra.mxu0 %v1453
        %1519 = vmatprep.subr.mxu0 %v1456
        %1520 = vmatpush1.msra.mxu0 %v1455
        %1521 = vmatprep.subr.mxu0 %v1458
        %1522 = vmatpush1.msra.mxu0 %v1457
        %1523 = vmatprep.subr.mxu0 %v1460
        %1524 = vmatpush1.msra.mxu0 %v1459
        %1525 = vmatprep.subr.mxu0 %v1462
        %1526 = vmatpush1.msra.mxu0 %v1461
        %1527 = vmatprep.subr.mxu0 %v1464
        %1528 = vmatpush1.msra.mxu0 %v1463
        %1529 = vmatprep.subr.mxu0 %v1466
        %1530 = vmatpush1.msra.mxu0 %v1465
        %1531 = vmatprep.mubr.f32.mxu0 %v1308
        %1532 = vmatmul.mubr.f32.gmra.mrb[0].mxu0 %v1307
        %v1533 = vpop.f32.mrb[0].mxu0
        %v1534 = vadd.f32 0.0, %v1533
        %v1535 = vpop.f32.mrb[0].mxu0
        %v1536 = vadd.f32 0.0, %v1535
        %1537 = vmatprep.mubr.f32.mxu0 %v1310
        %1538 = vmatmul.mubr.f32.gmra.mrb[0].mxu0 %v1309
        %v1539 = vpop.f32.mrb[0].mxu0
        %v1540 = vadd.f32 0.0, %v1539
        %v1541 = vpop.f32.mrb[0].mxu0
        %v1542 = vadd.f32 0.0, %v1541
        %1543 = vmatprep.mubr.f32.mxu0 %v1312
        %1544 = vmatmul.mubr.f32.gmra.mrb[0].mxu0 %v1311
        %v1545 = vpop.f32.mrb[0].mxu0
        %v1546 = vadd.f32 0.0, %v1545
        %v1547 = vpop.f32.mrb[0].mxu0
        %v1548 = vadd.f32 0.0, %v1547
        %1549 = vmatprep.mubr.f32.mxu0 %v1314
        %1550 = vmatmul.mubr.f32.gmra.mrb[0].mxu0 %v1313
        %v1551 = vpop.f32.mrb[0].mxu0
        %v1552 = vadd.f32 0.0, %v1551
        %v1553 = vpop.f32.mrb[0].mxu0
        %v1554 = vadd.f32 0.0, %v1553
        %1555 = vmatprep.mubr.f32.mxu0 %v1316
        %1556 = vmatmul.mubr.f32.gmra.mrb[0].mxu0 %v1315
        %v1557 = vpop.f32.mrb[0].mxu0
        %v1558 = vadd.f32 0.0, %v1557
        %v1559 = vpop.f32.mrb[0].mxu0
        %v1560 = vadd.f32 0.0, %v1559
        %1561 = vmatprep.mubr.f32.mxu0 %v1318
        %1562 = vmatmul.mubr.f32.gmra.mrb[0].mxu0 %v1317
        %v1563 = vpop.f32.mrb[0].mxu0
        %v1564 = vadd.f32 0.0, %v1563
        %v1565 = vpop.f32.mrb[0].mxu0
        %v1566 = vadd.f32 0.0, %v1565
        %1567 = vmatprep.mubr.f32.mxu0 %v1320
        %1568 = vmatmul.mubr.f32.gmra.mrb[0].mxu0 %v1319
        %v1569 = vpop.f32.mrb[0].mxu0
        %v1570 = vadd.f32 0.0, %v1569
        %v1571 = vpop.f32.mrb[0].mxu0
        %v1572 = vadd.f32 0.0, %v1571
        %1573 = vmatprep.mubr.f32.mxu0 %v1322
        %1574 = vmatmul.mubr.f32.gmra.mrb[0].mxu0 %v1321
        %v1575 = vpop.f32.mrb[0].mxu0
        %v1576 = vadd.f32 0.0, %v1575
        %v1577 = vpop.f32.mrb[0].mxu0
        %v1578 = vadd.f32 0.0, %v1577
        %1579 = vmatprep.mubr.f32.mxu0 %v1324
        %1580 = vmatmul.mubr.f32.gmra.mrb[0].mxu0 %v1323
        %v1581 = vpop.f32.mrb[0].mxu0
        %v1582 = vadd.f32 0.0, %v1581
        %v1583 = vpop.f32.mrb[0].mxu0
        %v1584 = vadd.f32 0.0, %v1583
        %1585 = vmatprep.mubr.f32.mxu0 %v1326
        %1586 = vmatmul.mubr.f32.gmra.mrb[0].mxu0 %v1325
        %v1587 = vpop.f32.mrb[0].mxu0
        %v1588 = vadd.f32 0.0, %v1587
        %v1589 = vpop.f32.mrb[0].mxu0
        %v1590 = vadd.f32 0.0, %v1589
        %1591 = vmatprep.mubr.f32.mxu0 %v1328
        %1592 = vmatmul.mubr.f32.gmra.mrb[0].mxu0 %v1327
        %v1593 = vpop.f32.mrb[0].mxu0
        %v1594 = vadd.f32 0.0, %v1593
        %v1595 = vpop.f32.mrb[0].mxu0
        %v1596 = vadd.f32 0.0, %v1595
        %1597 = vmatprep.mubr.f32.mxu0 %v1330
        %1598 = vmatmul.mubr.f32.gmra.mrb[0].mxu0 %v1329
        %v1599 = vpop.f32.mrb[0].mxu0
        %v1600 = vadd.f32 0.0, %v1599
        %v1601 = vpop.f32.mrb[0].mxu0
        %v1602 = vadd.f32 0.0, %v1601
        %1603 = vmatprep.mubr.f32.mxu0 %v1332
        %1604 = vmatmul.mubr.f32.gmra.mrb[0].mxu0 %v1331
        %v1605 = vpop.f32.mrb[0].mxu0
        %v1606 = vadd.f32 0.0, %v1605
        %v1607 = vpop.f32.mrb[0].mxu0
        %v1608 = vadd.f32 0.0, %v1607
        %1609 = vmatprep.mubr.f32.mxu0 %v1334
        %1610 = vmatmul.mubr.f32.gmra.mrb[0].mxu0 %v1333
        %v1611 = vpop.f32.mrb[0].mxu0
        %v1612 = vadd.f32 0.0, %v1611
        %v1613 = vpop.f32.mrb[0].mxu0
        %v1614 = vadd.f32 0.0, %v1613
        %1615 = vmatprep.mubr.f32.mxu0 %v1336
        %1616 = vmatmul.mubr.f32.gmra.mrb[0].mxu0 %v1335
        %v1617 = vpop.f32.mrb[0].mxu0
        %v1618 = vadd.f32 0.0, %v1617
        %v1619 = vpop.f32.mrb[0].mxu0
        %v1620 = vadd.f32 0.0, %v1619
        %1621 = vmatprep.mubr.f32.mxu0 %v1338
        %1622 = vmatmul.mubr.f32.gmra.mrb[0].mxu0 %v1337
        %v1623 = vpop.f32.mrb[0].mxu0
        %v1624 = vadd.f32 0.0, %v1623
        %v1625 = vpop.f32.mrb[0].mxu0
        %v1626 = vadd.f32 0.0, %v1625
        %1627 = vmatprep.mubr.f32.mxu0 %v1340
        %1628 = vmatmul.mubr.f32.gmra.mrb[0].mxu0 %v1339
        %v1629 = vpop.f32.mrb[0].mxu0
        %v1630 = vadd.f32 0.0, %v1629
        %v1631 = vpop.f32.mrb[0].mxu0
        %v1632 = vadd.f32 0.0, %v1631
        %1633 = vmatprep.mubr.f32.mxu0 %v1342
        %1634 = vmatmul.mubr.f32.gmra.mrb[0].mxu0 %v1341
        %v1635 = vpop.f32.mrb[0].mxu0
        %v1636 = vadd.f32 0.0, %v1635
        %v1637 = vpop.f32.mrb[0].mxu0
        %v1638 = vadd.f32 0.0, %v1637
        %1639 = vmatprep.mubr.f32.mxu0 %v1344
        %1640 = vmatmul.mubr.f32.gmra.mrb[0].mxu0 %v1343
        %v1641 = vpop.f32.mrb[0].mxu0
        %v1642 = vadd.f32 0.0, %v1641
        %v1643 = vpop.f32.mrb[0].mxu0
        %v1644 = vadd.f32 0.0, %v1643
        %1645 = vmatprep.mubr.f32.mxu0 %v1346
        %1646 = vmatmul.mubr.f32.gmra.mrb[0].mxu0 %v1345
        %v1647 = vpop.f32.mrb[0].mxu0
        %v1648 = vadd.f32 0.0, %v1647
        %v1649 = vpop.f32.mrb[0].mxu0
        %v1650 = vadd.f32 0.0, %v1649
        %1651 = vmatprep.mubr.f32.mxu0 %v1348
        %1652 = vmatmul.mubr.f32.gmra.mrb[0].mxu0 %v1347
        %v1653 = vpop.f32.mrb[0].mxu0
        %v1654 = vadd.f32 0.0, %v1653
        %v1655 = vpop.f32.mrb[0].mxu0
        %v1656 = vadd.f32 0.0, %v1655
        %1657 = vmatprep.mubr.f32.mxu0 %v1350
        %1658 = vmatmul.mubr.f32.gmra.mrb[0].mxu0 %v1349
        %v1659 = vpop.f32.mrb[0].mxu0
        %v1660 = vadd.f32 0.0, %v1659
        %v1661 = vpop.f32.mrb[0].mxu0
        %v1662 = vadd.f32 0.0, %v1661
        %1663 = vmatprep.mubr.f32.mxu0 %v1352
        %1664 = vmatmul.mubr.f32.gmra.mrb[0].mxu0 %v1351
        %v1665 = vpop.f32.mrb[0].mxu0
        %v1666 = vadd.f32 0.0, %v1665
        %v1667 = vpop.f32.mrb[0].mxu0
        %v1668 = vadd.f32 0.0, %v1667
        %1669 = vmatprep.mubr.f32.mxu0 %v1354
        %1670 = vmatmul.mubr.f32.gmra.mrb[0].mxu0 %v1353
        %v1671 = vpop.f32.mrb[0].mxu0
        %v1672 = vadd.f32 0.0, %v1671
        %v1673 = vpop.f32.mrb[0].mxu0
        %v1674 = vadd.f32 0.0, %v1673
        %1675 = vmatprep.mubr.f32.mxu0 %v1356
        %1676 = vmatmul.mubr.f32.gmra.mrb[0].mxu0 %v1355
        %v1677 = vpop.f32.mrb[0].mxu0
        %v1678 = vadd.f32 0.0, %v1677
        %v1679 = vpop.f32.mrb[0].mxu0
        %v1680 = vadd.f32 0.0, %v1679
        %1681 = vmatprep.mubr.f32.mxu0 %v1358
        %1682 = vmatmul.mubr.f32.gmra.mrb[0].mxu0 %v1357
        %v1683 = vpop.f32.mrb[0].mxu0
        %v1684 = vadd.f32 0.0, %v1683
        %v1685 = vpop.f32.mrb[0].mxu0
        %v1686 = vadd.f32 0.0, %v1685
        %1687 = vmatprep.mubr.f32.mxu0 %v1360
        %1688 = vmatmul.mubr.f32.gmra.mrb[0].mxu0 %v1359
        %v1689 = vpop.f32.mrb[0].mxu0
        %v1690 = vadd.f32 0.0, %v1689
        %v1691 = vpop.f32.mrb[0].mxu0
        %v1692 = vadd.f32 0.0, %v1691
        %1693 = vmatprep.mubr.f32.mxu0 %v1362
        %1694 = vmatmul.mubr.f32.gmra.mrb[0].mxu0 %v1361
        %v1695 = vpop.f32.mrb[0].mxu0
        %v1696 = vadd.f32 0.0, %v1695
        %v1697 = vpop.f32.mrb[0].mxu0
        %v1698 = vadd.f32 0.0, %v1697
        %1699 = vmatprep.mubr.f32.mxu0 %v1364
        %1700 = vmatmul.mubr.f32.gmra.mrb[0].mxu0 %v1363
        %v1701 = vpop.f32.mrb[0].mxu0
        %v1702 = vadd.f32 0.0, %v1701
        %v1703 = vpop.f32.mrb[0].mxu0
        %v1704 = vadd.f32 0.0, %v1703
        %1705 = vmatprep.mubr.f32.mxu0 %v1366
        %1706 = vmatmul.mubr.f32.gmra.mrb[0].mxu0 %v1365
        %v1707 = vpop.f32.mrb[0].mxu0
        %v1708 = vadd.f32 0.0, %v1707
        %v1709 = vpop.f32.mrb[0].mxu0
        %v1710 = vadd.f32 0.0, %v1709
        %1711 = vmatprep.mubr.f32.mxu0 %v1368
        %1712 = vmatmul.mubr.f32.gmra.mrb[0].mxu0 %v1367
        %v1713 = vpop.f32.mrb[0].mxu0
        %v1714 = vadd.f32 0.0, %v1713
        %v1715 = vpop.f32.mrb[0].mxu0
        %v1716 = vadd.f32 0.0, %v1715
        %1717 = vmatprep.mubr.f32.mxu0 %v1370
        %1718 = vmatmul.mubr.f32.gmra.mrb[0].mxu0 %v1369
        %v1719 = vpop.f32.mrb[0].mxu0
        %v1720 = vadd.f32 0.0, %v1719
        %v1721 = vpop.f32.mrb[0].mxu0
        %v1722 = vadd.f32 0.0, %v1721
        %1723 = vmatprep.mubr.f32.mxu0 %v1372
        %1724 = vmatmul.mubr.f32.gmra.mrb[0].mxu0 %v1371
        %v1725 = vpop.f32.mrb[0].mxu0
        %v1726 = vadd.f32 0.0, %v1725
        %v1727 = vpop.f32.mrb[0].mxu0
        %v1728 = vadd.f32 0.0, %v1727
        %1729 = vmatprep.mubr.f32.mxu0 %v1374
        %1730 = vmatmul.mubr.f32.gmra.mrb[0].mxu0 %v1373
        %v1731 = vpop.f32.mrb[0].mxu0
        %v1732 = vadd.f32 0.0, %v1731
        %v1733 = vpop.f32.mrb[0].mxu0
        %v1734 = vadd.f32 0.0, %v1733
        %1735 = vmatprep.mubr.f32.mxu0 %v1376
        %1736 = vmatmul.mubr.f32.gmra.mrb[0].mxu0 %v1375
        %v1737 = vpop.f32.mrb[0].mxu0
        %v1738 = vadd.f32 0.0, %v1737
        %v1739 = vpop.f32.mrb[0].mxu0
        %v1740 = vadd.f32 0.0, %v1739
        %1741 = vmatprep.mubr.f32.mxu0 %v1378
        %1742 = vmatmul.mubr.f32.gmra.mrb[0].mxu0 %v1377
        %v1743 = vpop.f32.mrb[0].mxu0
        %v1744 = vadd.f32 0.0, %v1743
        %v1745 = vpop.f32.mrb[0].mxu0
        %v1746 = vadd.f32 0.0, %v1745
        %1747 = vmatprep.mubr.f32.mxu0 %v1380
        %1748 = vmatmul.mubr.f32.gmra.mrb[0].mxu0 %v1379
        %v1749 = vpop.f32.mrb[0].mxu0
        %v1750 = vadd.f32 0.0, %v1749
        %v1751 = vpop.f32.mrb[0].mxu0
        %v1752 = vadd.f32 0.0, %v1751
        %1753 = vmatprep.mubr.f32.mxu0 %v1382
        %1754 = vmatmul.mubr.f32.gmra.mrb[0].mxu0 %v1381
        %v1755 = vpop.f32.mrb[0].mxu0
        %v1756 = vadd.f32 0.0, %v1755
        %v1757 = vpop.f32.mrb[0].mxu0
        %v1758 = vadd.f32 0.0, %v1757
        %1759 = vmatprep.mubr.f32.mxu0 %v1384
        %1760 = vmatmul.mubr.f32.gmra.mrb[0].mxu0 %v1383
        %v1761 = vpop.f32.mrb[0].mxu0
        %v1762 = vadd.f32 0.0, %v1761
        %v1763 = vpop.f32.mrb[0].mxu0
        %v1764 = vadd.f32 0.0, %v1763
        %1765 = vmatprep.mubr.f32.mxu0 %v1386
        %1766 = vmatmul.mubr.f32.gmra.mrb[0].mxu0 %v1385
        %v1767 = vpop.f32.mrb[0].mxu0
        %v1768 = vadd.f32 0.0, %v1767
        %v1769 = vpop.f32.mrb[0].mxu0
        %v1770 = vadd.f32 0.0, %v1769
        %1771 = vmatprep.mubr.f32.mxu0 %v1388
        %1772 = vmatmul.mubr.f32.gmra.mrb[0].mxu0 %v1387
        %v1773 = vpop.f32.mrb[0].mxu0
        %v1774 = vadd.f32 0.0, %v1773
        %v1775 = vpop.f32.mrb[0].mxu0
        %v1776 = vadd.f32 0.0, %v1775
        %1777 = vmatprep.mubr.f32.mxu0 %v1390
        %1778 = vmatmul.mubr.f32.gmra.mrb[0].mxu0 %v1389
        %v1779 = vpop.f32.mrb[0].mxu0
        %v1780 = vadd.f32 0.0, %v1779
        %v1781 = vpop.f32.mrb[0].mxu0
        %v1782 = vadd.f32 0.0, %v1781
        %1783 = vmatprep.mubr.f32.mxu0 %v1392
        %1784 = vmatmul.mubr.f32.gmra.mrb[0].mxu0 %v1391
        %v1785 = vpop.f32.mrb[0].mxu0
        %v1786 = vadd.f32 0.0, %v1785
        %v1787 = vpop.f32.mrb[0].mxu0
        %v1788 = vadd.f32 0.0, %v1787
        %1789 = vmatprep.mubr.f32.mxu0 %v1394
        %1790 = vmatmul.mubr.f32.gmra.mrb[0].mxu0 %v1393
        %v1791 = vpop.f32.mrb[0].mxu0
        %v1792 = vadd.f32 0.0, %v1791
        %v1793 = vpop.f32.mrb[0].mxu0
        %v1794 = vadd.f32 0.0, %v1793
        %1795 = vmatprep.mubr.f32.mxu0 %v1396
        %1796 = vmatmul.mubr.f32.gmra.mrb[0].mxu0 %v1395
        %v1797 = vpop.f32.mrb[0].mxu0
        %v1798 = vadd.f32 0.0, %v1797
        %v1799 = vpop.f32.mrb[0].mxu0
        %v1800 = vadd.f32 0.0, %v1799
        %1801 = vmatprep.mubr.f32.mxu0 %v1398
        %1802 = vmatmul.mubr.f32.gmra.mrb[0].mxu0 %v1397
        %v1803 = vpop.f32.mrb[0].mxu0
        %v1804 = vadd.f32 0.0, %v1803
        %v1805 = vpop.f32.mrb[0].mxu0
        %v1806 = vadd.f32 0.0, %v1805
        %1807 = vmatprep.mubr.f32.mxu0 %v1400
        %1808 = vmatmul.mubr.f32.gmra.mrb[0].mxu0 %v1399
        %v1809 = vpop.f32.mrb[0].mxu0
        %v1810 = vadd.f32 0.0, %v1809
        %v1811 = vpop.f32.mrb[0].mxu0
        %v1812 = vadd.f32 0.0, %v1811
        %1813 = vmatprep.mubr.f32.mxu0 %v1402
        %1814 = vmatmul.mubr.f32.gmra.mrb[0].mxu0 %v1401
        %v1815 = vpop.f32.mrb[0].mxu0
        %v1816 = vadd.f32 0.0, %v1815
        %v1817 = vpop.f32.mrb[0].mxu0
        %v1818 = vadd.f32 0.0, %v1817
        %1819 = vdwg.mxu0
        %v1821 = vlaneseq
        %v1822 = vshrl.u32 %v1821, 7
        %v1823 = vsub.s32 0, %v1822
        %v1824 = vrot.slane %v1306, %v1823
        %v1825 = vlaneseq
        %v1826 = vshrl.u32 %v1825, 7
        %v1827 = vsub.s32 1, %v1826
        %v1828 = vrot.slane %v1306, %v1827
        %v1831 = vadd.f32 %v1824, %v1534
        %v1832 = vadd.f32 %v1828, %v1536
        %v1833 = vadd.f32 %v1824, %v1540
        %v1834 = vadd.f32 %v1828, %v1542
        %v1835 = vadd.f32 %v1824, %v1546
        %v1836 = vadd.f32 %v1828, %v1548
        %v1837 = vadd.f32 %v1824, %v1552
        %v1838 = vadd.f32 %v1828, %v1554
        %v1839 = vadd.f32 %v1824, %v1558
        %v1840 = vadd.f32 %v1828, %v1560
        %v1841 = vadd.f32 %v1824, %v1564
        %v1842 = vadd.f32 %v1828, %v1566
        %v1843 = vadd.f32 %v1824, %v1570
        %v1844 = vadd.f32 %v1828, %v1572
        %v1845 = vadd.f32 %v1824, %v1576
        %v1846 = vadd.f32 %v1828, %v1578
        %v1847 = vadd.f32 %v1824, %v1582
        %v1848 = vadd.f32 %v1828, %v1584
        %v1849 = vadd.f32 %v1824, %v1588
        %v1850 = vadd.f32 %v1828, %v1590
        %v1851 = vadd.f32 %v1824, %v1594
        %v1852 = vadd.f32 %v1828, %v1596
        %v1853 = vadd.f32 %v1824, %v1600
        %v1854 = vadd.f32 %v1828, %v1602
        %v1855 = vadd.f32 %v1824, %v1606
        %v1856 = vadd.f32 %v1828, %v1608
        %v1857 = vadd.f32 %v1824, %v1612
        %v1858 = vadd.f32 %v1828, %v1614
        %v1859 = vadd.f32 %v1824, %v1618
        %v1860 = vadd.f32 %v1828, %v1620
        %v1861 = vadd.f32 %v1824, %v1624
        %v1862 = vadd.f32 %v1828, %v1626
        %v1863 = vadd.f32 %v1824, %v1630
        %v1864 = vadd.f32 %v1828, %v1632
        %v1865 = vadd.f32 %v1824, %v1636
        %v1866 = vadd.f32 %v1828, %v1638
        %v1867 = vadd.f32 %v1824, %v1642
        %v1868 = vadd.f32 %v1828, %v1644
        %v1869 = vadd.f32 %v1824, %v1648
        %v1870 = vadd.f32 %v1828, %v1650
        %v1871 = vadd.f32 %v1824, %v1654
        %v1872 = vadd.f32 %v1828, %v1656
        %v1873 = vadd.f32 %v1824, %v1660
        %v1874 = vadd.f32 %v1828, %v1662
        %v1875 = vadd.f32 %v1824, %v1666
        %v1876 = vadd.f32 %v1828, %v1668
        %v1877 = vadd.f32 %v1824, %v1672
        %v1878 = vadd.f32 %v1828, %v1674
        %v1879 = vadd.f32 %v1824, %v1678
        %v1880 = vadd.f32 %v1828, %v1680
        %v1881 = vadd.f32 %v1824, %v1684
        %v1882 = vadd.f32 %v1828, %v1686
        %v1883 = vadd.f32 %v1824, %v1690
        %v1884 = vadd.f32 %v1828, %v1692
        %v1885 = vadd.f32 %v1824, %v1696
        %v1886 = vadd.f32 %v1828, %v1698
        %v1887 = vadd.f32 %v1824, %v1702
        %v1888 = vadd.f32 %v1828, %v1704
        %v1889 = vadd.f32 %v1824, %v1708
        %v1890 = vadd.f32 %v1828, %v1710
        %v1891 = vadd.f32 %v1824, %v1714
        %v1892 = vadd.f32 %v1828, %v1716
        %v1893 = vadd.f32 %v1824, %v1720
        %v1894 = vadd.f32 %v1828, %v1722
        %v1895 = vadd.f32 %v1824, %v1726
        %v1896 = vadd.f32 %v1828, %v1728
        %v1897 = vadd.f32 %v1824, %v1732
        %v1898 = vadd.f32 %v1828, %v1734
        %v1899 = vadd.f32 %v1824, %v1738
        %v1900 = vadd.f32 %v1828, %v1740
        %v1901 = vadd.f32 %v1824, %v1744
        %v1902 = vadd.f32 %v1828, %v1746
        %v1903 = vadd.f32 %v1824, %v1750
        %v1904 = vadd.f32 %v1828, %v1752
        %v1905 = vadd.f32 %v1824, %v1756
        %v1906 = vadd.f32 %v1828, %v1758
        %v1907 = vadd.f32 %v1824, %v1762
        %v1908 = vadd.f32 %v1828, %v1764
        %v1909 = vadd.f32 %v1824, %v1768
        %v1910 = vadd.f32 %v1828, %v1770
        %v1911 = vadd.f32 %v1824, %v1774
        %v1912 = vadd.f32 %v1828, %v1776
        %v1913 = vadd.f32 %v1824, %v1780
        %v1914 = vadd.f32 %v1828, %v1782
        %v1915 = vadd.f32 %v1824, %v1786
        %v1916 = vadd.f32 %v1828, %v1788
        %v1917 = vadd.f32 %v1824, %v1792
        %v1918 = vadd.f32 %v1828, %v1794
        %v1919 = vadd.f32 %v1824, %v1798
        %v1920 = vadd.f32 %v1828, %v1800
        %v1921 = vadd.f32 %v1824, %v1804
        %v1922 = vadd.f32 %v1828, %v1806
        %v1923 = vadd.f32 %v1824, %v1810
        %v1924 = vadd.f32 %v1828, %v1812
        %v1925 = vadd.f32 %v1824, %v1816
        %v1926 = vadd.f32 %v1828, %v1818
        %v1927 = vld [vmem:[%s1209] sm:$0xff]
        %v1928 = vld [vmem:[%s1209 + $0x8] sm:$0xff]
        %v1929 = vld [vmem:[%s1209 + $0x10] sm:$0xff]
        %v1930 = vld [vmem:[%s1209 + $0x18] sm:$0xff]
        %v1931 = vld [vmem:[%s1209 + $0x20] sm:$0xff]
        %v1932 = vld [vmem:[%s1209 + $0x28] sm:$0xff]
        %v1933 = vld [vmem:[%s1209 + $0x30] sm:$0xff]
        %v1934 = vld [vmem:[%s1209 + $0x38] sm:$0xff]
        %v1935 = vld [vmem:[%s1209 + $0x40] sm:$0xff]
        %v1936 = vld [vmem:[%s1209 + $0x48] sm:$0xff]
        %v1937 = vld [vmem:[%s1209 + $0x50] sm:$0xff]
        %v1938 = vld [vmem:[%s1209 + $0x58] sm:$0xff]
        %v1939 = vld [vmem:[%s1209 + $0x60] sm:$0xff]
        %v1940 = vld [vmem:[%s1209 + $0x68] sm:$0xff]
        %v1941 = vld [vmem:[%s1209 + $0x70] sm:$0xff]
        %v1942 = vld [vmem:[%s1209 + $0x78] sm:$0xff]
        %v1943 = vld [vmem:[%s1209 + $0x80] sm:$0xff]
        %v1944 = vld [vmem:[%s1209 + $0x88] sm:$0xff]
        %v1945 = vld [vmem:[%s1209 + $0x90] sm:$0xff]
        %v1946 = vld [vmem:[%s1209 + $0x98] sm:$0xff]
        %v1947 = vld [vmem:[%s1209 + $0xa0] sm:$0xff]
        %v1948 = vld [vmem:[%s1209 + $0xa8] sm:$0xff]
        %v1949 = vld [vmem:[%s1209 + $0xb0] sm:$0xff]
        %v1950 = vld [vmem:[%s1209 + $0xb8] sm:$0xff]
        %v1951 = vld [vmem:[%s1209 + $0xc0] sm:$0xff]
        %v1952 = vld [vmem:[%s1209 + $0xc8] sm:$0xff]
        %v1953 = vld [vmem:[%s1209 + $0xd0] sm:$0xff]
        %v1954 = vld [vmem:[%s1209 + $0xd8] sm:$0xff]
        %v1955 = vld [vmem:[%s1209 + $0xe0] sm:$0xff]
        %v1956 = vld [vmem:[%s1209 + $0xe8] sm:$0xff]
        %v1957 = vld [vmem:[%s1209 + $0xf0] sm:$0xff]
        %v1958 = vld [vmem:[%s1209 + $0xf8] sm:$0xff]
        %v1959 = vld [vmem:[%s1209 + $0x100] sm:$0xff]
        %v1960 = vld [vmem:[%s1209 + $0x108] sm:$0xff]
        %v1961 = vld [vmem:[%s1209 + $0x110] sm:$0xff]
        %v1962 = vld [vmem:[%s1209 + $0x118] sm:$0xff]
        %v1963 = vld [vmem:[%s1209 + $0x120] sm:$0xff]
        %v1964 = vld [vmem:[%s1209 + $0x128] sm:$0xff]
        %v1965 = vld [vmem:[%s1209 + $0x130] sm:$0xff]
        %v1966 = vld [vmem:[%s1209 + $0x138] sm:$0xff]
        %v1967 = vld [vmem:[%s1209 + $0x140] sm:$0xff]
        %v1968 = vld [vmem:[%s1209 + $0x148] sm:$0xff]
        %v1969 = vld [vmem:[%s1209 + $0x150] sm:$0xff]
        %v1970 = vld [vmem:[%s1209 + $0x158] sm:$0xff]
        %v1971 = vld [vmem:[%s1209 + $0x160] sm:$0xff]
        %v1972 = vld [vmem:[%s1209 + $0x168] sm:$0xff]
        %v1973 = vld [vmem:[%s1209 + $0x170] sm:$0xff]
        %v1974 = vld [vmem:[%s1209 + $0x178] sm:$0xff]
        %v1975 = vld [vmem:[%s1209 + $0x180] sm:$0xff]
        %v1976 = vld [vmem:[%s1209 + $0x188] sm:$0xff]
        %v1977 = vld [vmem:[%s1209 + $0x190] sm:$0xff]
        %v1978 = vld [vmem:[%s1209 + $0x198] sm:$0xff]
        %v1979 = vld [vmem:[%s1209 + $0x1a0] sm:$0xff]
        %v1980 = vld [vmem:[%s1209 + $0x1a8] sm:$0xff]
        %v1981 = vld [vmem:[%s1209 + $0x1b0] sm:$0xff]
        %v1982 = vld [vmem:[%s1209 + $0x1b8] sm:$0xff]
        %v1983 = vld [vmem:[%s1209 + $0x1c0] sm:$0xff]
        %v1984 = vld [vmem:[%s1209 + $0x1c8] sm:$0xff]
        %v1985 = vld [vmem:[%s1209 + $0x1d0] sm:$0xff]
        %v1986 = vld [vmem:[%s1209 + $0x1d8] sm:$0xff]
        %v1987 = vld [vmem:[%s1209 + $0x1e0] sm:$0xff]
        %v1988 = vld [vmem:[%s1209 + $0x1e8] sm:$0xff]
        %v1989 = vld [vmem:[%s1209 + $0x1f0] sm:$0xff]
        %v1990 = vld [vmem:[%s1209 + $0x1f8] sm:$0xff]
        %v1991 = vld [vmem:[%s1209 + $0x200] sm:$0xff]
        %v1992 = vld [vmem:[%s1209 + $0x208] sm:$0xff]
        %v1993 = vld [vmem:[%s1209 + $0x210] sm:$0xff]
        %v1994 = vld [vmem:[%s1209 + $0x218] sm:$0xff]
        %v1995 = vld [vmem:[%s1209 + $0x220] sm:$0xff]
        %v1996 = vld [vmem:[%s1209 + $0x228] sm:$0xff]
        %v1997 = vld [vmem:[%s1209 + $0x230] sm:$0xff]
        %v1998 = vld [vmem:[%s1209 + $0x238] sm:$0xff]
        %v1999 = vld [vmem:[%s1209 + $0x240] sm:$0xff]
        %v2000 = vld [vmem:[%s1209 + $0x248] sm:$0xff]
        %v2001 = vld [vmem:[%s1209 + $0x250] sm:$0xff]
        %v2002 = vld [vmem:[%s1209 + $0x258] sm:$0xff]
        %v2003 = vld [vmem:[%s1209 + $0x260] sm:$0xff]
        %v2004 = vld [vmem:[%s1209 + $0x268] sm:$0xff]
        %v2005 = vld [vmem:[%s1209 + $0x270] sm:$0xff]
        %v2006 = vld [vmem:[%s1209 + $0x278] sm:$0xff]
        %v2007 = vld [vmem:[%s1209 + $0x280] sm:$0xff]
        %v2008 = vld [vmem:[%s1209 + $0x288] sm:$0xff]
        %v2009 = vld [vmem:[%s1209 + $0x290] sm:$0xff]
        %v2010 = vld [vmem:[%s1209 + $0x298] sm:$0xff]
        %v2011 = vld [vmem:[%s1209 + $0x2a0] sm:$0xff]
        %v2012 = vld [vmem:[%s1209 + $0x2a8] sm:$0xff]
        %v2013 = vld [vmem:[%s1209 + $0x2b0] sm:$0xff]
        %v2014 = vld [vmem:[%s1209 + $0x2b8] sm:$0xff]
        %v2015 = vld [vmem:[%s1209 + $0x2c0] sm:$0xff]
        %v2016 = vld [vmem:[%s1209 + $0x2c8] sm:$0xff]
        %v2017 = vld [vmem:[%s1209 + $0x2d0] sm:$0xff]
        %v2018 = vld [vmem:[%s1209 + $0x2d8] sm:$0xff]
        %v2019 = vld [vmem:[%s1209 + $0x2e0] sm:$0xff]
        %v2020 = vld [vmem:[%s1209 + $0x2e8] sm:$0xff]
        %v2021 = vld [vmem:[%s1209 + $0x2f0] sm:$0xff]
        %v2022 = vld [vmem:[%s1209 + $0x2f8] sm:$0xff]
        %s2023 = scalar_lea.vmem %s3, 512
        %v2024 = vld [vmem:[%s2023] sm:$0xff]
        %v2025 = vld [vmem:[%s2023 + $0x8] sm:$0xff]
        %v2026 = vld [vmem:[%s2023 + $0x10] sm:$0xff]
        %v2027 = vld [vmem:[%s2023 + $0x18] sm:$0xff]
        %v2028 = vld [vmem:[%s2023 + $0x20] sm:$0xff]
        %v2029 = vld [vmem:[%s2023 + $0x28] sm:$0xff]
        %v2030 = vld [vmem:[%s2023 + $0x30] sm:$0xff]
        %v2031 = vld [vmem:[%s2023 + $0x38] sm:$0xff]
        %v2032 = vld [vmem:[%s2023 + $0x40] sm:$0xff]
        %v2033 = vld [vmem:[%s2023 + $0x48] sm:$0xff]
        %v2034 = vld [vmem:[%s2023 + $0x50] sm:$0xff]
        %v2035 = vld [vmem:[%s2023 + $0x58] sm:$0xff]
        %v2036 = vld [vmem:[%s2023 + $0x60] sm:$0xff]
        %v2037 = vld [vmem:[%s2023 + $0x68] sm:$0xff]
        %v2038 = vld [vmem:[%s2023 + $0x70] sm:$0xff]
        %v2039 = vld [vmem:[%s2023 + $0x78] sm:$0xff]
        %v2040 = vld [vmem:[%s2023 + $0x80] sm:$0xff]
        %v2041 = vld [vmem:[%s2023 + $0x88] sm:$0xff]
        %v2042 = vld [vmem:[%s2023 + $0x90] sm:$0xff]
        %v2043 = vld [vmem:[%s2023 + $0x98] sm:$0xff]
        %v2044 = vld [vmem:[%s2023 + $0xa0] sm:$0xff]
        %v2045 = vld [vmem:[%s2023 + $0xa8] sm:$0xff]
        %v2046 = vld [vmem:[%s2023 + $0xb0] sm:$0xff]
        %v2047 = vld [vmem:[%s2023 + $0xb8] sm:$0xff]
        %v2048 = vld [vmem:[%s2023 + $0xc0] sm:$0xff]
        %v2049 = vld [vmem:[%s2023 + $0xc8] sm:$0xff]
        %v2050 = vld [vmem:[%s2023 + $0xd0] sm:$0xff]
        %v2051 = vld [vmem:[%s2023 + $0xd8] sm:$0xff]
        %v2052 = vld [vmem:[%s2023 + $0xe0] sm:$0xff]
        %v2053 = vld [vmem:[%s2023 + $0xe8] sm:$0xff]
        %v2054 = vld [vmem:[%s2023 + $0xf0] sm:$0xff]
        %v2055 = vld [vmem:[%s2023 + $0xf8] sm:$0xff]
        %v2056 = vld [vmem:[%s2023 + $0x100] sm:$0xff]
        %v2057 = vld [vmem:[%s2023 + $0x108] sm:$0xff]
        %v2058 = vld [vmem:[%s2023 + $0x110] sm:$0xff]
        %v2059 = vld [vmem:[%s2023 + $0x118] sm:$0xff]
        %v2060 = vld [vmem:[%s2023 + $0x120] sm:$0xff]
        %v2061 = vld [vmem:[%s2023 + $0x128] sm:$0xff]
        %v2062 = vld [vmem:[%s2023 + $0x130] sm:$0xff]
        %v2063 = vld [vmem:[%s2023 + $0x138] sm:$0xff]
        %v2064 = vld [vmem:[%s2023 + $0x140] sm:$0xff]
        %v2065 = vld [vmem:[%s2023 + $0x148] sm:$0xff]
        %v2066 = vld [vmem:[%s2023 + $0x150] sm:$0xff]
        %v2067 = vld [vmem:[%s2023 + $0x158] sm:$0xff]
        %v2068 = vld [vmem:[%s2023 + $0x160] sm:$0xff]
        %v2069 = vld [vmem:[%s2023 + $0x168] sm:$0xff]
        %v2070 = vld [vmem:[%s2023 + $0x170] sm:$0xff]
        %v2071 = vld [vmem:[%s2023 + $0x178] sm:$0xff]
        %v2072 = vld [vmem:[%s2023 + $0x180] sm:$0xff]
        %v2073 = vld [vmem:[%s2023 + $0x188] sm:$0xff]
        %v2074 = vld [vmem:[%s2023 + $0x190] sm:$0xff]
        %v2075 = vld [vmem:[%s2023 + $0x198] sm:$0xff]
        %v2076 = vld [vmem:[%s2023 + $0x1a0] sm:$0xff]
        %v2077 = vld [vmem:[%s2023 + $0x1a8] sm:$0xff]
        %v2078 = vld [vmem:[%s2023 + $0x1b0] sm:$0xff]
        %v2079 = vld [vmem:[%s2023 + $0x1b8] sm:$0xff]
        %v2080 = vld [vmem:[%s2023 + $0x1c0] sm:$0xff]
        %v2081 = vld [vmem:[%s2023 + $0x1c8] sm:$0xff]
        %v2082 = vld [vmem:[%s2023 + $0x1d0] sm:$0xff]
        %v2083 = vld [vmem:[%s2023 + $0x1d8] sm:$0xff]
        %v2084 = vld [vmem:[%s2023 + $0x1e0] sm:$0xff]
        %v2085 = vld [vmem:[%s2023 + $0x1e8] sm:$0xff]
        %v2086 = vld [vmem:[%s2023 + $0x1f0] sm:$0xff]
        %v2087 = vld [vmem:[%s2023 + $0x1f8] sm:$0xff]
        %2088 = vmatprep.subr.mxu0 %v2025
        %2089 = vmatpush1.msra.mxu0 %v2024
        %2090 = vmatprep.subr.mxu0 %v2027
        %2091 = vmatpush1.msra.mxu0 %v2026
        %2092 = vmatprep.subr.mxu0 %v2029
        %2093 = vmatpush1.msra.mxu0 %v2028
        %2094 = vmatprep.subr.mxu0 %v2031
        %2095 = vmatpush1.msra.mxu0 %v2030
        %2096 = vmatprep.subr.mxu0 %v2033
        %2097 = vmatpush1.msra.mxu0 %v2032
        %2098 = vmatprep.subr.mxu0 %v2035
        %2099 = vmatpush1.msra.mxu0 %v2034
        %2100 = vmatprep.subr.mxu0 %v2037
        %2101 = vmatpush1.msra.mxu0 %v2036
        %2102 = vmatprep.subr.mxu0 %v2039
        %2103 = vmatpush1.msra.mxu0 %v2038
        %2104 = vmatprep.subr.mxu0 %v2041
        %2105 = vmatpush1.msra.mxu0 %v2040
        %2106 = vmatprep.subr.mxu0 %v2043
        %2107 = vmatpush1.msra.mxu0 %v2042
        %2108 = vmatprep.subr.mxu0 %v2045
        %2109 = vmatpush1.msra.mxu0 %v2044
        %2110 = vmatprep.subr.mxu0 %v2047
        %2111 = vmatpush1.msra.mxu0 %v2046
        %2112 = vmatprep.subr.mxu0 %v2049
        %2113 = vmatpush1.msra.mxu0 %v2048
        %2114 = vmatprep.subr.mxu0 %v2051
        %2115 = vmatpush1.msra.mxu0 %v2050
        %2116 = vmatprep.subr.mxu0 %v2053
        %2117 = vmatpush1.msra.mxu0 %v2052
        %2118 = vmatprep.subr.mxu0 %v2055
        %2119 = vmatpush1.msra.mxu0 %v2054
        %2120 = vmatprep.subr.mxu0 %v2057
        %2121 = vmatpush1.msra.mxu0 %v2056
        %2122 = vmatprep.subr.mxu0 %v2059
        %2123 = vmatpush1.msra.mxu0 %v2058
        %2124 = vmatprep.subr.mxu0 %v2061
        %2125 = vmatpush1.msra.mxu0 %v2060
        %2126 = vmatprep.subr.mxu0 %v2063
        %2127 = vmatpush1.msra.mxu0 %v2062
        %2128 = vmatprep.subr.mxu0 %v2065
        %2129 = vmatpush1.msra.mxu0 %v2064
        %2130 = vmatprep.subr.mxu0 %v2067
        %2131 = vmatpush1.msra.mxu0 %v2066
        %2132 = vmatprep.subr.mxu0 %v2069
        %2133 = vmatpush1.msra.mxu0 %v2068
        %2134 = vmatprep.subr.mxu0 %v2071
        %2135 = vmatpush1.msra.mxu0 %v2070
        %2136 = vmatprep.subr.mxu0 %v2073
        %2137 = vmatpush1.msra.mxu0 %v2072
        %2138 = vmatprep.subr.mxu0 %v2075
        %2139 = vmatpush1.msra.mxu0 %v2074
        %2140 = vmatprep.subr.mxu0 %v2077
        %2141 = vmatpush1.msra.mxu0 %v2076
        %2142 = vmatprep.subr.mxu0 %v2079
        %2143 = vmatpush1.msra.mxu0 %v2078
        %2144 = vmatprep.subr.mxu0 %v2081
        %2145 = vmatpush1.msra.mxu0 %v2080
        %2146 = vmatprep.subr.mxu0 %v2083
        %2147 = vmatpush1.msra.mxu0 %v2082
        %2148 = vmatprep.subr.mxu0 %v2085
        %2149 = vmatpush1.msra.mxu0 %v2084
        %2150 = vmatprep.subr.mxu0 %v2087
        %2151 = vmatpush1.msra.mxu0 %v2086
        %2152 = vmatprep.mubr.f32.mxu0 %v1928
        %2153 = vmatmul.mubr.f32.gmra.mrb[0].mxu0 %v1927
        %v2154 = vpop.f32.mrb[0].mxu0
        %v2155 = vadd.f32 0.0, %v2154
        %v2156 = vpop.f32.mrb[0].mxu0
        %v2157 = vadd.f32 0.0, %v2156
        %2158 = vmatprep.mubr.f32.mxu0 %v1930
        %2159 = vmatmul.mubr.f32.gmra.mrb[0].mxu0 %v1929
        %v2160 = vpop.f32.mrb[0].mxu0
        %v2161 = vadd.f32 0.0, %v2160
        %v2162 = vpop.f32.mrb[0].mxu0
        %v2163 = vadd.f32 0.0, %v2162
        %2164 = vmatprep.mubr.f32.mxu0 %v1932
        %2165 = vmatmul.mubr.f32.gmra.mrb[0].mxu0 %v1931
        %v2166 = vpop.f32.mrb[0].mxu0
        %v2167 = vadd.f32 0.0, %v2166
        %v2168 = vpop.f32.mrb[0].mxu0
        %v2169 = vadd.f32 0.0, %v2168
        %2170 = vmatprep.mubr.f32.mxu0 %v1934
        %2171 = vmatmul.mubr.f32.gmra.mrb[0].mxu0 %v1933
        %v2172 = vpop.f32.mrb[0].mxu0
        %v2173 = vadd.f32 0.0, %v2172
        %v2174 = vpop.f32.mrb[0].mxu0
        %v2175 = vadd.f32 0.0, %v2174
        %2176 = vmatprep.mubr.f32.mxu0 %v1936
        %2177 = vmatmul.mubr.f32.gmra.mrb[0].mxu0 %v1935
        %v2178 = vpop.f32.mrb[0].mxu0
        %v2179 = vadd.f32 0.0, %v2178
        %v2180 = vpop.f32.mrb[0].mxu0
        %v2181 = vadd.f32 0.0, %v2180
        %2182 = vmatprep.mubr.f32.mxu0 %v1938
        %2183 = vmatmul.mubr.f32.gmra.mrb[0].mxu0 %v1937
        %v2184 = vpop.f32.mrb[0].mxu0
        %v2185 = vadd.f32 0.0, %v2184
        %v2186 = vpop.f32.mrb[0].mxu0
        %v2187 = vadd.f32 0.0, %v2186
        %2188 = vmatprep.mubr.f32.mxu0 %v1940
        %2189 = vmatmul.mubr.f32.gmra.mrb[0].mxu0 %v1939
        %v2190 = vpop.f32.mrb[0].mxu0
        %v2191 = vadd.f32 0.0, %v2190
        %v2192 = vpop.f32.mrb[0].mxu0
        %v2193 = vadd.f32 0.0, %v2192
        %2194 = vmatprep.mubr.f32.mxu0 %v1942
        %2195 = vmatmul.mubr.f32.gmra.mrb[0].mxu0 %v1941
        %v2196 = vpop.f32.mrb[0].mxu0
        %v2197 = vadd.f32 0.0, %v2196
        %v2198 = vpop.f32.mrb[0].mxu0
        %v2199 = vadd.f32 0.0, %v2198
        %2200 = vmatprep.mubr.f32.mxu0 %v1944
        %2201 = vmatmul.mubr.f32.gmra.mrb[0].mxu0 %v1943
        %v2202 = vpop.f32.mrb[0].mxu0
        %v2203 = vadd.f32 0.0, %v2202
        %v2204 = vpop.f32.mrb[0].mxu0
        %v2205 = vadd.f32 0.0, %v2204
        %2206 = vmatprep.mubr.f32.mxu0 %v1946
        %2207 = vmatmul.mubr.f32.gmra.mrb[0].mxu0 %v1945
        %v2208 = vpop.f32.mrb[0].mxu0
        %v2209 = vadd.f32 0.0, %v2208
        %v2210 = vpop.f32.mrb[0].mxu0
        %v2211 = vadd.f32 0.0, %v2210
        %2212 = vmatprep.mubr.f32.mxu0 %v1948
        %2213 = vmatmul.mubr.f32.gmra.mrb[0].mxu0 %v1947
        %v2214 = vpop.f32.mrb[0].mxu0
        %v2215 = vadd.f32 0.0, %v2214
        %v2216 = vpop.f32.mrb[0].mxu0
        %v2217 = vadd.f32 0.0, %v2216
        %2218 = vmatprep.mubr.f32.mxu0 %v1950
        %2219 = vmatmul.mubr.f32.gmra.mrb[0].mxu0 %v1949
        %v2220 = vpop.f32.mrb[0].mxu0
        %v2221 = vadd.f32 0.0, %v2220
        %v2222 = vpop.f32.mrb[0].mxu0
        %v2223 = vadd.f32 0.0, %v2222
        %2224 = vmatprep.mubr.f32.mxu0 %v1952
        %2225 = vmatmul.mubr.f32.gmra.mrb[0].mxu0 %v1951
        %v2226 = vpop.f32.mrb[0].mxu0
        %v2227 = vadd.f32 0.0, %v2226
        %v2228 = vpop.f32.mrb[0].mxu0
        %v2229 = vadd.f32 0.0, %v2228
        %2230 = vmatprep.mubr.f32.mxu0 %v1954
        %2231 = vmatmul.mubr.f32.gmra.mrb[0].mxu0 %v1953
        %v2232 = vpop.f32.mrb[0].mxu0
        %v2233 = vadd.f32 0.0, %v2232
        %v2234 = vpop.f32.mrb[0].mxu0
        %v2235 = vadd.f32 0.0, %v2234
        %2236 = vmatprep.mubr.f32.mxu0 %v1956
        %2237 = vmatmul.mubr.f32.gmra.mrb[0].mxu0 %v1955
        %v2238 = vpop.f32.mrb[0].mxu0
        %v2239 = vadd.f32 0.0, %v2238
        %v2240 = vpop.f32.mrb[0].mxu0
        %v2241 = vadd.f32 0.0, %v2240
        %2242 = vmatprep.mubr.f32.mxu0 %v1958
        %2243 = vmatmul.mubr.f32.gmra.mrb[0].mxu0 %v1957
        %v2244 = vpop.f32.mrb[0].mxu0
        %v2245 = vadd.f32 0.0, %v2244
        %v2246 = vpop.f32.mrb[0].mxu0
        %v2247 = vadd.f32 0.0, %v2246
        %2248 = vmatprep.mubr.f32.mxu0 %v1960
        %2249 = vmatmul.mubr.f32.gmra.mrb[0].mxu0 %v1959
        %v2250 = vpop.f32.mrb[0].mxu0
        %v2251 = vadd.f32 0.0, %v2250
        %v2252 = vpop.f32.mrb[0].mxu0
        %v2253 = vadd.f32 0.0, %v2252
        %2254 = vmatprep.mubr.f32.mxu0 %v1962
        %2255 = vmatmul.mubr.f32.gmra.mrb[0].mxu0 %v1961
        %v2256 = vpop.f32.mrb[0].mxu0
        %v2257 = vadd.f32 0.0, %v2256
        %v2258 = vpop.f32.mrb[0].mxu0
        %v2259 = vadd.f32 0.0, %v2258
        %2260 = vmatprep.mubr.f32.mxu0 %v1964
        %2261 = vmatmul.mubr.f32.gmra.mrb[0].mxu0 %v1963
        %v2262 = vpop.f32.mrb[0].mxu0
        %v2263 = vadd.f32 0.0, %v2262
        %v2264 = vpop.f32.mrb[0].mxu0
        %v2265 = vadd.f32 0.0, %v2264
        %2266 = vmatprep.mubr.f32.mxu0 %v1966
        %2267 = vmatmul.mubr.f32.gmra.mrb[0].mxu0 %v1965
        %v2268 = vpop.f32.mrb[0].mxu0
        %v2269 = vadd.f32 0.0, %v2268
        %v2270 = vpop.f32.mrb[0].mxu0
        %v2271 = vadd.f32 0.0, %v2270
        %2272 = vmatprep.mubr.f32.mxu0 %v1968
        %2273 = vmatmul.mubr.f32.gmra.mrb[0].mxu0 %v1967
        %v2274 = vpop.f32.mrb[0].mxu0
        %v2275 = vadd.f32 0.0, %v2274
        %v2276 = vpop.f32.mrb[0].mxu0
        %v2277 = vadd.f32 0.0, %v2276
        %2278 = vmatprep.mubr.f32.mxu0 %v1970
        %2279 = vmatmul.mubr.f32.gmra.mrb[0].mxu0 %v1969
        %v2280 = vpop.f32.mrb[0].mxu0
        %v2281 = vadd.f32 0.0, %v2280
        %v2282 = vpop.f32.mrb[0].mxu0
        %v2283 = vadd.f32 0.0, %v2282
        %2284 = vmatprep.mubr.f32.mxu0 %v1972
        %2285 = vmatmul.mubr.f32.gmra.mrb[0].mxu0 %v1971
        %v2286 = vpop.f32.mrb[0].mxu0
        %v2287 = vadd.f32 0.0, %v2286
        %v2288 = vpop.f32.mrb[0].mxu0
        %v2289 = vadd.f32 0.0, %v2288
        %2290 = vmatprep.mubr.f32.mxu0 %v1974
        %2291 = vmatmul.mubr.f32.gmra.mrb[0].mxu0 %v1973
        %v2292 = vpop.f32.mrb[0].mxu0
        %v2293 = vadd.f32 0.0, %v2292
        %v2294 = vpop.f32.mrb[0].mxu0
        %v2295 = vadd.f32 0.0, %v2294
        %2296 = vmatprep.mubr.f32.mxu0 %v1976
        %2297 = vmatmul.mubr.f32.gmra.mrb[0].mxu0 %v1975
        %v2298 = vpop.f32.mrb[0].mxu0
        %v2299 = vadd.f32 0.0, %v2298
        %v2300 = vpop.f32.mrb[0].mxu0
        %v2301 = vadd.f32 0.0, %v2300
        %2302 = vmatprep.mubr.f32.mxu0 %v1978
        %2303 = vmatmul.mubr.f32.gmra.mrb[0].mxu0 %v1977
        %v2304 = vpop.f32.mrb[0].mxu0
        %v2305 = vadd.f32 0.0, %v2304
        %v2306 = vpop.f32.mrb[0].mxu0
        %v2307 = vadd.f32 0.0, %v2306
        %2308 = vmatprep.mubr.f32.mxu0 %v1980
        %2309 = vmatmul.mubr.f32.gmra.mrb[0].mxu0 %v1979
        %v2310 = vpop.f32.mrb[0].mxu0
        %v2311 = vadd.f32 0.0, %v2310
        %v2312 = vpop.f32.mrb[0].mxu0
        %v2313 = vadd.f32 0.0, %v2312
        %2314 = vmatprep.mubr.f32.mxu0 %v1982
        %2315 = vmatmul.mubr.f32.gmra.mrb[0].mxu0 %v1981
        %v2316 = vpop.f32.mrb[0].mxu0
        %v2317 = vadd.f32 0.0, %v2316
        %v2318 = vpop.f32.mrb[0].mxu0
        %v2319 = vadd.f32 0.0, %v2318
        %2320 = vmatprep.mubr.f32.mxu0 %v1984
        %2321 = vmatmul.mubr.f32.gmra.mrb[0].mxu0 %v1983
        %v2322 = vpop.f32.mrb[0].mxu0
        %v2323 = vadd.f32 0.0, %v2322
        %v2324 = vpop.f32.mrb[0].mxu0
        %v2325 = vadd.f32 0.0, %v2324
        %2326 = vmatprep.mubr.f32.mxu0 %v1986
        %2327 = vmatmul.mubr.f32.gmra.mrb[0].mxu0 %v1985
        %v2328 = vpop.f32.mrb[0].mxu0
        %v2329 = vadd.f32 0.0, %v2328
        %v2330 = vpop.f32.mrb[0].mxu0
        %v2331 = vadd.f32 0.0, %v2330
        %2332 = vmatprep.mubr.f32.mxu0 %v1988
        %2333 = vmatmul.mubr.f32.gmra.mrb[0].mxu0 %v1987
        %v2334 = vpop.f32.mrb[0].mxu0
        %v2335 = vadd.f32 0.0, %v2334
        %v2336 = vpop.f32.mrb[0].mxu0
        %v2337 = vadd.f32 0.0, %v2336
        %2338 = vmatprep.mubr.f32.mxu0 %v1990
        %2339 = vmatmul.mubr.f32.gmra.mrb[0].mxu0 %v1989
        %v2340 = vpop.f32.mrb[0].mxu0
        %v2341 = vadd.f32 0.0, %v2340
        %v2342 = vpop.f32.mrb[0].mxu0
        %v2343 = vadd.f32 0.0, %v2342
        %2344 = vmatprep.mubr.f32.mxu0 %v1992
        %2345 = vmatmul.mubr.f32.gmra.mrb[0].mxu0 %v1991
        %v2346 = vpop.f32.mrb[0].mxu0
        %v2347 = vadd.f32 0.0, %v2346
        %v2348 = vpop.f32.mrb[0].mxu0
        %v2349 = vadd.f32 0.0, %v2348
        %2350 = vmatprep.mubr.f32.mxu0 %v1994
        %2351 = vmatmul.mubr.f32.gmra.mrb[0].mxu0 %v1993
        %v2352 = vpop.f32.mrb[0].mxu0
        %v2353 = vadd.f32 0.0, %v2352
        %v2354 = vpop.f32.mrb[0].mxu0
        %v2355 = vadd.f32 0.0, %v2354
        %2356 = vmatprep.mubr.f32.mxu0 %v1996
        %2357 = vmatmul.mubr.f32.gmra.mrb[0].mxu0 %v1995
        %v2358 = vpop.f32.mrb[0].mxu0
        %v2359 = vadd.f32 0.0, %v2358
        %v2360 = vpop.f32.mrb[0].mxu0
        %v2361 = vadd.f32 0.0, %v2360
        %2362 = vmatprep.mubr.f32.mxu0 %v1998
        %2363 = vmatmul.mubr.f32.gmra.mrb[0].mxu0 %v1997
        %v2364 = vpop.f32.mrb[0].mxu0
        %v2365 = vadd.f32 0.0, %v2364
        %v2366 = vpop.f32.mrb[0].mxu0
        %v2367 = vadd.f32 0.0, %v2366
        %2368 = vmatprep.mubr.f32.mxu0 %v2000
        %2369 = vmatmul.mubr.f32.gmra.mrb[0].mxu0 %v1999
        %v2370 = vpop.f32.mrb[0].mxu0
        %v2371 = vadd.f32 0.0, %v2370
        %v2372 = vpop.f32.mrb[0].mxu0
        %v2373 = vadd.f32 0.0, %v2372
        %2374 = vmatprep.mubr.f32.mxu0 %v2002
        %2375 = vmatmul.mubr.f32.gmra.mrb[0].mxu0 %v2001
        %v2376 = vpop.f32.mrb[0].mxu0
        %v2377 = vadd.f32 0.0, %v2376
        %v2378 = vpop.f32.mrb[0].mxu0
        %v2379 = vadd.f32 0.0, %v2378
        %2380 = vmatprep.mubr.f32.mxu0 %v2004
        %2381 = vmatmul.mubr.f32.gmra.mrb[0].mxu0 %v2003
        %v2382 = vpop.f32.mrb[0].mxu0
        %v2383 = vadd.f32 0.0, %v2382
        %v2384 = vpop.f32.mrb[0].mxu0
        %v2385 = vadd.f32 0.0, %v2384
        %2386 = vmatprep.mubr.f32.mxu0 %v2006
        %2387 = vmatmul.mubr.f32.gmra.mrb[0].mxu0 %v2005
        %v2388 = vpop.f32.mrb[0].mxu0
        %v2389 = vadd.f32 0.0, %v2388
        %v2390 = vpop.f32.mrb[0].mxu0
        %v2391 = vadd.f32 0.0, %v2390
        %2392 = vmatprep.mubr.f32.mxu0 %v2008
        %2393 = vmatmul.mubr.f32.gmra.mrb[0].mxu0 %v2007
        %v2394 = vpop.f32.mrb[0].mxu0
        %v2395 = vadd.f32 0.0, %v2394
        %v2396 = vpop.f32.mrb[0].mxu0
        %v2397 = vadd.f32 0.0, %v2396
        %2398 = vmatprep.mubr.f32.mxu0 %v2010
        %2399 = vmatmul.mubr.f32.gmra.mrb[0].mxu0 %v2009
        %v2400 = vpop.f32.mrb[0].mxu0
        %v2401 = vadd.f32 0.0, %v2400
        %v2402 = vpop.f32.mrb[0].mxu0
        %v2403 = vadd.f32 0.0, %v2402
        %2404 = vmatprep.mubr.f32.mxu0 %v2012
        %2405 = vmatmul.mubr.f32.gmra.mrb[0].mxu0 %v2011
        %v2406 = vpop.f32.mrb[0].mxu0
        %v2407 = vadd.f32 0.0, %v2406
        %v2408 = vpop.f32.mrb[0].mxu0
        %v2409 = vadd.f32 0.0, %v2408
        %2410 = vmatprep.mubr.f32.mxu0 %v2014
        %2411 = vmatmul.mubr.f32.gmra.mrb[0].mxu0 %v2013
        %v2412 = vpop.f32.mrb[0].mxu0
        %v2413 = vadd.f32 0.0, %v2412
        %v2414 = vpop.f32.mrb[0].mxu0
        %v2415 = vadd.f32 0.0, %v2414
        %2416 = vmatprep.mubr.f32.mxu0 %v2016
        %2417 = vmatmul.mubr.f32.gmra.mrb[0].mxu0 %v2015
        %v2418 = vpop.f32.mrb[0].mxu0
        %v2419 = vadd.f32 0.0, %v2418
        %v2420 = vpop.f32.mrb[0].mxu0
        %v2421 = vadd.f32 0.0, %v2420
        %2422 = vmatprep.mubr.f32.mxu0 %v2018
        %2423 = vmatmul.mubr.f32.gmra.mrb[0].mxu0 %v2017
        %v2424 = vpop.f32.mrb[0].mxu0
        %v2425 = vadd.f32 0.0, %v2424
        %v2426 = vpop.f32.mrb[0].mxu0
        %v2427 = vadd.f32 0.0, %v2426
        %2428 = vmatprep.mubr.f32.mxu0 %v2020
        %2429 = vmatmul.mubr.f32.gmra.mrb[0].mxu0 %v2019
        %v2430 = vpop.f32.mrb[0].mxu0
        %v2431 = vadd.f32 0.0, %v2430
        %v2432 = vpop.f32.mrb[0].mxu0
        %v2433 = vadd.f32 0.0, %v2432
        %2434 = vmatprep.mubr.f32.mxu0 %v2022
        %2435 = vmatmul.mubr.f32.gmra.mrb[0].mxu0 %v2021
        %v2436 = vpop.f32.mrb[0].mxu0
        %v2437 = vadd.f32 0.0, %v2436
        %v2438 = vpop.f32.mrb[0].mxu0
        %v2439 = vadd.f32 0.0, %v2438
        %2440 = vdwg.mxu0
        %v2441 = vadd.f32 %v1831, %v2155
        %v2442 = vadd.f32 %v1832, %v2157
        %v2443 = vadd.f32 %v1833, %v2161
        %v2444 = vadd.f32 %v1834, %v2163
        %v2445 = vadd.f32 %v1835, %v2167
        %v2446 = vadd.f32 %v1836, %v2169
        %v2447 = vadd.f32 %v1837, %v2173
        %v2448 = vadd.f32 %v1838, %v2175
        %v2449 = vadd.f32 %v1839, %v2179
        %v2450 = vadd.f32 %v1840, %v2181
        %v2451 = vadd.f32 %v1841, %v2185
        %v2452 = vadd.f32 %v1842, %v2187
        %v2453 = vadd.f32 %v1843, %v2191
        %v2454 = vadd.f32 %v1844, %v2193
        %v2455 = vadd.f32 %v1845, %v2197
        %v2456 = vadd.f32 %v1846, %v2199
        %v2457 = vadd.f32 %v1847, %v2203
        %v2458 = vadd.f32 %v1848, %v2205
        %v2459 = vadd.f32 %v1849, %v2209
        %v2460 = vadd.f32 %v1850, %v2211
        %v2461 = vadd.f32 %v1851, %v2215
        %v2462 = vadd.f32 %v1852, %v2217
        %v2463 = vadd.f32 %v1853, %v2221
        %v2464 = vadd.f32 %v1854, %v2223
        %v2465 = vadd.f32 %v1855, %v2227
        %v2466 = vadd.f32 %v1856, %v2229
        %v2467 = vadd.f32 %v1857, %v2233
        %v2468 = vadd.f32 %v1858, %v2235
        %v2469 = vadd.f32 %v1859, %v2239
        %v2470 = vadd.f32 %v1860, %v2241
        %v2471 = vadd.f32 %v1861, %v2245
        %v2472 = vadd.f32 %v1862, %v2247
        %v2473 = vadd.f32 %v1863, %v2251
        %v2474 = vadd.f32 %v1864, %v2253
        %v2475 = vadd.f32 %v1865, %v2257
        %v2476 = vadd.f32 %v1866, %v2259
        %v2477 = vadd.f32 %v1867, %v2263
        %v2478 = vadd.f32 %v1868, %v2265
        %v2479 = vadd.f32 %v1869, %v2269
        %v2480 = vadd.f32 %v1870, %v2271
        %v2481 = vadd.f32 %v1871, %v2275
        %v2482 = vadd.f32 %v1872, %v2277
        %v2483 = vadd.f32 %v1873, %v2281
        %v2484 = vadd.f32 %v1874, %v2283
        %v2485 = vadd.f32 %v1875, %v2287
        %v2486 = vadd.f32 %v1876, %v2289
        %v2487 = vadd.f32 %v1877, %v2293
        %v2488 = vadd.f32 %v1878, %v2295
        %v2489 = vadd.f32 %v1879, %v2299
        %v2490 = vadd.f32 %v1880, %v2301
        %v2491 = vadd.f32 %v1881, %v2305
        %v2492 = vadd.f32 %v1882, %v2307
        %v2493 = vadd.f32 %v1883, %v2311
        %v2494 = vadd.f32 %v1884, %v2313
        %v2495 = vadd.f32 %v1885, %v2317
        %v2496 = vadd.f32 %v1886, %v2319
        %v2497 = vadd.f32 %v1887, %v2323
        %v2498 = vadd.f32 %v1888, %v2325
        %v2499 = vadd.f32 %v1889, %v2329
        %v2500 = vadd.f32 %v1890, %v2331
        %v2501 = vadd.f32 %v1891, %v2335
        %v2502 = vadd.f32 %v1892, %v2337
        %v2503 = vadd.f32 %v1893, %v2341
        %v2504 = vadd.f32 %v1894, %v2343
        %v2505 = vadd.f32 %v1895, %v2347
        %v2506 = vadd.f32 %v1896, %v2349
        %v2507 = vadd.f32 %v1897, %v2353
        %v2508 = vadd.f32 %v1898, %v2355
        %v2509 = vadd.f32 %v1899, %v2359
        %v2510 = vadd.f32 %v1900, %v2361
        %v2511 = vadd.f32 %v1901, %v2365
        %v2512 = vadd.f32 %v1902, %v2367
        %v2513 = vadd.f32 %v1903, %v2371
        %v2514 = vadd.f32 %v1904, %v2373
        %v2515 = vadd.f32 %v1905, %v2377
        %v2516 = vadd.f32 %v1906, %v2379
        %v2517 = vadd.f32 %v1907, %v2383
        %v2518 = vadd.f32 %v1908, %v2385
        %v2519 = vadd.f32 %v1909, %v2389
        %v2520 = vadd.f32 %v1910, %v2391
        %v2521 = vadd.f32 %v1911, %v2395
        %v2522 = vadd.f32 %v1912, %v2397
        %v2523 = vadd.f32 %v1913, %v2401
        %v2524 = vadd.f32 %v1914, %v2403
        %v2525 = vadd.f32 %v1915, %v2407
        %v2526 = vadd.f32 %v1916, %v2409
        %v2527 = vadd.f32 %v1917, %v2413
        %v2528 = vadd.f32 %v1918, %v2415
        %v2529 = vadd.f32 %v1919, %v2419
        %v2530 = vadd.f32 %v1920, %v2421
        %v2531 = vadd.f32 %v1921, %v2425
        %v2532 = vadd.f32 %v1922, %v2427
        %v2533 = vadd.f32 %v1923, %v2431
        %v2534 = vadd.f32 %v1924, %v2433
        %v2535 = vadd.f32 %v1925, %v2437
        %v2536 = vadd.f32 %v1926, %v2439
        %s2537 = scalar_lea.vmem [#allocation2], 256
        %v2538 = vld [vmem:[%s2537] sm:$0xff]
        %v2539 = vld [vmem:[%s2537 + $0x8] sm:$0xff]
        %v2540 = vld [vmem:[%s2537 + $0x10] sm:$0xff]
        %v2541 = vld [vmem:[%s2537 + $0x18] sm:$0xff]
        %v2542 = vld [vmem:[%s2537 + $0x20] sm:$0xff]
        %v2543 = vld [vmem:[%s2537 + $0x28] sm:$0xff]
        %v2544 = vld [vmem:[%s2537 + $0x30] sm:$0xff]
        %v2545 = vld [vmem:[%s2537 + $0x38] sm:$0xff]
        %v2546 = vld [vmem:[%s2537 + $0x40] sm:$0xff]
        %v2547 = vld [vmem:[%s2537 + $0x48] sm:$0xff]
        %v2548 = vld [vmem:[%s2537 + $0x50] sm:$0xff]
        %v2549 = vld [vmem:[%s2537 + $0x58] sm:$0xff]
        %v2550 = vld [vmem:[%s2537 + $0x60] sm:$0xff]
        %v2551 = vld [vmem:[%s2537 + $0x68] sm:$0xff]
        %v2552 = vld [vmem:[%s2537 + $0x70] sm:$0xff]
        %v2553 = vld [vmem:[%s2537 + $0x78] sm:$0xff]
        %v2554 = vld [vmem:[%s2537 + $0x80] sm:$0xff]
        %v2555 = vld [vmem:[%s2537 + $0x88] sm:$0xff]
        %v2556 = vld [vmem:[%s2537 + $0x90] sm:$0xff]
        %v2557 = vld [vmem:[%s2537 + $0x98] sm:$0xff]
        %v2558 = vld [vmem:[%s2537 + $0xa0] sm:$0xff]
        %v2559 = vld [vmem:[%s2537 + $0xa8] sm:$0xff]
        %v2560 = vld [vmem:[%s2537 + $0xb0] sm:$0xff]
        %v2561 = vld [vmem:[%s2537 + $0xb8] sm:$0xff]
        %v2562 = vld [vmem:[%s2537 + $0xc0] sm:$0xff]
        %v2563 = vld [vmem:[%s2537 + $0xc8] sm:$0xff]
        %v2564 = vld [vmem:[%s2537 + $0xd0] sm:$0xff]
        %v2565 = vld [vmem:[%s2537 + $0xd8] sm:$0xff]
        %v2566 = vld [vmem:[%s2537 + $0xe0] sm:$0xff]
        %v2567 = vld [vmem:[%s2537 + $0xe8] sm:$0xff]
        %v2568 = vld [vmem:[%s2537 + $0xf0] sm:$0xff]
        %v2569 = vld [vmem:[%s2537 + $0xf8] sm:$0xff]
        %v2570 = vld [vmem:[%s2537 + $0x100] sm:$0xff]
        %v2571 = vld [vmem:[%s2537 + $0x108] sm:$0xff]
        %v2572 = vld [vmem:[%s2537 + $0x110] sm:$0xff]
        %v2573 = vld [vmem:[%s2537 + $0x118] sm:$0xff]
        %v2574 = vld [vmem:[%s2537 + $0x120] sm:$0xff]
        %v2575 = vld [vmem:[%s2537 + $0x128] sm:$0xff]
        %v2576 = vld [vmem:[%s2537 + $0x130] sm:$0xff]
        %v2577 = vld [vmem:[%s2537 + $0x138] sm:$0xff]
        %v2578 = vld [vmem:[%s2537 + $0x140] sm:$0xff]
        %v2579 = vld [vmem:[%s2537 + $0x148] sm:$0xff]
        %v2580 = vld [vmem:[%s2537 + $0x150] sm:$0xff]
        %v2581 = vld [vmem:[%s2537 + $0x158] sm:$0xff]
        %v2582 = vld [vmem:[%s2537 + $0x160] sm:$0xff]
        %v2583 = vld [vmem:[%s2537 + $0x168] sm:$0xff]
        %v2584 = vld [vmem:[%s2537 + $0x170] sm:$0xff]
        %v2585 = vld [vmem:[%s2537 + $0x178] sm:$0xff]
        %v2586 = vld [vmem:[%s2537 + $0x180] sm:$0xff]
        %v2587 = vld [vmem:[%s2537 + $0x188] sm:$0xff]
        %v2588 = vld [vmem:[%s2537 + $0x190] sm:$0xff]
        %v2589 = vld [vmem:[%s2537 + $0x198] sm:$0xff]
        %v2590 = vld [vmem:[%s2537 + $0x1a0] sm:$0xff]
        %v2591 = vld [vmem:[%s2537 + $0x1a8] sm:$0xff]
        %v2592 = vld [vmem:[%s2537 + $0x1b0] sm:$0xff]
        %v2593 = vld [vmem:[%s2537 + $0x1b8] sm:$0xff]
        %v2594 = vld [vmem:[%s2537 + $0x1c0] sm:$0xff]
        %v2595 = vld [vmem:[%s2537 + $0x1c8] sm:$0xff]
        %v2596 = vld [vmem:[%s2537 + $0x1d0] sm:$0xff]
        %v2597 = vld [vmem:[%s2537 + $0x1d8] sm:$0xff]
        %v2598 = vld [vmem:[%s2537 + $0x1e0] sm:$0xff]
        %v2599 = vld [vmem:[%s2537 + $0x1e8] sm:$0xff]
        %v2600 = vld [vmem:[%s2537 + $0x1f0] sm:$0xff]
        %v2601 = vld [vmem:[%s2537 + $0x1f8] sm:$0xff]
        %v2602 = vld [vmem:[%s2537 + $0x200] sm:$0xff]
        %v2603 = vld [vmem:[%s2537 + $0x208] sm:$0xff]
        %v2604 = vld [vmem:[%s2537 + $0x210] sm:$0xff]
        %v2605 = vld [vmem:[%s2537 + $0x218] sm:$0xff]
        %v2606 = vld [vmem:[%s2537 + $0x220] sm:$0xff]
        %v2607 = vld [vmem:[%s2537 + $0x228] sm:$0xff]
        %v2608 = vld [vmem:[%s2537 + $0x230] sm:$0xff]
        %v2609 = vld [vmem:[%s2537 + $0x238] sm:$0xff]
        %v2610 = vld [vmem:[%s2537 + $0x240] sm:$0xff]
        %v2611 = vld [vmem:[%s2537 + $0x248] sm:$0xff]
        %v2612 = vld [vmem:[%s2537 + $0x250] sm:$0xff]
        %v2613 = vld [vmem:[%s2537 + $0x258] sm:$0xff]
        %v2614 = vld [vmem:[%s2537 + $0x260] sm:$0xff]
        %v2615 = vld [vmem:[%s2537 + $0x268] sm:$0xff]
        %v2616 = vld [vmem:[%s2537 + $0x270] sm:$0xff]
        %v2617 = vld [vmem:[%s2537 + $0x278] sm:$0xff]
        %v2618 = vld [vmem:[%s2537 + $0x280] sm:$0xff]
        %v2619 = vld [vmem:[%s2537 + $0x288] sm:$0xff]
        %v2620 = vld [vmem:[%s2537 + $0x290] sm:$0xff]
        %v2621 = vld [vmem:[%s2537 + $0x298] sm:$0xff]
        %v2622 = vld [vmem:[%s2537 + $0x2a0] sm:$0xff]
        %v2623 = vld [vmem:[%s2537 + $0x2a8] sm:$0xff]
        %v2624 = vld [vmem:[%s2537 + $0x2b0] sm:$0xff]
        %v2625 = vld [vmem:[%s2537 + $0x2b8] sm:$0xff]
        %v2626 = vld [vmem:[%s2537 + $0x2c0] sm:$0xff]
        %v2627 = vld [vmem:[%s2537 + $0x2c8] sm:$0xff]
        %v2628 = vld [vmem:[%s2537 + $0x2d0] sm:$0xff]
        %v2629 = vld [vmem:[%s2537 + $0x2d8] sm:$0xff]
        %v2630 = vld [vmem:[%s2537 + $0x2e0] sm:$0xff]
        %v2631 = vld [vmem:[%s2537 + $0x2e8] sm:$0xff]
        %v2632 = vld [vmem:[%s2537 + $0x2f0] sm:$0xff]
        %v2633 = vld [vmem:[%s2537 + $0x2f8] sm:$0xff]
        %s2634 = scalar_lea.vmem %s3, 1024
        %v2635 = vld [vmem:[%s2634] sm:$0xff]
        %v2636 = vld [vmem:[%s2634 + $0x8] sm:$0xff]
        %v2637 = vld [vmem:[%s2634 + $0x10] sm:$0xff]
        %v2638 = vld [vmem:[%s2634 + $0x18] sm:$0xff]
        %v2639 = vld [vmem:[%s2634 + $0x20] sm:$0xff]
        %v2640 = vld [vmem:[%s2634 + $0x28] sm:$0xff]
        %v2641 = vld [vmem:[%s2634 + $0x30] sm:$0xff]
        %v2642 = vld [vmem:[%s2634 + $0x38] sm:$0xff]
        %v2643 = vld [vmem:[%s2634 + $0x40] sm:$0xff]
        %v2644 = vld [vmem:[%s2634 + $0x48] sm:$0xff]
        %v2645 = vld [vmem:[%s2634 + $0x50] sm:$0xff]
        %v2646 = vld [vmem:[%s2634 + $0x58] sm:$0xff]
        %v2647 = vld [vmem:[%s2634 + $0x60] sm:$0xff]
        %v2648 = vld [vmem:[%s2634 + $0x68] sm:$0xff]
        %v2649 = vld [vmem:[%s2634 + $0x70] sm:$0xff]
        %v2650 = vld [vmem:[%s2634 + $0x78] sm:$0xff]
        %v2651 = vld [vmem:[%s2634 + $0x80] sm:$0xff]
        %v2652 = vld [vmem:[%s2634 + $0x88] sm:$0xff]
        %v2653 = vld [vmem:[%s2634 + $0x90] sm:$0xff]
        %v2654 = vld [vmem:[%s2634 + $0x98] sm:$0xff]
        %v2655 = vld [vmem:[%s2634 + $0xa0] sm:$0xff]
        %v2656 = vld [vmem:[%s2634 + $0xa8] sm:$0xff]
        %v2657 = vld [vmem:[%s2634 + $0xb0] sm:$0xff]
        %v2658 = vld [vmem:[%s2634 + $0xb8] sm:$0xff]
        %v2659 = vld [vmem:[%s2634 + $0xc0] sm:$0xff]
        %v2660 = vld [vmem:[%s2634 + $0xc8] sm:$0xff]
        %v2661 = vld [vmem:[%s2634 + $0xd0] sm:$0xff]
        %v2662 = vld [vmem:[%s2634 + $0xd8] sm:$0xff]
        %v2663 = vld [vmem:[%s2634 + $0xe0] sm:$0xff]
        %v2664 = vld [vmem:[%s2634 + $0xe8] sm:$0xff]
        %v2665 = vld [vmem:[%s2634 + $0xf0] sm:$0xff]
        %v2666 = vld [vmem:[%s2634 + $0xf8] sm:$0xff]
        %v2667 = vld [vmem:[%s2634 + $0x100] sm:$0xff]
        %v2668 = vld [vmem:[%s2634 + $0x108] sm:$0xff]
        %v2669 = vld [vmem:[%s2634 + $0x110] sm:$0xff]
        %v2670 = vld [vmem:[%s2634 + $0x118] sm:$0xff]
        %v2671 = vld [vmem:[%s2634 + $0x120] sm:$0xff]
        %v2672 = vld [vmem:[%s2634 + $0x128] sm:$0xff]
        %v2673 = vld [vmem:[%s2634 + $0x130] sm:$0xff]
        %v2674 = vld [vmem:[%s2634 + $0x138] sm:$0xff]
        %v2675 = vld [vmem:[%s2634 + $0x140] sm:$0xff]
        %v2676 = vld [vmem:[%s2634 + $0x148] sm:$0xff]
        %v2677 = vld [vmem:[%s2634 + $0x150] sm:$0xff]
        %v2678 = vld [vmem:[%s2634 + $0x158] sm:$0xff]
        %v2679 = vld [vmem:[%s2634 + $0x160] sm:$0xff]
        %v2680 = vld [vmem:[%s2634 + $0x168] sm:$0xff]
        %v2681 = vld [vmem:[%s2634 + $0x170] sm:$0xff]
        %v2682 = vld [vmem:[%s2634 + $0x178] sm:$0xff]
        %v2683 = vld [vmem:[%s2634 + $0x180] sm:$0xff]
        %v2684 = vld [vmem:[%s2634 + $0x188] sm:$0xff]
        %v2685 = vld [vmem:[%s2634 + $0x190] sm:$0xff]
        %v2686 = vld [vmem:[%s2634 + $0x198] sm:$0xff]
        %v2687 = vld [vmem:[%s2634 + $0x1a0] sm:$0xff]
        %v2688 = vld [vmem:[%s2634 + $0x1a8] sm:$0xff]
        %v2689 = vld [vmem:[%s2634 + $0x1b0] sm:$0xff]
        %v2690 = vld [vmem:[%s2634 + $0x1b8] sm:$0xff]
        %v2691 = vld [vmem:[%s2634 + $0x1c0] sm:$0xff]
        %v2692 = vld [vmem:[%s2634 + $0x1c8] sm:$0xff]
        %v2693 = vld [vmem:[%s2634 + $0x1d0] sm:$0xff]
        %v2694 = vld [vmem:[%s2634 + $0x1d8] sm:$0xff]
        %v2695 = vld [vmem:[%s2634 + $0x1e0] sm:$0xff]
        %v2696 = vld [vmem:[%s2634 + $0x1e8] sm:$0xff]
        %v2697 = vld [vmem:[%s2634 + $0x1f0] sm:$0xff]
        %v2698 = vld [vmem:[%s2634 + $0x1f8] sm:$0xff]
        %2699 = vmatprep.subr.mxu0 %v2636
        %2700 = vmatpush1.msra.mxu0 %v2635
        %2701 = vmatprep.subr.mxu0 %v2638
        %2702 = vmatpush1.msra.mxu0 %v2637
        %2703 = vmatprep.subr.mxu0 %v2640
        %2704 = vmatpush1.msra.mxu0 %v2639
        %2705 = vmatprep.subr.mxu0 %v2642
        %2706 = vmatpush1.msra.mxu0 %v2641
        %2707 = vmatprep.subr.mxu0 %v2644
        %2708 = vmatpush1.msra.mxu0 %v2643
        %2709 = vmatprep.subr.mxu0 %v2646
        %2710 = vmatpush1.msra.mxu0 %v2645
        %2711 = vmatprep.subr.mxu0 %v2648
        %2712 = vmatpush1.msra.mxu0 %v2647
        %2713 = vmatprep.subr.mxu0 %v2650
        %2714 = vmatpush1.msra.mxu0 %v2649
        %2715 = vmatprep.subr.mxu0 %v2652
        %2716 = vmatpush1.msra.mxu0 %v2651
        %2717 = vmatprep.subr.mxu0 %v2654
        %2718 = vmatpush1.msra.mxu0 %v2653
        %2719 = vmatprep.subr.mxu0 %v2656
        %2720 = vmatpush1.msra.mxu0 %v2655
        %2721 = vmatprep.subr.mxu0 %v2658
        %2722 = vmatpush1.msra.mxu0 %v2657
        %2723 = vmatprep.subr.mxu0 %v2660
        %2724 = vmatpush1.msra.mxu0 %v2659
        %2725 = vmatprep.subr.mxu0 %v2662
        %2726 = vmatpush1.msra.mxu0 %v2661
        %2727 = vmatprep.subr.mxu0 %v2664
        %2728 = vmatpush1.msra.mxu0 %v2663
        %2729 = vmatprep.subr.mxu0 %v2666
        %2730 = vmatpush1.msra.mxu0 %v2665
        %2731 = vmatprep.subr.mxu0 %v2668
        %2732 = vmatpush1.msra.mxu0 %v2667
        %2733 = vmatprep.subr.mxu0 %v2670
        %2734 = vmatpush1.msra.mxu0 %v2669
        %2735 = vmatprep.subr.mxu0 %v2672
        %2736 = vmatpush1.msra.mxu0 %v2671
        %2737 = vmatprep.subr.mxu0 %v2674
        %2738 = vmatpush1.msra.mxu0 %v2673
        %2739 = vmatprep.subr.mxu0 %v2676
        %2740 = vmatpush1.msra.mxu0 %v2675
        %2741 = vmatprep.subr.mxu0 %v2678
        %2742 = vmatpush1.msra.mxu0 %v2677
        %2743 = vmatprep.subr.mxu0 %v2680
        %2744 = vmatpush1.msra.mxu0 %v2679
        %2745 = vmatprep.subr.mxu0 %v2682
        %2746 = vmatpush1.msra.mxu0 %v2681
        %2747 = vmatprep.subr.mxu0 %v2684
        %2748 = vmatpush1.msra.mxu0 %v2683
        %2749 = vmatprep.subr.mxu0 %v2686
        %2750 = vmatpush1.msra.mxu0 %v2685
        %2751 = vmatprep.subr.mxu0 %v2688
        %2752 = vmatpush1.msra.mxu0 %v2687
        %2753 = vmatprep.subr.mxu0 %v2690
        %2754 = vmatpush1.msra.mxu0 %v2689
        %2755 = vmatprep.subr.mxu0 %v2692
        %2756 = vmatpush1.msra.mxu0 %v2691
        %2757 = vmatprep.subr.mxu0 %v2694
        %2758 = vmatpush1.msra.mxu0 %v2693
        %2759 = vmatprep.subr.mxu0 %v2696
        %2760 = vmatpush1.msra.mxu0 %v2695
        %2761 = vmatprep.subr.mxu0 %v2698
        %2762 = vmatpush1.msra.mxu0 %v2697
        %2763 = vmatprep.mubr.f32.mxu0 %v2539
        %2764 = vmatmul.mubr.f32.gmra.mrb[0].mxu0 %v2538
        %v2765 = vpop.f32.mrb[0].mxu0
        %v2766 = vadd.f32 0.0, %v2765
        %v2767 = vpop.f32.mrb[0].mxu0
        %v2768 = vadd.f32 0.0, %v2767
        %2769 = vmatprep.mubr.f32.mxu0 %v2541
        %2770 = vmatmul.mubr.f32.gmra.mrb[0].mxu0 %v2540
        %v2771 = vpop.f32.mrb[0].mxu0
        %v2772 = vadd.f32 0.0, %v2771
        %v2773 = vpop.f32.mrb[0].mxu0
        %v2774 = vadd.f32 0.0, %v2773
        %2775 = vmatprep.mubr.f32.mxu0 %v2543
        %2776 = vmatmul.mubr.f32.gmra.mrb[0].mxu0 %v2542
        %v2777 = vpop.f32.mrb[0].mxu0
        %v2778 = vadd.f32 0.0, %v2777
        %v2779 = vpop.f32.mrb[0].mxu0
        %v2780 = vadd.f32 0.0, %v2779
        %2781 = vmatprep.mubr.f32.mxu0 %v2545
        %2782 = vmatmul.mubr.f32.gmra.mrb[0].mxu0 %v2544
        %v2783 = vpop.f32.mrb[0].mxu0
        %v2784 = vadd.f32 0.0, %v2783
        %v2785 = vpop.f32.mrb[0].mxu0
        %v2786 = vadd.f32 0.0, %v2785
        %2787 = vmatprep.mubr.f32.mxu0 %v2547
        %2788 = vmatmul.mubr.f32.gmra.mrb[0].mxu0 %v2546
        %v2789 = vpop.f32.mrb[0].mxu0
        %v2790 = vadd.f32 0.0, %v2789
        %v2791 = vpop.f32.mrb[0].mxu0
        %v2792 = vadd.f32 0.0, %v2791
        %2793 = vmatprep.mubr.f32.mxu0 %v2549
        %2794 = vmatmul.mubr.f32.gmra.mrb[0].mxu0 %v2548
        %v2795 = vpop.f32.mrb[0].mxu0
        %v2796 = vadd.f32 0.0, %v2795
        %v2797 = vpop.f32.mrb[0].mxu0
        %v2798 = vadd.f32 0.0, %v2797
        %2799 = vmatprep.mubr.f32.mxu0 %v2551
        %2800 = vmatmul.mubr.f32.gmra.mrb[0].mxu0 %v2550
        %v2801 = vpop.f32.mrb[0].mxu0
        %v2802 = vadd.f32 0.0, %v2801
        %v2803 = vpop.f32.mrb[0].mxu0
        %v2804 = vadd.f32 0.0, %v2803
        %2805 = vmatprep.mubr.f32.mxu0 %v2553
        %2806 = vmatmul.mubr.f32.gmra.mrb[0].mxu0 %v2552
        %v2807 = vpop.f32.mrb[0].mxu0
        %v2808 = vadd.f32 0.0, %v2807
        %v2809 = vpop.f32.mrb[0].mxu0
        %v2810 = vadd.f32 0.0, %v2809
        %2811 = vmatprep.mubr.f32.mxu0 %v2555
        %2812 = vmatmul.mubr.f32.gmra.mrb[0].mxu0 %v2554
        %v2813 = vpop.f32.mrb[0].mxu0
        %v2814 = vadd.f32 0.0, %v2813
        %v2815 = vpop.f32.mrb[0].mxu0
        %v2816 = vadd.f32 0.0, %v2815
        %2817 = vmatprep.mubr.f32.mxu0 %v2557
        %2818 = vmatmul.mubr.f32.gmra.mrb[0].mxu0 %v2556
        %v2819 = vpop.f32.mrb[0].mxu0
        %v2820 = vadd.f32 0.0, %v2819
        %v2821 = vpop.f32.mrb[0].mxu0
        %v2822 = vadd.f32 0.0, %v2821
        %2823 = vmatprep.mubr.f32.mxu0 %v2559
        %2824 = vmatmul.mubr.f32.gmra.mrb[0].mxu0 %v2558
        %v2825 = vpop.f32.mrb[0].mxu0
        %v2826 = vadd.f32 0.0, %v2825
        %v2827 = vpop.f32.mrb[0].mxu0
        %v2828 = vadd.f32 0.0, %v2827
        %2829 = vmatprep.mubr.f32.mxu0 %v2561
        %2830 = vmatmul.mubr.f32.gmra.mrb[0].mxu0 %v2560
        %v2831 = vpop.f32.mrb[0].mxu0
        %v2832 = vadd.f32 0.0, %v2831
        %v2833 = vpop.f32.mrb[0].mxu0
        %v2834 = vadd.f32 0.0, %v2833
        %2835 = vmatprep.mubr.f32.mxu0 %v2563
        %2836 = vmatmul.mubr.f32.gmra.mrb[0].mxu0 %v2562
        %v2837 = vpop.f32.mrb[0].mxu0
        %v2838 = vadd.f32 0.0, %v2837
        %v2839 = vpop.f32.mrb[0].mxu0
        %v2840 = vadd.f32 0.0, %v2839
        %2841 = vmatprep.mubr.f32.mxu0 %v2565
        %2842 = vmatmul.mubr.f32.gmra.mrb[0].mxu0 %v2564
        %v2843 = vpop.f32.mrb[0].mxu0
        %v2844 = vadd.f32 0.0, %v2843
        %v2845 = vpop.f32.mrb[0].mxu0
        %v2846 = vadd.f32 0.0, %v2845
        %2847 = vmatprep.mubr.f32.mxu0 %v2567
        %2848 = vmatmul.mubr.f32.gmra.mrb[0].mxu0 %v2566
        %v2849 = vpop.f32.mrb[0].mxu0
        %v2850 = vadd.f32 0.0, %v2849
        %v2851 = vpop.f32.mrb[0].mxu0
        %v2852 = vadd.f32 0.0, %v2851
        %2853 = vmatprep.mubr.f32.mxu0 %v2569
        %2854 = vmatmul.mubr.f32.gmra.mrb[0].mxu0 %v2568
        %v2855 = vpop.f32.mrb[0].mxu0
        %v2856 = vadd.f32 0.0, %v2855
        %v2857 = vpop.f32.mrb[0].mxu0
        %v2858 = vadd.f32 0.0, %v2857
        %2859 = vmatprep.mubr.f32.mxu0 %v2571
        %2860 = vmatmul.mubr.f32.gmra.mrb[0].mxu0 %v2570
        %v2861 = vpop.f32.mrb[0].mxu0
        %v2862 = vadd.f32 0.0, %v2861
        %v2863 = vpop.f32.mrb[0].mxu0
        %v2864 = vadd.f32 0.0, %v2863
        %2865 = vmatprep.mubr.f32.mxu0 %v2573
        %2866 = vmatmul.mubr.f32.gmra.mrb[0].mxu0 %v2572
        %v2867 = vpop.f32.mrb[0].mxu0
        %v2868 = vadd.f32 0.0, %v2867
        %v2869 = vpop.f32.mrb[0].mxu0
        %v2870 = vadd.f32 0.0, %v2869
        %2871 = vmatprep.mubr.f32.mxu0 %v2575
        %2872 = vmatmul.mubr.f32.gmra.mrb[0].mxu0 %v2574
        %v2873 = vpop.f32.mrb[0].mxu0
        %v2874 = vadd.f32 0.0, %v2873
        %v2875 = vpop.f32.mrb[0].mxu0
        %v2876 = vadd.f32 0.0, %v2875
        %2877 = vmatprep.mubr.f32.mxu0 %v2577
        %2878 = vmatmul.mubr.f32.gmra.mrb[0].mxu0 %v2576
        %v2879 = vpop.f32.mrb[0].mxu0
        %v2880 = vadd.f32 0.0, %v2879
        %v2881 = vpop.f32.mrb[0].mxu0
        %v2882 = vadd.f32 0.0, %v2881
        %2883 = vmatprep.mubr.f32.mxu0 %v2579
        %2884 = vmatmul.mubr.f32.gmra.mrb[0].mxu0 %v2578
        %v2885 = vpop.f32.mrb[0].mxu0
        %v2886 = vadd.f32 0.0, %v2885
        %v2887 = vpop.f32.mrb[0].mxu0
        %v2888 = vadd.f32 0.0, %v2887
        %2889 = vmatprep.mubr.f32.mxu0 %v2581
        %2890 = vmatmul.mubr.f32.gmra.mrb[0].mxu0 %v2580
        %v2891 = vpop.f32.mrb[0].mxu0
        %v2892 = vadd.f32 0.0, %v2891
        %v2893 = vpop.f32.mrb[0].mxu0
        %v2894 = vadd.f32 0.0, %v2893
        %2895 = vmatprep.mubr.f32.mxu0 %v2583
        %2896 = vmatmul.mubr.f32.gmra.mrb[0].mxu0 %v2582
        %v2897 = vpop.f32.mrb[0].mxu0
        %v2898 = vadd.f32 0.0, %v2897
        %v2899 = vpop.f32.mrb[0].mxu0
        %v2900 = vadd.f32 0.0, %v2899
        %2901 = vmatprep.mubr.f32.mxu0 %v2585
        %2902 = vmatmul.mubr.f32.gmra.mrb[0].mxu0 %v2584
        %v2903 = vpop.f32.mrb[0].mxu0
        %v2904 = vadd.f32 0.0, %v2903
        %v2905 = vpop.f32.mrb[0].mxu0
        %v2906 = vadd.f32 0.0, %v2905
        %2907 = vmatprep.mubr.f32.mxu0 %v2587
        %2908 = vmatmul.mubr.f32.gmra.mrb[0].mxu0 %v2586
        %v2909 = vpop.f32.mrb[0].mxu0
        %v2910 = vadd.f32 0.0, %v2909
        %v2911 = vpop.f32.mrb[0].mxu0
        %v2912 = vadd.f32 0.0, %v2911
        %2913 = vmatprep.mubr.f32.mxu0 %v2589
        %2914 = vmatmul.mubr.f32.gmra.mrb[0].mxu0 %v2588
        %v2915 = vpop.f32.mrb[0].mxu0
        %v2916 = vadd.f32 0.0, %v2915
        %v2917 = vpop.f32.mrb[0].mxu0
        %v2918 = vadd.f32 0.0, %v2917
        %2919 = vmatprep.mubr.f32.mxu0 %v2591
        %2920 = vmatmul.mubr.f32.gmra.mrb[0].mxu0 %v2590
        %v2921 = vpop.f32.mrb[0].mxu0
        %v2922 = vadd.f32 0.0, %v2921
        %v2923 = vpop.f32.mrb[0].mxu0
        %v2924 = vadd.f32 0.0, %v2923
        %2925 = vmatprep.mubr.f32.mxu0 %v2593
        %2926 = vmatmul.mubr.f32.gmra.mrb[0].mxu0 %v2592
        %v2927 = vpop.f32.mrb[0].mxu0
        %v2928 = vadd.f32 0.0, %v2927
        %v2929 = vpop.f32.mrb[0].mxu0
        %v2930 = vadd.f32 0.0, %v2929
        %2931 = vmatprep.mubr.f32.mxu0 %v2595
        %2932 = vmatmul.mubr.f32.gmra.mrb[0].mxu0 %v2594
        %v2933 = vpop.f32.mrb[0].mxu0
        %v2934 = vadd.f32 0.0, %v2933
        %v2935 = vpop.f32.mrb[0].mxu0
        %v2936 = vadd.f32 0.0, %v2935
        %2937 = vmatprep.mubr.f32.mxu0 %v2597
        %2938 = vmatmul.mubr.f32.gmra.mrb[0].mxu0 %v2596
        %v2939 = vpop.f32.mrb[0].mxu0
        %v2940 = vadd.f32 0.0, %v2939
        %v2941 = vpop.f32.mrb[0].mxu0
        %v2942 = vadd.f32 0.0, %v2941
        %2943 = vmatprep.mubr.f32.mxu0 %v2599
        %2944 = vmatmul.mubr.f32.gmra.mrb[0].mxu0 %v2598
        %v2945 = vpop.f32.mrb[0].mxu0
        %v2946 = vadd.f32 0.0, %v2945
        %v2947 = vpop.f32.mrb[0].mxu0
        %v2948 = vadd.f32 0.0, %v2947
        %2949 = vmatprep.mubr.f32.mxu0 %v2601
        %2950 = vmatmul.mubr.f32.gmra.mrb[0].mxu0 %v2600
        %v2951 = vpop.f32.mrb[0].mxu0
        %v2952 = vadd.f32 0.0, %v2951
        %v2953 = vpop.f32.mrb[0].mxu0
        %v2954 = vadd.f32 0.0, %v2953
        %2955 = vmatprep.mubr.f32.mxu0 %v2603
        %2956 = vmatmul.mubr.f32.gmra.mrb[0].mxu0 %v2602
        %v2957 = vpop.f32.mrb[0].mxu0
        %v2958 = vadd.f32 0.0, %v2957
        %v2959 = vpop.f32.mrb[0].mxu0
        %v2960 = vadd.f32 0.0, %v2959
        %2961 = vmatprep.mubr.f32.mxu0 %v2605
        %2962 = vmatmul.mubr.f32.gmra.mrb[0].mxu0 %v2604
        %v2963 = vpop.f32.mrb[0].mxu0
        %v2964 = vadd.f32 0.0, %v2963
        %v2965 = vpop.f32.mrb[0].mxu0
        %v2966 = vadd.f32 0.0, %v2965
        %2967 = vmatprep.mubr.f32.mxu0 %v2607
        %2968 = vmatmul.mubr.f32.gmra.mrb[0].mxu0 %v2606
        %v2969 = vpop.f32.mrb[0].mxu0
        %v2970 = vadd.f32 0.0, %v2969
        %v2971 = vpop.f32.mrb[0].mxu0
        %v2972 = vadd.f32 0.0, %v2971
        %2973 = vmatprep.mubr.f32.mxu0 %v2609
        %2974 = vmatmul.mubr.f32.gmra.mrb[0].mxu0 %v2608
        %v2975 = vpop.f32.mrb[0].mxu0
        %v2976 = vadd.f32 0.0, %v2975
        %v2977 = vpop.f32.mrb[0].mxu0
        %v2978 = vadd.f32 0.0, %v2977
        %2979 = vmatprep.mubr.f32.mxu0 %v2611
        %2980 = vmatmul.mubr.f32.gmra.mrb[0].mxu0 %v2610
        %v2981 = vpop.f32.mrb[0].mxu0
        %v2982 = vadd.f32 0.0, %v2981
        %v2983 = vpop.f32.mrb[0].mxu0
        %v2984 = vadd.f32 0.0, %v2983
        %2985 = vmatprep.mubr.f32.mxu0 %v2613
        %2986 = vmatmul.mubr.f32.gmra.mrb[0].mxu0 %v2612
        %v2987 = vpop.f32.mrb[0].mxu0
        %v2988 = vadd.f32 0.0, %v2987
        %v2989 = vpop.f32.mrb[0].mxu0
        %v2990 = vadd.f32 0.0, %v2989
        %2991 = vmatprep.mubr.f32.mxu0 %v2615
        %2992 = vmatmul.mubr.f32.gmra.mrb[0].mxu0 %v2614
        %v2993 = vpop.f32.mrb[0].mxu0
        %v2994 = vadd.f32 0.0, %v2993
        %v2995 = vpop.f32.mrb[0].mxu0
        %v2996 = vadd.f32 0.0, %v2995
        %2997 = vmatprep.mubr.f32.mxu0 %v2617
        %2998 = vmatmul.mubr.f32.gmra.mrb[0].mxu0 %v2616
        %v2999 = vpop.f32.mrb[0].mxu0
        %v3000 = vadd.f32 0.0, %v2999
        %v3001 = vpop.f32.mrb[0].mxu0
        %v3002 = vadd.f32 0.0, %v3001
        %3003 = vmatprep.mubr.f32.mxu0 %v2619
        %3004 = vmatmul.mubr.f32.gmra.mrb[0].mxu0 %v2618
        %v3005 = vpop.f32.mrb[0].mxu0
        %v3006 = vadd.f32 0.0, %v3005
        %v3007 = vpop.f32.mrb[0].mxu0
        %v3008 = vadd.f32 0.0, %v3007
        %3009 = vmatprep.mubr.f32.mxu0 %v2621
        %3010 = vmatmul.mubr.f32.gmra.mrb[0].mxu0 %v2620
        %v3011 = vpop.f32.mrb[0].mxu0
        %v3012 = vadd.f32 0.0, %v3011
        %v3013 = vpop.f32.mrb[0].mxu0
        %v3014 = vadd.f32 0.0, %v3013
        %3015 = vmatprep.mubr.f32.mxu0 %v2623
        %3016 = vmatmul.mubr.f32.gmra.mrb[0].mxu0 %v2622
        %v3017 = vpop.f32.mrb[0].mxu0
        %v3018 = vadd.f32 0.0, %v3017
        %v3019 = vpop.f32.mrb[0].mxu0
        %v3020 = vadd.f32 0.0, %v3019
        %3021 = vmatprep.mubr.f32.mxu0 %v2625
        %3022 = vmatmul.mubr.f32.gmra.mrb[0].mxu0 %v2624
        %v3023 = vpop.f32.mrb[0].mxu0
        %v3024 = vadd.f32 0.0, %v3023
        %v3025 = vpop.f32.mrb[0].mxu0
        %v3026 = vadd.f32 0.0, %v3025
        %3027 = vmatprep.mubr.f32.mxu0 %v2627
        %3028 = vmatmul.mubr.f32.gmra.mrb[0].mxu0 %v2626
        %v3029 = vpop.f32.mrb[0].mxu0
        %v3030 = vadd.f32 0.0, %v3029
        %v3031 = vpop.f32.mrb[0].mxu0
        %v3032 = vadd.f32 0.0, %v3031
        %3033 = vmatprep.mubr.f32.mxu0 %v2629
        %3034 = vmatmul.mubr.f32.gmra.mrb[0].mxu0 %v2628
        %v3035 = vpop.f32.mrb[0].mxu0
        %v3036 = vadd.f32 0.0, %v3035
        %v3037 = vpop.f32.mrb[0].mxu0
        %v3038 = vadd.f32 0.0, %v3037
        %3039 = vmatprep.mubr.f32.mxu0 %v2631
        %3040 = vmatmul.mubr.f32.gmra.mrb[0].mxu0 %v2630
        %v3041 = vpop.f32.mrb[0].mxu0
        %v3042 = vadd.f32 0.0, %v3041
        %v3043 = vpop.f32.mrb[0].mxu0
        %v3044 = vadd.f32 0.0, %v3043
        %3045 = vmatprep.mubr.f32.mxu0 %v2633
        %3046 = vmatmul.mubr.f32.gmra.mrb[0].mxu0 %v2632
        %v3047 = vpop.f32.mrb[0].mxu0
        %v3048 = vadd.f32 0.0, %v3047
        %v3049 = vpop.f32.mrb[0].mxu0
        %v3050 = vadd.f32 0.0, %v3049
        %3051 = vdwg.mxu0
        %v3052 = vadd.f32 %v2441, %v2766
        %v3053 = vadd.f32 %v2442, %v2768
        %v3054 = vadd.f32 %v2443, %v2772
        %v3055 = vadd.f32 %v2444, %v2774
        %v3056 = vadd.f32 %v2445, %v2778
        %v3057 = vadd.f32 %v2446, %v2780
        %v3058 = vadd.f32 %v2447, %v2784
        %v3059 = vadd.f32 %v2448, %v2786
        %v3060 = vadd.f32 %v2449, %v2790
        %v3061 = vadd.f32 %v2450, %v2792
        %v3062 = vadd.f32 %v2451, %v2796
        %v3063 = vadd.f32 %v2452, %v2798
        %v3064 = vadd.f32 %v2453, %v2802
        %v3065 = vadd.f32 %v2454, %v2804
        %v3066 = vadd.f32 %v2455, %v2808
        %v3067 = vadd.f32 %v2456, %v2810
        %v3068 = vadd.f32 %v2457, %v2814
        %v3069 = vadd.f32 %v2458, %v2816
        %v3070 = vadd.f32 %v2459, %v2820
        %v3071 = vadd.f32 %v2460, %v2822
        %v3072 = vadd.f32 %v2461, %v2826
        %v3073 = vadd.f32 %v2462, %v2828
        %v3074 = vadd.f32 %v2463, %v2832
        %v3075 = vadd.f32 %v2464, %v2834
        %v3076 = vadd.f32 %v2465, %v2838
        %v3077 = vadd.f32 %v2466, %v2840
        %v3078 = vadd.f32 %v2467, %v2844
        %v3079 = vadd.f32 %v2468, %v2846
        %v3080 = vadd.f32 %v2469, %v2850
        %v3081 = vadd.f32 %v2470, %v2852
        %v3082 = vadd.f32 %v2471, %v2856
        %v3083 = vadd.f32 %v2472, %v2858
        %v3084 = vadd.f32 %v2473, %v2862
        %v3085 = vadd.f32 %v2474, %v2864
        %v3086 = vadd.f32 %v2475, %v2868
        %v3087 = vadd.f32 %v2476, %v2870
        %v3088 = vadd.f32 %v2477, %v2874
        %v3089 = vadd.f32 %v2478, %v2876
        %v3090 = vadd.f32 %v2479, %v2880
        %v3091 = vadd.f32 %v2480, %v2882
        %v3092 = vadd.f32 %v2481, %v2886
        %v3093 = vadd.f32 %v2482, %v2888
        %v3094 = vadd.f32 %v2483, %v2892
        %v3095 = vadd.f32 %v2484, %v2894
        %v3096 = vadd.f32 %v2485, %v2898
        %v3097 = vadd.f32 %v2486, %v2900
        %v3098 = vadd.f32 %v2487, %v2904
        %v3099 = vadd.f32 %v2488, %v2906
        %v3100 = vadd.f32 %v2489, %v2910
        %v3101 = vadd.f32 %v2490, %v2912
        %v3102 = vadd.f32 %v2491, %v2916
        %v3103 = vadd.f32 %v2492, %v2918
        %v3104 = vadd.f32 %v2493, %v2922
        %v3105 = vadd.f32 %v2494, %v2924
        %v3106 = vadd.f32 %v2495, %v2928
        %v3107 = vadd.f32 %v2496, %v2930
        %v3108 = vadd.f32 %v2497, %v2934
        %v3109 = vadd.f32 %v2498, %v2936
        %v3110 = vadd.f32 %v2499, %v2940
        %v3111 = vadd.f32 %v2500, %v2942
        %v3112 = vadd.f32 %v2501, %v2946
        %v3113 = vadd.f32 %v2502, %v2948
        %v3114 = vadd.f32 %v2503, %v2952
        %v3115 = vadd.f32 %v2504, %v2954
        %v3116 = vadd.f32 %v2505, %v2958
        %v3117 = vadd.f32 %v2506, %v2960
        %v3118 = vadd.f32 %v2507, %v2964
        %v3119 = vadd.f32 %v2508, %v2966
        %v3120 = vadd.f32 %v2509, %v2970
        %v3121 = vadd.f32 %v2510, %v2972
        %v3122 = vadd.f32 %v2511, %v2976
        %v3123 = vadd.f32 %v2512, %v2978
        %v3124 = vadd.f32 %v2513, %v2982
        %v3125 = vadd.f32 %v2514, %v2984
        %v3126 = vadd.f32 %v2515, %v2988
        %v3127 = vadd.f32 %v2516, %v2990
        %v3128 = vadd.f32 %v2517, %v2994
        %v3129 = vadd.f32 %v2518, %v2996
        %v3130 = vadd.f32 %v2519, %v3000
        %v3131 = vadd.f32 %v2520, %v3002
        %v3132 = vadd.f32 %v2521, %v3006
        %v3133 = vadd.f32 %v2522, %v3008
        %v3134 = vadd.f32 %v2523, %v3012
        %v3135 = vadd.f32 %v2524, %v3014
        %v3136 = vadd.f32 %v2525, %v3018
        %v3137 = vadd.f32 %v2526, %v3020
        %v3138 = vadd.f32 %v2527, %v3024
        %v3139 = vadd.f32 %v2528, %v3026
        %v3140 = vadd.f32 %v2529, %v3030
        %v3141 = vadd.f32 %v2530, %v3032
        %v3142 = vadd.f32 %v2531, %v3036
        %v3143 = vadd.f32 %v2532, %v3038
        %v3144 = vadd.f32 %v2533, %v3042
        %v3145 = vadd.f32 %v2534, %v3044
        %v3146 = vadd.f32 %v2535, %v3048
        %v3147 = vadd.f32 %v2536, %v3050
        %v3148 = vmax.f32 %v3052, 0.0
        %v3149 = vmax.f32 %v3053, 0.0
        %v3150 = vmax.f32 %v3054, 0.0
        %v3151 = vmax.f32 %v3055, 0.0
        %v3152 = vmax.f32 %v3056, 0.0
        %v3153 = vmax.f32 %v3057, 0.0
        %v3154 = vmax.f32 %v3058, 0.0
        %v3155 = vmax.f32 %v3059, 0.0
        %v3156 = vmax.f32 %v3060, 0.0
        %v3157 = vmax.f32 %v3061, 0.0
        %v3158 = vmax.f32 %v3062, 0.0
        %v3159 = vmax.f32 %v3063, 0.0
        %v3160 = vmax.f32 %v3064, 0.0
        %v3161 = vmax.f32 %v3065, 0.0
        %v3162 = vmax.f32 %v3066, 0.0
        %v3163 = vmax.f32 %v3067, 0.0
        %v3164 = vmax.f32 %v3068, 0.0
        %v3165 = vmax.f32 %v3069, 0.0
        %v3166 = vmax.f32 %v3070, 0.0
        %v3167 = vmax.f32 %v3071, 0.0
        %v3168 = vmax.f32 %v3072, 0.0
        %v3169 = vmax.f32 %v3073, 0.0
        %v3170 = vmax.f32 %v3074, 0.0
        %v3171 = vmax.f32 %v3075, 0.0
        %v3172 = vmax.f32 %v3076, 0.0
        %v3173 = vmax.f32 %v3077, 0.0
        %v3174 = vmax.f32 %v3078, 0.0
        %v3175 = vmax.f32 %v3079, 0.0
        %v3176 = vmax.f32 %v3080, 0.0
        %v3177 = vmax.f32 %v3081, 0.0
        %v3178 = vmax.f32 %v3082, 0.0
        %v3179 = vmax.f32 %v3083, 0.0
        %v3180 = vmax.f32 %v3084, 0.0
        %v3181 = vmax.f32 %v3085, 0.0
        %v3182 = vmax.f32 %v3086, 0.0
        %v3183 = vmax.f32 %v3087, 0.0
        %v3184 = vmax.f32 %v3088, 0.0
        %v3185 = vmax.f32 %v3089, 0.0
        %v3186 = vmax.f32 %v3090, 0.0
        %v3187 = vmax.f32 %v3091, 0.0
        %v3188 = vmax.f32 %v3092, 0.0
        %v3189 = vmax.f32 %v3093, 0.0
        %v3190 = vmax.f32 %v3094, 0.0
        %v3191 = vmax.f32 %v3095, 0.0
        %v3192 = vmax.f32 %v3096, 0.0
        %v3193 = vmax.f32 %v3097, 0.0
        %v3194 = vmax.f32 %v3098, 0.0
        %v3195 = vmax.f32 %v3099, 0.0
        %v3196 = vmax.f32 %v3100, 0.0
        %v3197 = vmax.f32 %v3101, 0.0
        %v3198 = vmax.f32 %v3102, 0.0
        %v3199 = vmax.f32 %v3103, 0.0
        %v3200 = vmax.f32 %v3104, 0.0
        %v3201 = vmax.f32 %v3105, 0.0
        %v3202 = vmax.f32 %v3106, 0.0
        %v3203 = vmax.f32 %v3107, 0.0
        %v3204 = vmax.f32 %v3108, 0.0
        %v3205 = vmax.f32 %v3109, 0.0
        %v3206 = vmax.f32 %v3110, 0.0
        %v3207 = vmax.f32 %v3111, 0.0
        %v3208 = vmax.f32 %v3112, 0.0
        %v3209 = vmax.f32 %v3113, 0.0
        %v3210 = vmax.f32 %v3114, 0.0
        %v3211 = vmax.f32 %v3115, 0.0
        %v3212 = vmax.f32 %v3116, 0.0
        %v3213 = vmax.f32 %v3117, 0.0
        %v3214 = vmax.f32 %v3118, 0.0
        %v3215 = vmax.f32 %v3119, 0.0
        %v3216 = vmax.f32 %v3120, 0.0
        %v3217 = vmax.f32 %v3121, 0.0
        %v3218 = vmax.f32 %v3122, 0.0
        %v3219 = vmax.f32 %v3123, 0.0
        %v3220 = vmax.f32 %v3124, 0.0
        %v3221 = vmax.f32 %v3125, 0.0
        %v3222 = vmax.f32 %v3126, 0.0
        %v3223 = vmax.f32 %v3127, 0.0
        %v3224 = vmax.f32 %v3128, 0.0
        %v3225 = vmax.f32 %v3129, 0.0
        %v3226 = vmax.f32 %v3130, 0.0
        %v3227 = vmax.f32 %v3131, 0.0
        %v3228 = vmax.f32 %v3132, 0.0
        %v3229 = vmax.f32 %v3133, 0.0
        %v3230 = vmax.f32 %v3134, 0.0
        %v3231 = vmax.f32 %v3135, 0.0
        %v3232 = vmax.f32 %v3136, 0.0
        %v3233 = vmax.f32 %v3137, 0.0
        %v3234 = vmax.f32 %v3138, 0.0
        %v3235 = vmax.f32 %v3139, 0.0
        %v3236 = vmax.f32 %v3140, 0.0
        %v3237 = vmax.f32 %v3141, 0.0
        %v3238 = vmax.f32 %v3142, 0.0
        %v3239 = vmax.f32 %v3143, 0.0
        %v3240 = vmax.f32 %v3144, 0.0
        %v3241 = vmax.f32 %v3145, 0.0
        %v3242 = vmax.f32 %v3146, 0.0
        %v3243 = vmax.f32 %v3147, 0.0
        %v3244 = vld [vmem:[%s5] sm:$0xff]
        %v3245 = vld [vmem:[%s5 + $0x8] sm:$0xff]
        %v3246 = vld [vmem:[%s5 + $0x10] sm:$0xff]
        %v3247 = vld [vmem:[%s5 + $0x18] sm:$0xff]
        %v3248 = vld [vmem:[%s5 + $0x20] sm:$0xff]
        %v3249 = vld [vmem:[%s5 + $0x28] sm:$0xff]
        %v3250 = vld [vmem:[%s5 + $0x30] sm:$0xff]
        %v3251 = vld [vmem:[%s5 + $0x38] sm:$0xff]
        %v3252 = vld [vmem:[%s5 + $0x40] sm:$0xff]
        %v3253 = vld [vmem:[%s5 + $0x48] sm:$0xff]
        %v3254 = vld [vmem:[%s5 + $0x50] sm:$0xff]
        %v3255 = vld [vmem:[%s5 + $0x58] sm:$0xff]
        %v3256 = vld [vmem:[%s5 + $0x60] sm:$0xff]
        %v3257 = vld [vmem:[%s5 + $0x68] sm:$0xff]
        %v3258 = vld [vmem:[%s5 + $0x70] sm:$0xff]
        %v3259 = vld [vmem:[%s5 + $0x78] sm:$0xff]
        %v3260 = vld [vmem:[%s5 + $0x80] sm:$0xff]
        %v3261 = vld [vmem:[%s5 + $0x88] sm:$0xff]
        %v3262 = vld [vmem:[%s5 + $0x90] sm:$0xff]
        %v3263 = vld [vmem:[%s5 + $0x98] sm:$0xff]
        %v3264 = vld [vmem:[%s5 + $0xa0] sm:$0xff]
        %v3265 = vld [vmem:[%s5 + $0xa8] sm:$0xff]
        %v3266 = vld [vmem:[%s5 + $0xb0] sm:$0xff]
        %v3267 = vld [vmem:[%s5 + $0xb8] sm:$0xff]
        %v3268 = vld [vmem:[%s5 + $0xc0] sm:$0xff]
        %v3269 = vld [vmem:[%s5 + $0xc8] sm:$0xff]
        %v3270 = vld [vmem:[%s5 + $0xd0] sm:$0xff]
        %v3271 = vld [vmem:[%s5 + $0xd8] sm:$0xff]
        %v3272 = vld [vmem:[%s5 + $0xe0] sm:$0xff]
        %v3273 = vld [vmem:[%s5 + $0xe8] sm:$0xff]
        %v3274 = vld [vmem:[%s5 + $0xf0] sm:$0xff]
        %v3275 = vld [vmem:[%s5 + $0xf8] sm:$0xff]
        %v3276 = vld [vmem:[%s5 + $0x100] sm:$0xff]
        %v3277 = vld [vmem:[%s5 + $0x108] sm:$0xff]
        %v3278 = vld [vmem:[%s5 + $0x110] sm:$0xff]
        %v3279 = vld [vmem:[%s5 + $0x118] sm:$0xff]
        %v3280 = vld [vmem:[%s5 + $0x120] sm:$0xff]
        %v3281 = vld [vmem:[%s5 + $0x128] sm:$0xff]
        %v3282 = vld [vmem:[%s5 + $0x130] sm:$0xff]
        %v3283 = vld [vmem:[%s5 + $0x138] sm:$0xff]
        %v3284 = vld [vmem:[%s5 + $0x140] sm:$0xff]
        %v3285 = vld [vmem:[%s5 + $0x148] sm:$0xff]
        %v3286 = vld [vmem:[%s5 + $0x150] sm:$0xff]
        %v3287 = vld [vmem:[%s5 + $0x158] sm:$0xff]
        %v3288 = vld [vmem:[%s5 + $0x160] sm:$0xff]
        %v3289 = vld [vmem:[%s5 + $0x168] sm:$0xff]
        %v3290 = vld [vmem:[%s5 + $0x170] sm:$0xff]
        %v3291 = vld [vmem:[%s5 + $0x178] sm:$0xff]
        %v3292 = vld [vmem:[%s5 + $0x180] sm:$0xff]
        %v3293 = vld [vmem:[%s5 + $0x188] sm:$0xff]
        %v3294 = vld [vmem:[%s5 + $0x190] sm:$0xff]
        %v3295 = vld [vmem:[%s5 + $0x198] sm:$0xff]
        %v3296 = vld [vmem:[%s5 + $0x1a0] sm:$0xff]
        %v3297 = vld [vmem:[%s5 + $0x1a8] sm:$0xff]
        %v3298 = vld [vmem:[%s5 + $0x1b0] sm:$0xff]
        %v3299 = vld [vmem:[%s5 + $0x1b8] sm:$0xff]
        %v3300 = vld [vmem:[%s5 + $0x1c0] sm:$0xff]
        %v3301 = vld [vmem:[%s5 + $0x1c8] sm:$0xff]
        %v3302 = vld [vmem:[%s5 + $0x1d0] sm:$0xff]
        %v3303 = vld [vmem:[%s5 + $0x1d8] sm:$0xff]
        %v3304 = vld [vmem:[%s5 + $0x1e0] sm:$0xff]
        %v3305 = vld [vmem:[%s5 + $0x1e8] sm:$0xff]
        %v3306 = vld [vmem:[%s5 + $0x1f0] sm:$0xff]
        %v3307 = vld [vmem:[%s5 + $0x1f8] sm:$0xff]
        %v3308 = vld [vmem:[%s5 + $0x200] sm:$0xff]
        %v3309 = vld [vmem:[%s5 + $0x208] sm:$0xff]
        %v3310 = vld [vmem:[%s5 + $0x210] sm:$0xff]
        %v3311 = vld [vmem:[%s5 + $0x218] sm:$0xff]
        %v3312 = vld [vmem:[%s5 + $0x220] sm:$0xff]
        %v3313 = vld [vmem:[%s5 + $0x228] sm:$0xff]
        %v3314 = vld [vmem:[%s5 + $0x230] sm:$0xff]
        %v3315 = vld [vmem:[%s5 + $0x238] sm:$0xff]
        %v3316 = vld [vmem:[%s5 + $0x240] sm:$0xff]
        %v3317 = vld [vmem:[%s5 + $0x248] sm:$0xff]
        %v3318 = vld [vmem:[%s5 + $0x250] sm:$0xff]
        %v3319 = vld [vmem:[%s5 + $0x258] sm:$0xff]
        %v3320 = vld [vmem:[%s5 + $0x260] sm:$0xff]
        %v3321 = vld [vmem:[%s5 + $0x268] sm:$0xff]
        %v3322 = vld [vmem:[%s5 + $0x270] sm:$0xff]
        %v3323 = vld [vmem:[%s5 + $0x278] sm:$0xff]
        %v3324 = vld [vmem:[%s5 + $0x280] sm:$0xff]
        %v3325 = vld [vmem:[%s5 + $0x288] sm:$0xff]
        %v3326 = vld [vmem:[%s5 + $0x290] sm:$0xff]
        %v3327 = vld [vmem:[%s5 + $0x298] sm:$0xff]
        %v3328 = vld [vmem:[%s5 + $0x2a0] sm:$0xff]
        %v3329 = vld [vmem:[%s5 + $0x2a8] sm:$0xff]
        %v3330 = vld [vmem:[%s5 + $0x2b0] sm:$0xff]
        %v3331 = vld [vmem:[%s5 + $0x2b8] sm:$0xff]
        %v3332 = vld [vmem:[%s5 + $0x2c0] sm:$0xff]
        %v3333 = vld [vmem:[%s5 + $0x2c8] sm:$0xff]
        %v3334 = vld [vmem:[%s5 + $0x2d0] sm:$0xff]
        %v3335 = vld [vmem:[%s5 + $0x2d8] sm:$0xff]
        %v3336 = vld [vmem:[%s5 + $0x2e0] sm:$0xff]
        %v3337 = vld [vmem:[%s5 + $0x2e8] sm:$0xff]
        %v3338 = vld [vmem:[%s5 + $0x2f0] sm:$0xff]
        %v3339 = vld [vmem:[%s5 + $0x2f8] sm:$0xff]
        %v3340 = vld [vmem:[%s5 + $0x300] sm:$0xff]
        %v3341 = vld [vmem:[%s5 + $0x308] sm:$0xff]
        %v3342 = vld [vmem:[%s5 + $0x310] sm:$0xff]
        %v3343 = vld [vmem:[%s5 + $0x318] sm:$0xff]
        %v3344 = vld [vmem:[%s5 + $0x320] sm:$0xff]
        %v3345 = vld [vmem:[%s5 + $0x328] sm:$0xff]
        %v3346 = vld [vmem:[%s5 + $0x330] sm:$0xff]
        %v3347 = vld [vmem:[%s5 + $0x338] sm:$0xff]
        %v3348 = vld [vmem:[%s5 + $0x340] sm:$0xff]
        %v3349 = vld [vmem:[%s5 + $0x348] sm:$0xff]
        %v3350 = vld [vmem:[%s5 + $0x350] sm:$0xff]
        %v3351 = vld [vmem:[%s5 + $0x358] sm:$0xff]
        %v3352 = vld [vmem:[%s5 + $0x360] sm:$0xff]
        %v3353 = vld [vmem:[%s5 + $0x368] sm:$0xff]
        %v3354 = vld [vmem:[%s5 + $0x370] sm:$0xff]
        %v3355 = vld [vmem:[%s5 + $0x378] sm:$0xff]
        %v3356 = vld [vmem:[%s5 + $0x380] sm:$0xff]
        %v3357 = vld [vmem:[%s5 + $0x388] sm:$0xff]
        %v3358 = vld [vmem:[%s5 + $0x390] sm:$0xff]
        %v3359 = vld [vmem:[%s5 + $0x398] sm:$0xff]
        %v3360 = vld [vmem:[%s5 + $0x3a0] sm:$0xff]
        %v3361 = vld [vmem:[%s5 + $0x3a8] sm:$0xff]
        %v3362 = vld [vmem:[%s5 + $0x3b0] sm:$0xff]
        %v3363 = vld [vmem:[%s5 + $0x3b8] sm:$0xff]
        %v3364 = vld [vmem:[%s5 + $0x3c0] sm:$0xff]
        %v3365 = vld [vmem:[%s5 + $0x3c8] sm:$0xff]
        %v3366 = vld [vmem:[%s5 + $0x3d0] sm:$0xff]
        %v3367 = vld [vmem:[%s5 + $0x3d8] sm:$0xff]
        %v3368 = vld [vmem:[%s5 + $0x3e0] sm:$0xff]
        %v3369 = vld [vmem:[%s5 + $0x3e8] sm:$0xff]
        %v3370 = vld [vmem:[%s5 + $0x3f0] sm:$0xff]
        %v3371 = vld [vmem:[%s5 + $0x3f8] sm:$0xff]
        %v3372 = vld [vmem:[%s6] sm:$0xf]
        %v3374 = vlaneseq
        %v3375 = vshrl.u32 %v3374, 7
        %v3376 = vsub.s32 0, %v3375
        %v3377 = vrot.slane %v3372, %v3376
        %v3378 = vlaneseq
        %v3379 = vshrl.u32 %v3378, 7
        %v3380 = vsub.s32 1, %v3379
        %v3381 = vrot.slane %v3372, %v3380
        %v3382 = vlaneseq
        %v3383 = vshrl.u32 %v3382, 7
        %v3384 = vsub.s32 2, %v3383
        %v3385 = vrot.slane %v3372, %v3384
        %v3386 = vlaneseq
        %v3387 = vshrl.u32 %v3386, 7
        %v3388 = vsub.s32 3, %v3387
        %v3389 = vrot.slane %v3372, %v3388
        %3394 = vmatprep.subr.mxu0 %v3245
        %3395 = vmatpush1.msra.mxu0 %v3244
        %3396 = vmatprep.subr.mxu0 %v3249
        %3397 = vmatpush1.msra.mxu0 %v3248
        %3398 = vmatprep.subr.mxu0 %v3253
        %3399 = vmatpush1.msra.mxu0 %v3252
        %3400 = vmatprep.subr.mxu0 %v3257
        %3401 = vmatpush1.msra.mxu0 %v3256
        %3402 = vmatprep.subr.mxu0 %v3261
        %3403 = vmatpush1.msra.mxu0 %v3260
        %3404 = vmatprep.subr.mxu0 %v3265
        %3405 = vmatpush1.msra.mxu0 %v3264
        %3406 = vmatprep.subr.mxu0 %v3269
        %3407 = vmatpush1.msra.mxu0 %v3268
        %3408 = vmatprep.subr.mxu0 %v3273
        %3409 = vmatpush1.msra.mxu0 %v3272
        %3410 = vmatprep.subr.mxu0 %v3277
        %3411 = vmatpush1.msra.mxu0 %v3276
        %3412 = vmatprep.subr.mxu0 %v3281
        %3413 = vmatpush1.msra.mxu0 %v3280
        %3414 = vmatprep.subr.mxu0 %v3285
        %3415 = vmatpush1.msra.mxu0 %v3284
        %3416 = vmatprep.subr.mxu0 %v3289
        %3417 = vmatpush1.msra.mxu0 %v3288
        %3418 = vmatprep.subr.mxu0 %v3293
        %3419 = vmatpush1.msra.mxu0 %v3292
        %3420 = vmatprep.subr.mxu0 %v3297
        %3421 = vmatpush1.msra.mxu0 %v3296
        %3422 = vmatprep.subr.mxu0 %v3301
        %3423 = vmatpush1.msra.mxu0 %v3300
        %3424 = vmatprep.subr.mxu0 %v3305
        %3425 = vmatpush1.msra.mxu0 %v3304
        %3426 = vmatprep.subr.mxu0 %v3309
        %3427 = vmatpush1.msra.mxu0 %v3308
        %3428 = vmatprep.subr.mxu0 %v3313
        %3429 = vmatpush1.msra.mxu0 %v3312
        %3430 = vmatprep.subr.mxu0 %v3317
        %3431 = vmatpush1.msra.mxu0 %v3316
        %3432 = vmatprep.subr.mxu0 %v3321
        %3433 = vmatpush1.msra.mxu0 %v3320
        %3434 = vmatprep.subr.mxu0 %v3325
        %3435 = vmatpush1.msra.mxu0 %v3324
        %3436 = vmatprep.subr.mxu0 %v3329
        %3437 = vmatpush1.msra.mxu0 %v3328
        %3438 = vmatprep.subr.mxu0 %v3333
        %3439 = vmatpush1.msra.mxu0 %v3332
        %3440 = vmatprep.subr.mxu0 %v3337
        %3441 = vmatpush1.msra.mxu0 %v3336
        %3442 = vmatprep.subr.mxu0 %v3341
        %3443 = vmatpush1.msra.mxu0 %v3340
        %3444 = vmatprep.subr.mxu0 %v3345
        %3445 = vmatpush1.msra.mxu0 %v3344
        %3446 = vmatprep.subr.mxu0 %v3349
        %3447 = vmatpush1.msra.mxu0 %v3348
        %3448 = vmatprep.subr.mxu0 %v3353
        %3449 = vmatpush1.msra.mxu0 %v3352
        %3450 = vmatprep.subr.mxu0 %v3357
        %3451 = vmatpush1.msra.mxu0 %v3356
        %3452 = vmatprep.subr.mxu0 %v3361
        %3453 = vmatpush1.msra.mxu0 %v3360
        %3454 = vmatprep.subr.mxu0 %v3365
        %3455 = vmatpush1.msra.mxu0 %v3364
        %3456 = vmatprep.subr.mxu0 %v3369
        %3457 = vmatpush1.msra.mxu0 %v3368
        %3458 = vmatprep.mubr.f32.mxu0 %v3149
        %3459 = vmatmul.mubr.f32.gmra.mrb[0].mxu0 %v3148
        %v3460 = vpop.f32.mrb[0].mxu0
        %v3461 = vadd.f32 %v3377, %v3460
        %v3462 = vpop.f32.mrb[0].mxu0
        %v3463 = vadd.f32 %v3381, %v3462
        %3464 = vmatprep.mubr.f32.mxu0 %v3151
        %3465 = vmatmul.mubr.f32.gmra.mrb[0].mxu0 %v3150
        %v3466 = vpop.f32.mrb[0].mxu0
        %v3467 = vadd.f32 %v3377, %v3466
        %v3468 = vpop.f32.mrb[0].mxu0
        %v3469 = vadd.f32 %v3381, %v3468
        %3470 = vmatprep.mubr.f32.mxu0 %v3153
        %3471 = vmatmul.mubr.f32.gmra.mrb[0].mxu0 %v3152
        %v3472 = vpop.f32.mrb[0].mxu0
        %v3473 = vadd.f32 %v3377, %v3472
        %v3474 = vpop.f32.mrb[0].mxu0
        %v3475 = vadd.f32 %v3381, %v3474
        %3476 = vmatprep.mubr.f32.mxu0 %v3155
        %3477 = vmatmul.mubr.f32.gmra.mrb[0].mxu0 %v3154
        %v3478 = vpop.f32.mrb[0].mxu0
        %v3479 = vadd.f32 %v3377, %v3478
        %v3480 = vpop.f32.mrb[0].mxu0
        %v3481 = vadd.f32 %v3381, %v3480
        %3482 = vmatprep.mubr.f32.mxu0 %v3157
        %3483 = vmatmul.mubr.f32.gmra.mrb[0].mxu0 %v3156
        %v3484 = vpop.f32.mrb[0].mxu0
        %v3485 = vadd.f32 %v3377, %v3484
        %v3486 = vpop.f32.mrb[0].mxu0
        %v3487 = vadd.f32 %v3381, %v3486
        %3488 = vmatprep.mubr.f32.mxu0 %v3159
        %3489 = vmatmul.mubr.f32.gmra.mrb[0].mxu0 %v3158
        %v3490 = vpop.f32.mrb[0].mxu0
        %v3491 = vadd.f32 %v3377, %v3490
        %v3492 = vpop.f32.mrb[0].mxu0
        %v3493 = vadd.f32 %v3381, %v3492
        %3494 = vmatprep.mubr.f32.mxu0 %v3161
        %3495 = vmatmul.mubr.f32.gmra.mrb[0].mxu0 %v3160
        %v3496 = vpop.f32.mrb[0].mxu0
        %v3497 = vadd.f32 %v3377, %v3496
        %v3498 = vpop.f32.mrb[0].mxu0
        %v3499 = vadd.f32 %v3381, %v3498
        %3500 = vmatprep.mubr.f32.mxu0 %v3163
        %3501 = vmatmul.mubr.f32.gmra.mrb[0].mxu0 %v3162
        %v3502 = vpop.f32.mrb[0].mxu0
        %v3503 = vadd.f32 %v3377, %v3502
        %v3504 = vpop.f32.mrb[0].mxu0
        %v3505 = vadd.f32 %v3381, %v3504
        %3506 = vmatprep.mubr.f32.mxu0 %v3165
        %3507 = vmatmul.mubr.f32.gmra.mrb[0].mxu0 %v3164
        %v3508 = vpop.f32.mrb[0].mxu0
        %v3509 = vadd.f32 %v3377, %v3508
        %v3510 = vpop.f32.mrb[0].mxu0
        %v3511 = vadd.f32 %v3381, %v3510
        %3512 = vmatprep.mubr.f32.mxu0 %v3167
        %3513 = vmatmul.mubr.f32.gmra.mrb[0].mxu0 %v3166
        %v3514 = vpop.f32.mrb[0].mxu0
        %v3515 = vadd.f32 %v3377, %v3514
        %v3516 = vpop.f32.mrb[0].mxu0
        %v3517 = vadd.f32 %v3381, %v3516
        %3518 = vmatprep.mubr.f32.mxu0 %v3169
        %3519 = vmatmul.mubr.f32.gmra.mrb[0].mxu0 %v3168
        %v3520 = vpop.f32.mrb[0].mxu0
        %v3521 = vadd.f32 %v3377, %v3520
        %v3522 = vpop.f32.mrb[0].mxu0
        %v3523 = vadd.f32 %v3381, %v3522
        %3524 = vmatprep.mubr.f32.mxu0 %v3171
        %3525 = vmatmul.mubr.f32.gmra.mrb[0].mxu0 %v3170
        %v3526 = vpop.f32.mrb[0].mxu0
        %v3527 = vadd.f32 %v3377, %v3526
        %v3528 = vpop.f32.mrb[0].mxu0
        %v3529 = vadd.f32 %v3381, %v3528
        %3530 = vmatprep.mubr.f32.mxu0 %v3173
        %3531 = vmatmul.mubr.f32.gmra.mrb[0].mxu0 %v3172
        %v3532 = vpop.f32.mrb[0].mxu0
        %v3533 = vadd.f32 %v3377, %v3532
        %v3534 = vpop.f32.mrb[0].mxu0
        %v3535 = vadd.f32 %v3381, %v3534
        %3536 = vmatprep.mubr.f32.mxu0 %v3175
        %3537 = vmatmul.mubr.f32.gmra.mrb[0].mxu0 %v3174
        %v3538 = vpop.f32.mrb[0].mxu0
        %v3539 = vadd.f32 %v3377, %v3538
        %v3540 = vpop.f32.mrb[0].mxu0
        %v3541 = vadd.f32 %v3381, %v3540
        %3542 = vmatprep.mubr.f32.mxu0 %v3177
        %3543 = vmatmul.mubr.f32.gmra.mrb[0].mxu0 %v3176
        %v3544 = vpop.f32.mrb[0].mxu0
        %v3545 = vadd.f32 %v3377, %v3544
        %v3546 = vpop.f32.mrb[0].mxu0
        %v3547 = vadd.f32 %v3381, %v3546
        %3548 = vmatprep.mubr.f32.mxu0 %v3179
        %3549 = vmatmul.mubr.f32.gmra.mrb[0].mxu0 %v3178
        %v3550 = vpop.f32.mrb[0].mxu0
        %v3551 = vadd.f32 %v3377, %v3550
        %v3552 = vpop.f32.mrb[0].mxu0
        %v3553 = vadd.f32 %v3381, %v3552
        %3554 = vmatprep.mubr.f32.mxu0 %v3181
        %3555 = vmatmul.mubr.f32.gmra.mrb[0].mxu0 %v3180
        %v3556 = vpop.f32.mrb[0].mxu0
        %v3557 = vadd.f32 %v3377, %v3556
        %v3558 = vpop.f32.mrb[0].mxu0
        %v3559 = vadd.f32 %v3381, %v3558
        %3560 = vmatprep.mubr.f32.mxu0 %v3183
        %3561 = vmatmul.mubr.f32.gmra.mrb[0].mxu0 %v3182
        %v3562 = vpop.f32.mrb[0].mxu0
        %v3563 = vadd.f32 %v3377, %v3562
        %v3564 = vpop.f32.mrb[0].mxu0
        %v3565 = vadd.f32 %v3381, %v3564
        %3566 = vmatprep.mubr.f32.mxu0 %v3185
        %3567 = vmatmul.mubr.f32.gmra.mrb[0].mxu0 %v3184
        %v3568 = vpop.f32.mrb[0].mxu0
        %v3569 = vadd.f32 %v3377, %v3568
        %v3570 = vpop.f32.mrb[0].mxu0
        %v3571 = vadd.f32 %v3381, %v3570
        %3572 = vmatprep.mubr.f32.mxu0 %v3187
        %3573 = vmatmul.mubr.f32.gmra.mrb[0].mxu0 %v3186
        %v3574 = vpop.f32.mrb[0].mxu0
        %v3575 = vadd.f32 %v3377, %v3574
        %v3576 = vpop.f32.mrb[0].mxu0
        %v3577 = vadd.f32 %v3381, %v3576
        %3578 = vmatprep.mubr.f32.mxu0 %v3189
        %3579 = vmatmul.mubr.f32.gmra.mrb[0].mxu0 %v3188
        %v3580 = vpop.f32.mrb[0].mxu0
        %v3581 = vadd.f32 %v3377, %v3580
        %v3582 = vpop.f32.mrb[0].mxu0
        %v3583 = vadd.f32 %v3381, %v3582
        %3584 = vmatprep.mubr.f32.mxu0 %v3191
        %3585 = vmatmul.mubr.f32.gmra.mrb[0].mxu0 %v3190
        %v3586 = vpop.f32.mrb[0].mxu0
        %v3587 = vadd.f32 %v3377, %v3586
        %v3588 = vpop.f32.mrb[0].mxu0
        %v3589 = vadd.f32 %v3381, %v3588
        %3590 = vmatprep.mubr.f32.mxu0 %v3193
        %3591 = vmatmul.mubr.f32.gmra.mrb[0].mxu0 %v3192
        %v3592 = vpop.f32.mrb[0].mxu0
        %v3593 = vadd.f32 %v3377, %v3592
        %v3594 = vpop.f32.mrb[0].mxu0
        %v3595 = vadd.f32 %v3381, %v3594
        %3596 = vmatprep.mubr.f32.mxu0 %v3195
        %3597 = vmatmul.mubr.f32.gmra.mrb[0].mxu0 %v3194
        %v3598 = vpop.f32.mrb[0].mxu0
        %v3599 = vadd.f32 %v3377, %v3598
        %v3600 = vpop.f32.mrb[0].mxu0
        %v3601 = vadd.f32 %v3381, %v3600
        %3602 = vmatprep.mubr.f32.mxu0 %v3197
        %3603 = vmatmul.mubr.f32.gmra.mrb[0].mxu0 %v3196
        %v3604 = vpop.f32.mrb[0].mxu0
        %v3605 = vadd.f32 %v3377, %v3604
        %v3606 = vpop.f32.mrb[0].mxu0
        %v3607 = vadd.f32 %v3381, %v3606
        %3608 = vmatprep.mubr.f32.mxu0 %v3199
        %3609 = vmatmul.mubr.f32.gmra.mrb[0].mxu0 %v3198
        %v3610 = vpop.f32.mrb[0].mxu0
        %v3611 = vadd.f32 %v3377, %v3610
        %v3612 = vpop.f32.mrb[0].mxu0
        %v3613 = vadd.f32 %v3381, %v3612
        %3614 = vmatprep.mubr.f32.mxu0 %v3201
        %3615 = vmatmul.mubr.f32.gmra.mrb[0].mxu0 %v3200
        %v3616 = vpop.f32.mrb[0].mxu0
        %v3617 = vadd.f32 %v3377, %v3616
        %v3618 = vpop.f32.mrb[0].mxu0
        %v3619 = vadd.f32 %v3381, %v3618
        %3620 = vmatprep.mubr.f32.mxu0 %v3203
        %3621 = vmatmul.mubr.f32.gmra.mrb[0].mxu0 %v3202
        %v3622 = vpop.f32.mrb[0].mxu0
        %v3623 = vadd.f32 %v3377, %v3622
        %v3624 = vpop.f32.mrb[0].mxu0
        %v3625 = vadd.f32 %v3381, %v3624
        %3626 = vmatprep.mubr.f32.mxu0 %v3205
        %3627 = vmatmul.mubr.f32.gmra.mrb[0].mxu0 %v3204
        %v3628 = vpop.f32.mrb[0].mxu0
        %v3629 = vadd.f32 %v3377, %v3628
        %v3630 = vpop.f32.mrb[0].mxu0
        %v3631 = vadd.f32 %v3381, %v3630
        %3632 = vmatprep.mubr.f32.mxu0 %v3207
        %3633 = vmatmul.mubr.f32.gmra.mrb[0].mxu0 %v3206
        %v3634 = vpop.f32.mrb[0].mxu0
        %v3635 = vadd.f32 %v3377, %v3634
        %v3636 = vpop.f32.mrb[0].mxu0
        %v3637 = vadd.f32 %v3381, %v3636
        %3638 = vmatprep.mubr.f32.mxu0 %v3209
        %3639 = vmatmul.mubr.f32.gmra.mrb[0].mxu0 %v3208
        %v3640 = vpop.f32.mrb[0].mxu0
        %v3641 = vadd.f32 %v3377, %v3640
        %v3642 = vpop.f32.mrb[0].mxu0
        %v3643 = vadd.f32 %v3381, %v3642
        %3644 = vmatprep.mubr.f32.mxu0 %v3211
        %3645 = vmatmul.mubr.f32.gmra.mrb[0].mxu0 %v3210
        %v3646 = vpop.f32.mrb[0].mxu0
        %v3647 = vadd.f32 %v3377, %v3646
        %v3648 = vpop.f32.mrb[0].mxu0
        %v3649 = vadd.f32 %v3381, %v3648
        %3650 = vmatprep.mubr.f32.mxu0 %v3213
        %3651 = vmatmul.mubr.f32.gmra.mrb[0].mxu0 %v3212
        %v3652 = vpop.f32.mrb[0].mxu0
        %v3653 = vadd.f32 %v3377, %v3652
        %v3654 = vpop.f32.mrb[0].mxu0
        %v3655 = vadd.f32 %v3381, %v3654
        %3656 = vmatprep.mubr.f32.mxu0 %v3215
        %3657 = vmatmul.mubr.f32.gmra.mrb[0].mxu0 %v3214
        %v3658 = vpop.f32.mrb[0].mxu0
        %v3659 = vadd.f32 %v3377, %v3658
        %v3660 = vpop.f32.mrb[0].mxu0
        %v3661 = vadd.f32 %v3381, %v3660
        %3662 = vmatprep.mubr.f32.mxu0 %v3217
        %3663 = vmatmul.mubr.f32.gmra.mrb[0].mxu0 %v3216
        %v3664 = vpop.f32.mrb[0].mxu0
        %v3665 = vadd.f32 %v3377, %v3664
        %v3666 = vpop.f32.mrb[0].mxu0
        %v3667 = vadd.f32 %v3381, %v3666
        %3668 = vmatprep.mubr.f32.mxu0 %v3219
        %3669 = vmatmul.mubr.f32.gmra.mrb[0].mxu0 %v3218
        %v3670 = vpop.f32.mrb[0].mxu0
        %v3671 = vadd.f32 %v3377, %v3670
        %v3672 = vpop.f32.mrb[0].mxu0
        %v3673 = vadd.f32 %v3381, %v3672
        %3674 = vmatprep.mubr.f32.mxu0 %v3221
        %3675 = vmatmul.mubr.f32.gmra.mrb[0].mxu0 %v3220
        %v3676 = vpop.f32.mrb[0].mxu0
        %v3677 = vadd.f32 %v3377, %v3676
        %v3678 = vpop.f32.mrb[0].mxu0
        %v3679 = vadd.f32 %v3381, %v3678
        %3680 = vmatprep.mubr.f32.mxu0 %v3223
        %3681 = vmatmul.mubr.f32.gmra.mrb[0].mxu0 %v3222
        %v3682 = vpop.f32.mrb[0].mxu0
        %v3683 = vadd.f32 %v3377, %v3682
        %v3684 = vpop.f32.mrb[0].mxu0
        %v3685 = vadd.f32 %v3381, %v3684
        %3686 = vmatprep.mubr.f32.mxu0 %v3225
        %3687 = vmatmul.mubr.f32.gmra.mrb[0].mxu0 %v3224
        %v3688 = vpop.f32.mrb[0].mxu0
        %v3689 = vadd.f32 %v3377, %v3688
        %v3690 = vpop.f32.mrb[0].mxu0
        %v3691 = vadd.f32 %v3381, %v3690
        %3692 = vmatprep.mubr.f32.mxu0 %v3227
        %3693 = vmatmul.mubr.f32.gmra.mrb[0].mxu0 %v3226
        %v3694 = vpop.f32.mrb[0].mxu0
        %v3695 = vadd.f32 %v3377, %v3694
        %v3696 = vpop.f32.mrb[0].mxu0
        %v3697 = vadd.f32 %v3381, %v3696
        %3698 = vmatprep.mubr.f32.mxu0 %v3229
        %3699 = vmatmul.mubr.f32.gmra.mrb[0].mxu0 %v3228
        %v3700 = vpop.f32.mrb[0].mxu0
        %v3701 = vadd.f32 %v3377, %v3700
        %v3702 = vpop.f32.mrb[0].mxu0
        %v3703 = vadd.f32 %v3381, %v3702
        %3704 = vmatprep.mubr.f32.mxu0 %v3231
        %3705 = vmatmul.mubr.f32.gmra.mrb[0].mxu0 %v3230
        %v3706 = vpop.f32.mrb[0].mxu0
        %v3707 = vadd.f32 %v3377, %v3706
        %v3708 = vpop.f32.mrb[0].mxu0
        %v3709 = vadd.f32 %v3381, %v3708
        %3710 = vmatprep.mubr.f32.mxu0 %v3233
        %3711 = vmatmul.mubr.f32.gmra.mrb[0].mxu0 %v3232
        %v3712 = vpop.f32.mrb[0].mxu0
        %v3713 = vadd.f32 %v3377, %v3712
        %v3714 = vpop.f32.mrb[0].mxu0
        %v3715 = vadd.f32 %v3381, %v3714
        %3716 = vmatprep.mubr.f32.mxu0 %v3235
        %3717 = vmatmul.mubr.f32.gmra.mrb[0].mxu0 %v3234
        %v3718 = vpop.f32.mrb[0].mxu0
        %v3719 = vadd.f32 %v3377, %v3718
        %v3720 = vpop.f32.mrb[0].mxu0
        %v3721 = vadd.f32 %v3381, %v3720
        %3722 = vmatprep.mubr.f32.mxu0 %v3237
        %3723 = vmatmul.mubr.f32.gmra.mrb[0].mxu0 %v3236
        %v3724 = vpop.f32.mrb[0].mxu0
        %v3725 = vadd.f32 %v3377, %v3724
        %v3726 = vpop.f32.mrb[0].mxu0
        %v3727 = vadd.f32 %v3381, %v3726
        %3728 = vmatprep.mubr.f32.mxu0 %v3239
        %3729 = vmatmul.mubr.f32.gmra.mrb[0].mxu0 %v3238
        %v3730 = vpop.f32.mrb[0].mxu0
        %v3731 = vadd.f32 %v3377, %v3730
        %v3732 = vpop.f32.mrb[0].mxu0
        %v3733 = vadd.f32 %v3381, %v3732
        %3734 = vmatprep.mubr.f32.mxu0 %v3241
        %3735 = vmatmul.mubr.f32.gmra.mrb[0].mxu0 %v3240
        %v3736 = vpop.f32.mrb[0].mxu0
        %v3737 = vadd.f32 %v3377, %v3736
        %v3738 = vpop.f32.mrb[0].mxu0
        %v3739 = vadd.f32 %v3381, %v3738
        %3740 = vmatprep.mubr.f32.mxu0 %v3243
        %3741 = vmatmul.mubr.f32.gmra.mrb[0].mxu0 %v3242
        %v3742 = vpop.f32.mrb[0].mxu0
        %v3743 = vadd.f32 %v3377, %v3742
        %v3744 = vpop.f32.mrb[0].mxu0
        %v3745 = vadd.f32 %v3381, %v3744
        %3746 = vdwg.mxu0
        %3747 = vmatprep.subr.mxu0 %v3247
        %3748 = vmatpush1.msra.mxu0 %v3246
        %3749 = vmatprep.subr.mxu0 %v3251
        %3750 = vmatpush1.msra.mxu0 %v3250
        %3751 = vmatprep.subr.mxu0 %v3255
        %3752 = vmatpush1.msra.mxu0 %v3254
        %3753 = vmatprep.subr.mxu0 %v3259
        %3754 = vmatpush1.msra.mxu0 %v3258
        %3755 = vmatprep.subr.mxu0 %v3263
        %3756 = vmatpush1.msra.mxu0 %v3262
        %3757 = vmatprep.subr.mxu0 %v3267
        %3758 = vmatpush1.msra.mxu0 %v3266
        %3759 = vmatprep.subr.mxu0 %v3271
        %3760 = vmatpush1.msra.mxu0 %v3270
        %3761 = vmatprep.subr.mxu0 %v3275
        %3762 = vmatpush1.msra.mxu0 %v3274
        %3763 = vmatprep.subr.mxu0 %v3279
        %3764 = vmatpush1.msra.mxu0 %v3278
        %3765 = vmatprep.subr.mxu0 %v3283
        %3766 = vmatpush1.msra.mxu0 %v3282
        %3767 = vmatprep.subr.mxu0 %v3287
        %3768 = vmatpush1.msra.mxu0 %v3286
        %3769 = vmatprep.subr.mxu0 %v3291
        %3770 = vmatpush1.msra.mxu0 %v3290
        %3771 = vmatprep.subr.mxu0 %v3295
        %3772 = vmatpush1.msra.mxu0 %v3294
        %3773 = vmatprep.subr.mxu0 %v3299
        %3774 = vmatpush1.msra.mxu0 %v3298
        %3775 = vmatprep.subr.mxu0 %v3303
        %3776 = vmatpush1.msra.mxu0 %v3302
        %3777 = vmatprep.subr.mxu0 %v3307
        %3778 = vmatpush1.msra.mxu0 %v3306
        %3779 = vmatprep.subr.mxu0 %v3311
        %3780 = vmatpush1.msra.mxu0 %v3310
        %3781 = vmatprep.subr.mxu0 %v3315
        %3782 = vmatpush1.msra.mxu0 %v3314
        %3783 = vmatprep.subr.mxu0 %v3319
        %3784 = vmatpush1.msra.mxu0 %v3318
        %3785 = vmatprep.subr.mxu0 %v3323
        %3786 = vmatpush1.msra.mxu0 %v3322
        %3787 = vmatprep.subr.mxu0 %v3327
        %3788 = vmatpush1.msra.mxu0 %v3326
        %3789 = vmatprep.subr.mxu0 %v3331
        %3790 = vmatpush1.msra.mxu0 %v3330
        %3791 = vmatprep.subr.mxu0 %v3335
        %3792 = vmatpush1.msra.mxu0 %v3334
        %3793 = vmatprep.subr.mxu0 %v3339
        %3794 = vmatpush1.msra.mxu0 %v3338
        %3795 = vmatprep.subr.mxu0 %v3343
        %3796 = vmatpush1.msra.mxu0 %v3342
        %3797 = vmatprep.subr.mxu0 %v3347
        %3798 = vmatpush1.msra.mxu0 %v3346
        %3799 = vmatprep.subr.mxu0 %v3351
        %3800 = vmatpush1.msra.mxu0 %v3350
        %3801 = vmatprep.subr.mxu0 %v3355
        %3802 = vmatpush1.msra.mxu0 %v3354
        %3803 = vmatprep.subr.mxu0 %v3359
        %3804 = vmatpush1.msra.mxu0 %v3358
        %3805 = vmatprep.subr.mxu0 %v3363
        %3806 = vmatpush1.msra.mxu0 %v3362
        %3807 = vmatprep.subr.mxu0 %v3367
        %3808 = vmatpush1.msra.mxu0 %v3366
        %3809 = vmatprep.subr.mxu0 %v3371
        %3810 = vmatpush1.msra.mxu0 %v3370
        %3811 = vmatprep.mubr.f32.mxu0 %v3149
        %3812 = vmatmul.mubr.f32.gmra.mrb[0].mxu0 %v3148
        %v3813 = vpop.f32.mrb[0].mxu0
        %v3814 = vadd.f32 %v3385, %v3813
        %v3815 = vpop.f32.mrb[0].mxu0
        %v3816 = vadd.f32 %v3389, %v3815
        %3817 = vmatprep.mubr.f32.mxu0 %v3151
        %3818 = vmatmul.mubr.f32.gmra.mrb[0].mxu0 %v3150
        %v3819 = vpop.f32.mrb[0].mxu0
        %v3820 = vadd.f32 %v3385, %v3819
        %v3821 = vpop.f32.mrb[0].mxu0
        %v3822 = vadd.f32 %v3389, %v3821
        %3823 = vmatprep.mubr.f32.mxu0 %v3153
        %3824 = vmatmul.mubr.f32.gmra.mrb[0].mxu0 %v3152
        %v3825 = vpop.f32.mrb[0].mxu0
        %v3826 = vadd.f32 %v3385, %v3825
        %v3827 = vpop.f32.mrb[0].mxu0
        %v3828 = vadd.f32 %v3389, %v3827
        %3829 = vmatprep.mubr.f32.mxu0 %v3155
        %3830 = vmatmul.mubr.f32.gmra.mrb[0].mxu0 %v3154
        %v3831 = vpop.f32.mrb[0].mxu0
        %v3832 = vadd.f32 %v3385, %v3831
        %v3833 = vpop.f32.mrb[0].mxu0
        %v3834 = vadd.f32 %v3389, %v3833
        %3835 = vmatprep.mubr.f32.mxu0 %v3157
        %3836 = vmatmul.mubr.f32.gmra.mrb[0].mxu0 %v3156
        %v3837 = vpop.f32.mrb[0].mxu0
        %v3838 = vadd.f32 %v3385, %v3837
        %v3839 = vpop.f32.mrb[0].mxu0
        %v3840 = vadd.f32 %v3389, %v3839
        %3841 = vmatprep.mubr.f32.mxu0 %v3159
        %3842 = vmatmul.mubr.f32.gmra.mrb[0].mxu0 %v3158
        %v3843 = vpop.f32.mrb[0].mxu0
        %v3844 = vadd.f32 %v3385, %v3843
        %v3845 = vpop.f32.mrb[0].mxu0
        %v3846 = vadd.f32 %v3389, %v3845
        %3847 = vmatprep.mubr.f32.mxu0 %v3161
        %3848 = vmatmul.mubr.f32.gmra.mrb[0].mxu0 %v3160
        %v3849 = vpop.f32.mrb[0].mxu0
        %v3850 = vadd.f32 %v3385, %v3849
        %v3851 = vpop.f32.mrb[0].mxu0
        %v3852 = vadd.f32 %v3389, %v3851
        %3853 = vmatprep.mubr.f32.mxu0 %v3163
        %3854 = vmatmul.mubr.f32.gmra.mrb[0].mxu0 %v3162
        %v3855 = vpop.f32.mrb[0].mxu0
        %v3856 = vadd.f32 %v3385, %v3855
        %v3857 = vpop.f32.mrb[0].mxu0
        %v3858 = vadd.f32 %v3389, %v3857
        %3859 = vmatprep.mubr.f32.mxu0 %v3165
        %3860 = vmatmul.mubr.f32.gmra.mrb[0].mxu0 %v3164
        %v3861 = vpop.f32.mrb[0].mxu0
        %v3862 = vadd.f32 %v3385, %v3861
        %v3863 = vpop.f32.mrb[0].mxu0
        %v3864 = vadd.f32 %v3389, %v3863
        %3865 = vmatprep.mubr.f32.mxu0 %v3167
        %3866 = vmatmul.mubr.f32.gmra.mrb[0].mxu0 %v3166
        %v3867 = vpop.f32.mrb[0].mxu0
        %v3868 = vadd.f32 %v3385, %v3867
        %v3869 = vpop.f32.mrb[0].mxu0
        %v3870 = vadd.f32 %v3389, %v3869
        %3871 = vmatprep.mubr.f32.mxu0 %v3169
        %3872 = vmatmul.mubr.f32.gmra.mrb[0].mxu0 %v3168
        %v3873 = vpop.f32.mrb[0].mxu0
        %v3874 = vadd.f32 %v3385, %v3873
        %v3875 = vpop.f32.mrb[0].mxu0
        %v3876 = vadd.f32 %v3389, %v3875
        %3877 = vmatprep.mubr.f32.mxu0 %v3171
        %3878 = vmatmul.mubr.f32.gmra.mrb[0].mxu0 %v3170
        %v3879 = vpop.f32.mrb[0].mxu0
        %v3880 = vadd.f32 %v3385, %v3879
        %v3881 = vpop.f32.mrb[0].mxu0
        %v3882 = vadd.f32 %v3389, %v3881
        %3883 = vmatprep.mubr.f32.mxu0 %v3173
        %3884 = vmatmul.mubr.f32.gmra.mrb[0].mxu0 %v3172
        %v3885 = vpop.f32.mrb[0].mxu0
        %v3886 = vadd.f32 %v3385, %v3885
        %v3887 = vpop.f32.mrb[0].mxu0
        %v3888 = vadd.f32 %v3389, %v3887
        %3889 = vmatprep.mubr.f32.mxu0 %v3175
        %3890 = vmatmul.mubr.f32.gmra.mrb[0].mxu0 %v3174
        %v3891 = vpop.f32.mrb[0].mxu0
        %v3892 = vadd.f32 %v3385, %v3891
        %v3893 = vpop.f32.mrb[0].mxu0
        %v3894 = vadd.f32 %v3389, %v3893
        %3895 = vmatprep.mubr.f32.mxu0 %v3177
        %3896 = vmatmul.mubr.f32.gmra.mrb[0].mxu0 %v3176
        %v3897 = vpop.f32.mrb[0].mxu0
        %v3898 = vadd.f32 %v3385, %v3897
        %v3899 = vpop.f32.mrb[0].mxu0
        %v3900 = vadd.f32 %v3389, %v3899
        %3901 = vmatprep.mubr.f32.mxu0 %v3179
        %3902 = vmatmul.mubr.f32.gmra.mrb[0].mxu0 %v3178
        %v3903 = vpop.f32.mrb[0].mxu0
        %v3904 = vadd.f32 %v3385, %v3903
        %v3905 = vpop.f32.mrb[0].mxu0
        %v3906 = vadd.f32 %v3389, %v3905
        %3907 = vmatprep.mubr.f32.mxu0 %v3181
        %3908 = vmatmul.mubr.f32.gmra.mrb[0].mxu0 %v3180
        %v3909 = vpop.f32.mrb[0].mxu0
        %v3910 = vadd.f32 %v3385, %v3909
        %v3911 = vpop.f32.mrb[0].mxu0
        %v3912 = vadd.f32 %v3389, %v3911
        %3913 = vmatprep.mubr.f32.mxu0 %v3183
        %3914 = vmatmul.mubr.f32.gmra.mrb[0].mxu0 %v3182
        %v3915 = vpop.f32.mrb[0].mxu0
        %v3916 = vadd.f32 %v3385, %v3915
        %v3917 = vpop.f32.mrb[0].mxu0
        %v3918 = vadd.f32 %v3389, %v3917
        %3919 = vmatprep.mubr.f32.mxu0 %v3185
        %3920 = vmatmul.mubr.f32.gmra.mrb[0].mxu0 %v3184
        %v3921 = vpop.f32.mrb[0].mxu0
        %v3922 = vadd.f32 %v3385, %v3921
        %v3923 = vpop.f32.mrb[0].mxu0
        %v3924 = vadd.f32 %v3389, %v3923
        %3925 = vmatprep.mubr.f32.mxu0 %v3187
        %3926 = vmatmul.mubr.f32.gmra.mrb[0].mxu0 %v3186
        %v3927 = vpop.f32.mrb[0].mxu0
        %v3928 = vadd.f32 %v3385, %v3927
        %v3929 = vpop.f32.mrb[0].mxu0
        %v3930 = vadd.f32 %v3389, %v3929
        %3931 = vmatprep.mubr.f32.mxu0 %v3189
        %3932 = vmatmul.mubr.f32.gmra.mrb[0].mxu0 %v3188
        %v3933 = vpop.f32.mrb[0].mxu0
        %v3934 = vadd.f32 %v3385, %v3933
        %v3935 = vpop.f32.mrb[0].mxu0
        %v3936 = vadd.f32 %v3389, %v3935
        %3937 = vmatprep.mubr.f32.mxu0 %v3191
        %3938 = vmatmul.mubr.f32.gmra.mrb[0].mxu0 %v3190
        %v3939 = vpop.f32.mrb[0].mxu0
        %v3940 = vadd.f32 %v3385, %v3939
        %v3941 = vpop.f32.mrb[0].mxu0
        %v3942 = vadd.f32 %v3389, %v3941
        %3943 = vmatprep.mubr.f32.mxu0 %v3193
        %3944 = vmatmul.mubr.f32.gmra.mrb[0].mxu0 %v3192
        %v3945 = vpop.f32.mrb[0].mxu0
        %v3946 = vadd.f32 %v3385, %v3945
        %v3947 = vpop.f32.mrb[0].mxu0
        %v3948 = vadd.f32 %v3389, %v3947
        %3949 = vmatprep.mubr.f32.mxu0 %v3195
        %3950 = vmatmul.mubr.f32.gmra.mrb[0].mxu0 %v3194
        %v3951 = vpop.f32.mrb[0].mxu0
        %v3952 = vadd.f32 %v3385, %v3951
        %v3953 = vpop.f32.mrb[0].mxu0
        %v3954 = vadd.f32 %v3389, %v3953
        %3955 = vmatprep.mubr.f32.mxu0 %v3197
        %3956 = vmatmul.mubr.f32.gmra.mrb[0].mxu0 %v3196
        %v3957 = vpop.f32.mrb[0].mxu0
        %v3958 = vadd.f32 %v3385, %v3957
        %v3959 = vpop.f32.mrb[0].mxu0
        %v3960 = vadd.f32 %v3389, %v3959
        %3961 = vmatprep.mubr.f32.mxu0 %v3199
        %3962 = vmatmul.mubr.f32.gmra.mrb[0].mxu0 %v3198
        %v3963 = vpop.f32.mrb[0].mxu0
        %v3964 = vadd.f32 %v3385, %v3963
        %v3965 = vpop.f32.mrb[0].mxu0
        %v3966 = vadd.f32 %v3389, %v3965
        %3967 = vmatprep.mubr.f32.mxu0 %v3201
        %3968 = vmatmul.mubr.f32.gmra.mrb[0].mxu0 %v3200
        %v3969 = vpop.f32.mrb[0].mxu0
        %v3970 = vadd.f32 %v3385, %v3969
        %v3971 = vpop.f32.mrb[0].mxu0
        %v3972 = vadd.f32 %v3389, %v3971
        %3973 = vmatprep.mubr.f32.mxu0 %v3203
        %3974 = vmatmul.mubr.f32.gmra.mrb[0].mxu0 %v3202
        %v3975 = vpop.f32.mrb[0].mxu0
        %v3976 = vadd.f32 %v3385, %v3975
        %v3977 = vpop.f32.mrb[0].mxu0
        %v3978 = vadd.f32 %v3389, %v3977
        %3979 = vmatprep.mubr.f32.mxu0 %v3205
        %3980 = vmatmul.mubr.f32.gmra.mrb[0].mxu0 %v3204
        %v3981 = vpop.f32.mrb[0].mxu0
        %v3982 = vadd.f32 %v3385, %v3981
        %v3983 = vpop.f32.mrb[0].mxu0
        %v3984 = vadd.f32 %v3389, %v3983
        %3985 = vmatprep.mubr.f32.mxu0 %v3207
        %3986 = vmatmul.mubr.f32.gmra.mrb[0].mxu0 %v3206
        %v3987 = vpop.f32.mrb[0].mxu0
        %v3988 = vadd.f32 %v3385, %v3987
        %v3989 = vpop.f32.mrb[0].mxu0
        %v3990 = vadd.f32 %v3389, %v3989
        %3991 = vmatprep.mubr.f32.mxu0 %v3209
        %3992 = vmatmul.mubr.f32.gmra.mrb[0].mxu0 %v3208
        %v3993 = vpop.f32.mrb[0].mxu0
        %v3994 = vadd.f32 %v3385, %v3993
        %v3995 = vpop.f32.mrb[0].mxu0
        %v3996 = vadd.f32 %v3389, %v3995
        %3997 = vmatprep.mubr.f32.mxu0 %v3211
        %3998 = vmatmul.mubr.f32.gmra.mrb[0].mxu0 %v3210
        %v3999 = vpop.f32.mrb[0].mxu0
        %v4000 = vadd.f32 %v3385, %v3999
        %v4001 = vpop.f32.mrb[0].mxu0
        %v4002 = vadd.f32 %v3389, %v4001
        %4003 = vmatprep.mubr.f32.mxu0 %v3213
        %4004 = vmatmul.mubr.f32.gmra.mrb[0].mxu0 %v3212
        %v4005 = vpop.f32.mrb[0].mxu0
        %v4006 = vadd.f32 %v3385, %v4005
        %v4007 = vpop.f32.mrb[0].mxu0
        %v4008 = vadd.f32 %v3389, %v4007
        %4009 = vmatprep.mubr.f32.mxu0 %v3215
        %4010 = vmatmul.mubr.f32.gmra.mrb[0].mxu0 %v3214
        %v4011 = vpop.f32.mrb[0].mxu0
        %v4012 = vadd.f32 %v3385, %v4011
        %v4013 = vpop.f32.mrb[0].mxu0
        %v4014 = vadd.f32 %v3389, %v4013
        %4015 = vmatprep.mubr.f32.mxu0 %v3217
        %4016 = vmatmul.mubr.f32.gmra.mrb[0].mxu0 %v3216
        %v4017 = vpop.f32.mrb[0].mxu0
        %v4018 = vadd.f32 %v3385, %v4017
        %v4019 = vpop.f32.mrb[0].mxu0
        %v4020 = vadd.f32 %v3389, %v4019
        %4021 = vmatprep.mubr.f32.mxu0 %v3219
        %4022 = vmatmul.mubr.f32.gmra.mrb[0].mxu0 %v3218
        %v4023 = vpop.f32.mrb[0].mxu0
        %v4024 = vadd.f32 %v3385, %v4023
        %v4025 = vpop.f32.mrb[0].mxu0
        %v4026 = vadd.f32 %v3389, %v4025
        %4027 = vmatprep.mubr.f32.mxu0 %v3221
        %4028 = vmatmul.mubr.f32.gmra.mrb[0].mxu0 %v3220
        %v4029 = vpop.f32.mrb[0].mxu0
        %v4030 = vadd.f32 %v3385, %v4029
        %v4031 = vpop.f32.mrb[0].mxu0
        %v4032 = vadd.f32 %v3389, %v4031
        %4033 = vmatprep.mubr.f32.mxu0 %v3223
        %4034 = vmatmul.mubr.f32.gmra.mrb[0].mxu0 %v3222
        %v4035 = vpop.f32.mrb[0].mxu0
        %v4036 = vadd.f32 %v3385, %v4035
        %v4037 = vpop.f32.mrb[0].mxu0
        %v4038 = vadd.f32 %v3389, %v4037
        %4039 = vmatprep.mubr.f32.mxu0 %v3225
        %4040 = vmatmul.mubr.f32.gmra.mrb[0].mxu0 %v3224
        %v4041 = vpop.f32.mrb[0].mxu0
        %v4042 = vadd.f32 %v3385, %v4041
        %v4043 = vpop.f32.mrb[0].mxu0
        %v4044 = vadd.f32 %v3389, %v4043
        %4045 = vmatprep.mubr.f32.mxu0 %v3227
        %4046 = vmatmul.mubr.f32.gmra.mrb[0].mxu0 %v3226
        %v4047 = vpop.f32.mrb[0].mxu0
        %v4048 = vadd.f32 %v3385, %v4047
        %v4049 = vpop.f32.mrb[0].mxu0
        %v4050 = vadd.f32 %v3389, %v4049
        %4051 = vmatprep.mubr.f32.mxu0 %v3229
        %4052 = vmatmul.mubr.f32.gmra.mrb[0].mxu0 %v3228
        %v4053 = vpop.f32.mrb[0].mxu0
        %v4054 = vadd.f32 %v3385, %v4053
        %v4055 = vpop.f32.mrb[0].mxu0
        %v4056 = vadd.f32 %v3389, %v4055
        %4057 = vmatprep.mubr.f32.mxu0 %v3231
        %4058 = vmatmul.mubr.f32.gmra.mrb[0].mxu0 %v3230
        %v4059 = vpop.f32.mrb[0].mxu0
        %v4060 = vadd.f32 %v3385, %v4059
        %v4061 = vpop.f32.mrb[0].mxu0
        %v4062 = vadd.f32 %v3389, %v4061
        %4063 = vmatprep.mubr.f32.mxu0 %v3233
        %4064 = vmatmul.mubr.f32.gmra.mrb[0].mxu0 %v3232
        %v4065 = vpop.f32.mrb[0].mxu0
        %v4066 = vadd.f32 %v3385, %v4065
        %v4067 = vpop.f32.mrb[0].mxu0
        %v4068 = vadd.f32 %v3389, %v4067
        %4069 = vmatprep.mubr.f32.mxu0 %v3235
        %4070 = vmatmul.mubr.f32.gmra.mrb[0].mxu0 %v3234
        %v4071 = vpop.f32.mrb[0].mxu0
        %v4072 = vadd.f32 %v3385, %v4071
        %v4073 = vpop.f32.mrb[0].mxu0
        %v4074 = vadd.f32 %v3389, %v4073
        %4075 = vmatprep.mubr.f32.mxu0 %v3237
        %4076 = vmatmul.mubr.f32.gmra.mrb[0].mxu0 %v3236
        %v4077 = vpop.f32.mrb[0].mxu0
        %v4078 = vadd.f32 %v3385, %v4077
        %v4079 = vpop.f32.mrb[0].mxu0
        %v4080 = vadd.f32 %v3389, %v4079
        %4081 = vmatprep.mubr.f32.mxu0 %v3239
        %4082 = vmatmul.mubr.f32.gmra.mrb[0].mxu0 %v3238
        %v4083 = vpop.f32.mrb[0].mxu0
        %v4084 = vadd.f32 %v3385, %v4083
        %v4085 = vpop.f32.mrb[0].mxu0
        %v4086 = vadd.f32 %v3389, %v4085
        %4087 = vmatprep.mubr.f32.mxu0 %v3241
        %4088 = vmatmul.mubr.f32.gmra.mrb[0].mxu0 %v3240
        %v4089 = vpop.f32.mrb[0].mxu0
        %v4090 = vadd.f32 %v3385, %v4089
        %v4091 = vpop.f32.mrb[0].mxu0
        %v4092 = vadd.f32 %v3389, %v4091
        %4093 = vmatprep.mubr.f32.mxu0 %v3243
        %4094 = vmatmul.mubr.f32.gmra.mrb[0].mxu0 %v3242
        %v4095 = vpop.f32.mrb[0].mxu0
        %v4096 = vadd.f32 %v3385, %v4095
        %v4097 = vpop.f32.mrb[0].mxu0
        %v4098 = vadd.f32 %v3389, %v4097
        %4099 = vdwg.mxu0
        %4100 = vst [vmem:[%s495] sm:$0xff] %v3461
        %4101 = vst [vmem:[%s495 + $0x8] sm:$0xff] %v3463
        %4102 = vst [vmem:[%s495 + $0x10] sm:$0xff] %v3814
        %4103 = vst [vmem:[%s495 + $0x18] sm:$0xff] %v3816
        %4104 = vst [vmem:[%s495 + $0x20] sm:$0xff] %v3467
        %4105 = vst [vmem:[%s495 + $0x28] sm:$0xff] %v3469
        %4106 = vst [vmem:[%s495 + $0x30] sm:$0xff] %v3820
        %4107 = vst [vmem:[%s495 + $0x38] sm:$0xff] %v3822
        %4108 = vst [vmem:[%s495 + $0x40] sm:$0xff] %v3473
        %4109 = vst [vmem:[%s495 + $0x48] sm:$0xff] %v3475
        %4110 = vst [vmem:[%s495 + $0x50] sm:$0xff] %v3826
        %4111 = vst [vmem:[%s495 + $0x58] sm:$0xff] %v3828
        %4112 = vst [vmem:[%s495 + $0x60] sm:$0xff] %v3479
        %4113 = vst [vmem:[%s495 + $0x68] sm:$0xff] %v3481
        %4114 = vst [vmem:[%s495 + $0x70] sm:$0xff] %v3832
        %4115 = vst [vmem:[%s495 + $0x78] sm:$0xff] %v3834
        %4116 = vst [vmem:[%s495 + $0x80] sm:$0xff] %v3485
        %4117 = vst [vmem:[%s495 + $0x88] sm:$0xff] %v3487
        %4118 = vst [vmem:[%s495 + $0x90] sm:$0xff] %v3838
        %4119 = vst [vmem:[%s495 + $0x98] sm:$0xff] %v3840
        %4120 = vst [vmem:[%s495 + $0xa0] sm:$0xff] %v3491
        %4121 = vst [vmem:[%s495 + $0xa8] sm:$0xff] %v3493
        %4122 = vst [vmem:[%s495 + $0xb0] sm:$0xff] %v3844
        %4123 = vst [vmem:[%s495 + $0xb8] sm:$0xff] %v3846
        %4124 = vst [vmem:[%s495 + $0xc0] sm:$0xff] %v3497
        %4125 = vst [vmem:[%s495 + $0xc8] sm:$0xff] %v3499
        %4126 = vst [vmem:[%s495 + $0xd0] sm:$0xff] %v3850
        %4127 = vst [vmem:[%s495 + $0xd8] sm:$0xff] %v3852
        %4128 = vst [vmem:[%s495 + $0xe0] sm:$0xff] %v3503
        %4129 = vst [vmem:[%s495 + $0xe8] sm:$0xff] %v3505
        %4130 = vst [vmem:[%s495 + $0xf0] sm:$0xff] %v3856
        %4131 = vst [vmem:[%s495 + $0xf8] sm:$0xff] %v3858
        %4132 = vst [vmem:[%s495 + $0x100] sm:$0xff] %v3509
        %4133 = vst [vmem:[%s495 + $0x108] sm:$0xff] %v3511
        %4134 = vst [vmem:[%s495 + $0x110] sm:$0xff] %v3862
        %4135 = vst [vmem:[%s495 + $0x118] sm:$0xff] %v3864
        %4136 = vst [vmem:[%s495 + $0x120] sm:$0xff] %v3515
        %4137 = vst [vmem:[%s495 + $0x128] sm:$0xff] %v3517
        %4138 = vst [vmem:[%s495 + $0x130] sm:$0xff] %v3868
        %4139 = vst [vmem:[%s495 + $0x138] sm:$0xff] %v3870
        %4140 = vst [vmem:[%s495 + $0x140] sm:$0xff] %v3521
        %4141 = vst [vmem:[%s495 + $0x148] sm:$0xff] %v3523
        %4142 = vst [vmem:[%s495 + $0x150] sm:$0xff] %v3874
        %4143 = vst [vmem:[%s495 + $0x158] sm:$0xff] %v3876
        %4144 = vst [vmem:[%s495 + $0x160] sm:$0xff] %v3527
        %4145 = vst [vmem:[%s495 + $0x168] sm:$0xff] %v3529
        %4146 = vst [vmem:[%s495 + $0x170] sm:$0xff] %v3880
        %4147 = vst [vmem:[%s495 + $0x178] sm:$0xff] %v3882
        %4148 = vst [vmem:[%s495 + $0x180] sm:$0xff] %v3533
        %4149 = vst [vmem:[%s495 + $0x188] sm:$0xff] %v3535
        %4150 = vst [vmem:[%s495 + $0x190] sm:$0xff] %v3886
        %4151 = vst [vmem:[%s495 + $0x198] sm:$0xff] %v3888
        %4152 = vst [vmem:[%s495 + $0x1a0] sm:$0xff] %v3539
        %4153 = vst [vmem:[%s495 + $0x1a8] sm:$0xff] %v3541
        %4154 = vst [vmem:[%s495 + $0x1b0] sm:$0xff] %v3892
        %4155 = vst [vmem:[%s495 + $0x1b8] sm:$0xff] %v3894
        %4156 = vst [vmem:[%s495 + $0x1c0] sm:$0xff] %v3545
        %4157 = vst [vmem:[%s495 + $0x1c8] sm:$0xff] %v3547
        %4158 = vst [vmem:[%s495 + $0x1d0] sm:$0xff] %v3898
        %4159 = vst [vmem:[%s495 + $0x1d8] sm:$0xff] %v3900
        %4160 = vst [vmem:[%s495 + $0x1e0] sm:$0xff] %v3551
        %4161 = vst [vmem:[%s495 + $0x1e8] sm:$0xff] %v3553
        %4162 = vst [vmem:[%s495 + $0x1f0] sm:$0xff] %v3904
        %4163 = vst [vmem:[%s495 + $0x1f8] sm:$0xff] %v3906
        %4164 = vst [vmem:[%s495 + $0x200] sm:$0xff] %v3557
        %4165 = vst [vmem:[%s495 + $0x208] sm:$0xff] %v3559
        %4166 = vst [vmem:[%s495 + $0x210] sm:$0xff] %v3910
        %4167 = vst [vmem:[%s495 + $0x218] sm:$0xff] %v3912
        %4168 = vst [vmem:[%s495 + $0x220] sm:$0xff] %v3563
        %4169 = vst [vmem:[%s495 + $0x228] sm:$0xff] %v3565
        %4170 = vst [vmem:[%s495 + $0x230] sm:$0xff] %v3916
        %4171 = vst [vmem:[%s495 + $0x238] sm:$0xff] %v3918
        %4172 = vst [vmem:[%s495 + $0x240] sm:$0xff] %v3569
        %4173 = vst [vmem:[%s495 + $0x248] sm:$0xff] %v3571
        %4174 = vst [vmem:[%s495 + $0x250] sm:$0xff] %v3922
        %4175 = vst [vmem:[%s495 + $0x258] sm:$0xff] %v3924
        %4176 = vst [vmem:[%s495 + $0x260] sm:$0xff] %v3575
        %4177 = vst [vmem:[%s495 + $0x268] sm:$0xff] %v3577
        %4178 = vst [vmem:[%s495 + $0x270] sm:$0xff] %v3928
        %4179 = vst [vmem:[%s495 + $0x278] sm:$0xff] %v3930
        %4180 = vst [vmem:[%s495 + $0x280] sm:$0xff] %v3581
        %4181 = vst [vmem:[%s495 + $0x288] sm:$0xff] %v3583
        %4182 = vst [vmem:[%s495 + $0x290] sm:$0xff] %v3934
        %4183 = vst [vmem:[%s495 + $0x298] sm:$0xff] %v3936
        %4184 = vst [vmem:[%s495 + $0x2a0] sm:$0xff] %v3587
        %4185 = vst [vmem:[%s495 + $0x2a8] sm:$0xff] %v3589
        %4186 = vst [vmem:[%s495 + $0x2b0] sm:$0xff] %v3940
        %4187 = vst [vmem:[%s495 + $0x2b8] sm:$0xff] %v3942
        %4188 = vst [vmem:[%s495 + $0x2c0] sm:$0xff] %v3593
        %4189 = vst [vmem:[%s495 + $0x2c8] sm:$0xff] %v3595
        %4190 = vst [vmem:[%s495 + $0x2d0] sm:$0xff] %v3946
        %4191 = vst [vmem:[%s495 + $0x2d8] sm:$0xff] %v3948
        %4192 = vst [vmem:[%s495 + $0x2e0] sm:$0xff] %v3599
        %4193 = vst [vmem:[%s495 + $0x2e8] sm:$0xff] %v3601
        %4194 = vst [vmem:[%s495 + $0x2f0] sm:$0xff] %v3952
        %4195 = vst [vmem:[%s495 + $0x2f8] sm:$0xff] %v3954
        %4196 = vst [vmem:[%s495 + $0x300] sm:$0xff] %v3605
        %4197 = vst [vmem:[%s495 + $0x308] sm:$0xff] %v3607
        %4198 = vst [vmem:[%s495 + $0x310] sm:$0xff] %v3958
        %4199 = vst [vmem:[%s495 + $0x318] sm:$0xff] %v3960
        %4200 = vst [vmem:[%s495 + $0x320] sm:$0xff] %v3611
        %4201 = vst [vmem:[%s495 + $0x328] sm:$0xff] %v3613
        %4202 = vst [vmem:[%s495 + $0x330] sm:$0xff] %v3964
        %4203 = vst [vmem:[%s495 + $0x338] sm:$0xff] %v3966
        %4204 = vst [vmem:[%s495 + $0x340] sm:$0xff] %v3617
        %4205 = vst [vmem:[%s495 + $0x348] sm:$0xff] %v3619
        %4206 = vst [vmem:[%s495 + $0x350] sm:$0xff] %v3970
        %4207 = vst [vmem:[%s495 + $0x358] sm:$0xff] %v3972
        %4208 = vst [vmem:[%s495 + $0x360] sm:$0xff] %v3623
        %4209 = vst [vmem:[%s495 + $0x368] sm:$0xff] %v3625
        %4210 = vst [vmem:[%s495 + $0x370] sm:$0xff] %v3976
        %4211 = vst [vmem:[%s495 + $0x378] sm:$0xff] %v3978
        %4212 = vst [vmem:[%s495 + $0x380] sm:$0xff] %v3629
        %4213 = vst [vmem:[%s495 + $0x388] sm:$0xff] %v3631
        %4214 = vst [vmem:[%s495 + $0x390] sm:$0xff] %v3982
        %4215 = vst [vmem:[%s495 + $0x398] sm:$0xff] %v3984
        %4216 = vst [vmem:[%s495 + $0x3a0] sm:$0xff] %v3635
        %4217 = vst [vmem:[%s495 + $0x3a8] sm:$0xff] %v3637
        %4218 = vst [vmem:[%s495 + $0x3b0] sm:$0xff] %v3988
        %4219 = vst [vmem:[%s495 + $0x3b8] sm:$0xff] %v3990
        %4220 = vst [vmem:[%s495 + $0x3c0] sm:$0xff] %v3641
        %4221 = vst [vmem:[%s495 + $0x3c8] sm:$0xff] %v3643
        %4222 = vst [vmem:[%s495 + $0x3d0] sm:$0xff] %v3994
        %4223 = vst [vmem:[%s495 + $0x3d8] sm:$0xff] %v3996
        %4224 = vst [vmem:[%s495 + $0x3e0] sm:$0xff] %v3647
        %4225 = vst [vmem:[%s495 + $0x3e8] sm:$0xff] %v3649
        %4226 = vst [vmem:[%s495 + $0x3f0] sm:$0xff] %v4000
        %4227 = vst [vmem:[%s495 + $0x3f8] sm:$0xff] %v4002
        %4228 = vst [vmem:[%s495 + $0x400] sm:$0xff] %v3653
        %4229 = vst [vmem:[%s495 + $0x408] sm:$0xff] %v3655
        %4230 = vst [vmem:[%s495 + $0x410] sm:$0xff] %v4006
        %4231 = vst [vmem:[%s495 + $0x418] sm:$0xff] %v4008
        %4232 = vst [vmem:[%s495 + $0x420] sm:$0xff] %v3659
        %4233 = vst [vmem:[%s495 + $0x428] sm:$0xff] %v3661
        %4234 = vst [vmem:[%s495 + $0x430] sm:$0xff] %v4012
        %4235 = vst [vmem:[%s495 + $0x438] sm:$0xff] %v4014
        %4236 = vst [vmem:[%s495 + $0x440] sm:$0xff] %v3665
        %4237 = vst [vmem:[%s495 + $0x448] sm:$0xff] %v3667
        %4238 = vst [vmem:[%s495 + $0x450] sm:$0xff] %v4018
        %4239 = vst [vmem:[%s495 + $0x458] sm:$0xff] %v4020
        %4240 = vst [vmem:[%s495 + $0x460] sm:$0xff] %v3671
        %4241 = vst [vmem:[%s495 + $0x468] sm:$0xff] %v3673
        %4242 = vst [vmem:[%s495 + $0x470] sm:$0xff] %v4024
        %4243 = vst [vmem:[%s495 + $0x478] sm:$0xff] %v4026
        %4244 = vst [vmem:[%s495 + $0x480] sm:$0xff] %v3677
        %4245 = vst [vmem:[%s495 + $0x488] sm:$0xff] %v3679
        %4246 = vst [vmem:[%s495 + $0x490] sm:$0xff] %v4030
        %4247 = vst [vmem:[%s495 + $0x498] sm:$0xff] %v4032
        %4248 = vst [vmem:[%s495 + $0x4a0] sm:$0xff] %v3683
        %4249 = vst [vmem:[%s495 + $0x4a8] sm:$0xff] %v3685
        %4250 = vst [vmem:[%s495 + $0x4b0] sm:$0xff] %v4036
        %4251 = vst [vmem:[%s495 + $0x4b8] sm:$0xff] %v4038
        %4252 = vst [vmem:[%s495 + $0x4c0] sm:$0xff] %v3689
        %4253 = vst [vmem:[%s495 + $0x4c8] sm:$0xff] %v3691
        %4254 = vst [vmem:[%s495 + $0x4d0] sm:$0xff] %v4042
        %4255 = vst [vmem:[%s495 + $0x4d8] sm:$0xff] %v4044
        %4256 = vst [vmem:[%s495 + $0x4e0] sm:$0xff] %v3695
        %4257 = vst [vmem:[%s495 + $0x4e8] sm:$0xff] %v3697
        %4258 = vst [vmem:[%s495 + $0x4f0] sm:$0xff] %v4048
        %4259 = vst [vmem:[%s495 + $0x4f8] sm:$0xff] %v4050
        %4260 = vst [vmem:[%s495 + $0x500] sm:$0xff] %v3701
        %4261 = vst [vmem:[%s495 + $0x508] sm:$0xff] %v3703
        %4262 = vst [vmem:[%s495 + $0x510] sm:$0xff] %v4054
        %4263 = vst [vmem:[%s495 + $0x518] sm:$0xff] %v4056
        %4264 = vst [vmem:[%s495 + $0x520] sm:$0xff] %v3707
        %4265 = vst [vmem:[%s495 + $0x528] sm:$0xff] %v3709
        %4266 = vst [vmem:[%s495 + $0x530] sm:$0xff] %v4060
        %4267 = vst [vmem:[%s495 + $0x538] sm:$0xff] %v4062
        %4268 = vst [vmem:[%s495 + $0x540] sm:$0xff] %v3713
        %4269 = vst [vmem:[%s495 + $0x548] sm:$0xff] %v3715
        %4270 = vst [vmem:[%s495 + $0x550] sm:$0xff] %v4066
        %4271 = vst [vmem:[%s495 + $0x558] sm:$0xff] %v4068
        %4272 = vst [vmem:[%s495 + $0x560] sm:$0xff] %v3719
        %4273 = vst [vmem:[%s495 + $0x568] sm:$0xff] %v3721
        %4274 = vst [vmem:[%s495 + $0x570] sm:$0xff] %v4072
        %4275 = vst [vmem:[%s495 + $0x578] sm:$0xff] %v4074
        %4276 = vst [vmem:[%s495 + $0x580] sm:$0xff] %v3725
        %4277 = vst [vmem:[%s495 + $0x588] sm:$0xff] %v3727
        %4278 = vst [vmem:[%s495 + $0x590] sm:$0xff] %v4078
        %4279 = vst [vmem:[%s495 + $0x598] sm:$0xff] %v4080
        %4280 = vst [vmem:[%s495 + $0x5a0] sm:$0xff] %v3731
        %4281 = vst [vmem:[%s495 + $0x5a8] sm:$0xff] %v3733
        %4282 = vst [vmem:[%s495 + $0x5b0] sm:$0xff] %v4084
        %4283 = vst [vmem:[%s495 + $0x5b8] sm:$0xff] %v4086
        %4284 = vst [vmem:[%s495 + $0x5c0] sm:$0xff] %v3737
        %4285 = vst [vmem:[%s495 + $0x5c8] sm:$0xff] %v3739
        %4286 = vst [vmem:[%s495 + $0x5d0] sm:$0xff] %v4090
        %4287 = vst [vmem:[%s495 + $0x5d8] sm:$0xff] %v4092
        %4288 = vst [vmem:[%s495 + $0x5e0] sm:$0xff] %v3743
        %4289 = vst [vmem:[%s495 + $0x5e8] sm:$0xff] %v3745
        %4290 = vst [vmem:[%s495 + $0x5f0] sm:$0xff] %v4096
        %4291 = vst [vmem:[%s495 + $0x5f8] sm:$0xff] %v4098
        %s4292 = sand.u32 %s178, 1
        %s4293 = sand.u32 %s178, 1
        %s4294 = smul.addr %s4293, 1536
        %s4295 = scalar_lea.vmem [#allocation4], %s4294
        // Predicated region
        $region87: #{dictionary_encoder.1} parent=81 // pred_check
          %p4296 = pneg %p188
        $region88: #{dictionary_encoder.1} parent=81 // pred_check_branch
          %4298 = sbr.rel (%p4296) target = $region90
        $region89: #{dictionary_encoder.1} parent=81 // pred_region
          %s4299 = smul.u32 8, %s18
          %s4300 = smul.addr %s4299, 4
          %s4301 = smul.addr %s4300, 8
          %s4302 = scalar_lea.vmem %s7, %s4301
          // Predicated region
          $region91: #{dictionary_encoder.1} parent=89 // pred_check
            _
          $region92: #{dictionary_encoder.1} parent=89 // pred_check_branch
            %4304 = sbr.rel (0) target = $region94
          $region93: #{dictionary_encoder.1} parent=89 // pred_region
            // Predicated region
            $region95: #{dictionary_encoder.1} parent=93 // pred_check
              _
            $region96: #{dictionary_encoder.1} parent=93 // pred_check_branch
              %4306 = sbr.rel (0) target = $region98
            $region97: #{dictionary_encoder.1} parent=93 // pred_region
              loop: start=0, step=1, limit=1
              $region99: #{dictionary_encoder.1} parent=97 // loop_pre_header
                _
              $region100: #{dictionary_encoder.1} parent=97 // loop_header
                %s4308 = sphi 0, %s4312
                %p4309 = scmp.ge.s32.totalorder %s4308, 1
                %s4313 = sphi %s4295, %s4295
                %s4314 = sphi %s4302, %s4302
              $region101: #{dictionary_encoder.1} parent=97 // loop_header_branch
                %4311 = sbr.rel (%p4309) target = $region105
              $region102: #{dictionary_encoder.1} parent=97 // loop_body
                %v4315 = vld [vmem:[%s4313] sm:$0xff]
                %4316 = vst [vmem:[%s4314] sm:$0xff] %v4315
                %v4317 = vld [vmem:[%s4313 + $0x8] sm:$0xff]
                %4318 = vst [vmem:[%s4314 + $0x8] sm:$0xff] %v4317
                %v4319 = vld [vmem:[%s4313 + $0x10] sm:$0xff]
                %4320 = vst [vmem:[%s4314 + $0x10] sm:$0xff] %v4319
                %v4321 = vld [vmem:[%s4313 + $0x18] sm:$0xff]
                %4322 = vst [vmem:[%s4314 + $0x18] sm:$0xff] %v4321
                %v4323 = vld [vmem:[%s4313 + $0x20] sm:$0xff]
                %4324 = vst [vmem:[%s4314 + $0x20] sm:$0xff] %v4323
                %v4325 = vld [vmem:[%s4313 + $0x28] sm:$0xff]
                %4326 = vst [vmem:[%s4314 + $0x28] sm:$0xff] %v4325
                %v4327 = vld [vmem:[%s4313 + $0x30] sm:$0xff]
                %4328 = vst [vmem:[%s4314 + $0x30] sm:$0xff] %v4327
                %v4329 = vld [vmem:[%s4313 + $0x38] sm:$0xff]
                %4330 = vst [vmem:[%s4314 + $0x38] sm:$0xff] %v4329
                %v4331 = vld [vmem:[%s4313 + $0x40] sm:$0xff]
                %4332 = vst [vmem:[%s4314 + $0x40] sm:$0xff] %v4331
                %v4333 = vld [vmem:[%s4313 + $0x48] sm:$0xff]
                %4334 = vst [vmem:[%s4314 + $0x48] sm:$0xff] %v4333
                %v4335 = vld [vmem:[%s4313 + $0x50] sm:$0xff]
                %4336 = vst [vmem:[%s4314 + $0x50] sm:$0xff] %v4335
                %v4337 = vld [vmem:[%s4313 + $0x58] sm:$0xff]
                %4338 = vst [vmem:[%s4314 + $0x58] sm:$0xff] %v4337
                %v4339 = vld [vmem:[%s4313 + $0x60] sm:$0xff]
                %4340 = vst [vmem:[%s4314 + $0x60] sm:$0xff] %v4339
                %v4341 = vld [vmem:[%s4313 + $0x68] sm:$0xff]
                %4342 = vst [vmem:[%s4314 + $0x68] sm:$0xff] %v4341
                %v4343 = vld [vmem:[%s4313 + $0x70] sm:$0xff]
                %4344 = vst [vmem:[%s4314 + $0x70] sm:$0xff] %v4343
                %v4345 = vld [vmem:[%s4313 + $0x78] sm:$0xff]
                %4346 = vst [vmem:[%s4314 + $0x78] sm:$0xff] %v4345
                %v4347 = vld [vmem:[%s4313 + $0x80] sm:$0xff]
                %4348 = vst [vmem:[%s4314 + $0x80] sm:$0xff] %v4347
                %v4349 = vld [vmem:[%s4313 + $0x88] sm:$0xff]
                %4350 = vst [vmem:[%s4314 + $0x88] sm:$0xff] %v4349
                %v4351 = vld [vmem:[%s4313 + $0x90] sm:$0xff]
                %4352 = vst [vmem:[%s4314 + $0x90] sm:$0xff] %v4351
                %v4353 = vld [vmem:[%s4313 + $0x98] sm:$0xff]
                %4354 = vst [vmem:[%s4314 + $0x98] sm:$0xff] %v4353
                %v4355 = vld [vmem:[%s4313 + $0xa0] sm:$0xff]
                %4356 = vst [vmem:[%s4314 + $0xa0] sm:$0xff] %v4355
                %v4357 = vld [vmem:[%s4313 + $0xa8] sm:$0xff]
                %4358 = vst [vmem:[%s4314 + $0xa8] sm:$0xff] %v4357
                %v4359 = vld [vmem:[%s4313 + $0xb0] sm:$0xff]
                %4360 = vst [vmem:[%s4314 + $0xb0] sm:$0xff] %v4359
                %v4361 = vld [vmem:[%s4313 + $0xb8] sm:$0xff]
                %4362 = vst [vmem:[%s4314 + $0xb8] sm:$0xff] %v4361
                %v4363 = vld [vmem:[%s4313 + $0xc0] sm:$0xff]
                %4364 = vst [vmem:[%s4314 + $0xc0] sm:$0xff] %v4363
                %v4365 = vld [vmem:[%s4313 + $0xc8] sm:$0xff]
                %4366 = vst [vmem:[%s4314 + $0xc8] sm:$0xff] %v4365
                %v4367 = vld [vmem:[%s4313 + $0xd0] sm:$0xff]
                %4368 = vst [vmem:[%s4314 + $0xd0] sm:$0xff] %v4367
                %v4369 = vld [vmem:[%s4313 + $0xd8] sm:$0xff]
                %4370 = vst [vmem:[%s4314 + $0xd8] sm:$0xff] %v4369
                %v4371 = vld [vmem:[%s4313 + $0xe0] sm:$0xff]
                %4372 = vst [vmem:[%s4314 + $0xe0] sm:$0xff] %v4371
                %v4373 = vld [vmem:[%s4313 + $0xe8] sm:$0xff]
                %4374 = vst [vmem:[%s4314 + $0xe8] sm:$0xff] %v4373
                %v4375 = vld [vmem:[%s4313 + $0xf0] sm:$0xff]
                %4376 = vst [vmem:[%s4314 + $0xf0] sm:$0xff] %v4375
                %v4377 = vld [vmem:[%s4313 + $0xf8] sm:$0xff]
                %4378 = vst [vmem:[%s4314 + $0xf8] sm:$0xff] %v4377
                %v4379 = vld [vmem:[%s4313 + $0x100] sm:$0xff]
                %4380 = vst [vmem:[%s4314 + $0x200] sm:$0xff] %v4379
                %v4381 = vld [vmem:[%s4313 + $0x108] sm:$0xff]
                %4382 = vst [vmem:[%s4314 + $0x208] sm:$0xff] %v4381
                %v4383 = vld [vmem:[%s4313 + $0x110] sm:$0xff]
                %4384 = vst [vmem:[%s4314 + $0x210] sm:$0xff] %v4383
                %v4385 = vld [vmem:[%s4313 + $0x118] sm:$0xff]
                %4386 = vst [vmem:[%s4314 + $0x218] sm:$0xff] %v4385
                %v4387 = vld [vmem:[%s4313 + $0x120] sm:$0xff]
                %4388 = vst [vmem:[%s4314 + $0x220] sm:$0xff] %v4387
                %v4389 = vld [vmem:[%s4313 + $0x128] sm:$0xff]
                %4390 = vst [vmem:[%s4314 + $0x228] sm:$0xff] %v4389
                %v4391 = vld [vmem:[%s4313 + $0x130] sm:$0xff]
                %4392 = vst [vmem:[%s4314 + $0x230] sm:$0xff] %v4391
                %v4393 = vld [vmem:[%s4313 + $0x138] sm:$0xff]
                %4394 = vst [vmem:[%s4314 + $0x238] sm:$0xff] %v4393
                %v4395 = vld [vmem:[%s4313 + $0x140] sm:$0xff]
                %4396 = vst [vmem:[%s4314 + $0x240] sm:$0xff] %v4395
                %v4397 = vld [vmem:[%s4313 + $0x148] sm:$0xff]
                %4398 = vst [vmem:[%s4314 + $0x248] sm:$0xff] %v4397
                %v4399 = vld [vmem:[%s4313 + $0x150] sm:$0xff]
                %4400 = vst [vmem:[%s4314 + $0x250] sm:$0xff] %v4399
                %v4401 = vld [vmem:[%s4313 + $0x158] sm:$0xff]
                %4402 = vst [vmem:[%s4314 + $0x258] sm:$0xff] %v4401
                %v4403 = vld [vmem:[%s4313 + $0x160] sm:$0xff]
                %4404 = vst [vmem:[%s4314 + $0x260] sm:$0xff] %v4403
                %v4405 = vld [vmem:[%s4313 + $0x168] sm:$0xff]
                %4406 = vst [vmem:[%s4314 + $0x268] sm:$0xff] %v4405
                %v4407 = vld [vmem:[%s4313 + $0x170] sm:$0xff]
                %4408 = vst [vmem:[%s4314 + $0x270] sm:$0xff] %v4407
                %v4409 = vld [vmem:[%s4313 + $0x178] sm:$0xff]
                %4410 = vst [vmem:[%s4314 + $0x278] sm:$0xff] %v4409
                %v4411 = vld [vmem:[%s4313 + $0x180] sm:$0xff]
                %4412 = vst [vmem:[%s4314 + $0x280] sm:$0xff] %v4411
                %v4413 = vld [vmem:[%s4313 + $0x188] sm:$0xff]
                %4414 = vst [vmem:[%s4314 + $0x288] sm:$0xff] %v4413
                %v4415 = vld [vmem:[%s4313 + $0x190] sm:$0xff]
                %4416 = vst [vmem:[%s4314 + $0x290] sm:$0xff] %v4415
                %v4417 = vld [vmem:[%s4313 + $0x198] sm:$0xff]
                %4418 = vst [vmem:[%s4314 + $0x298] sm:$0xff] %v4417
                %v4419 = vld [vmem:[%s4313 + $0x1a0] sm:$0xff]
                %4420 = vst [vmem:[%s4314 + $0x2a0] sm:$0xff] %v4419
                %v4421 = vld [vmem:[%s4313 + $0x1a8] sm:$0xff]
                %4422 = vst [vmem:[%s4314 + $0x2a8] sm:$0xff] %v4421
                %v4423 = vld [vmem:[%s4313 + $0x1b0] sm:$0xff]
                %4424 = vst [vmem:[%s4314 + $0x2b0] sm:$0xff] %v4423
                %v4425 = vld [vmem:[%s4313 + $0x1b8] sm:$0xff]
                %4426 = vst [vmem:[%s4314 + $0x2b8] sm:$0xff] %v4425
                %v4427 = vld [vmem:[%s4313 + $0x1c0] sm:$0xff]
                %4428 = vst [vmem:[%s4314 + $0x2c0] sm:$0xff] %v4427
                %v4429 = vld [vmem:[%s4313 + $0x1c8] sm:$0xff]
                %4430 = vst [vmem:[%s4314 + $0x2c8] sm:$0xff] %v4429
                %v4431 = vld [vmem:[%s4313 + $0x1d0] sm:$0xff]
                %4432 = vst [vmem:[%s4314 + $0x2d0] sm:$0xff] %v4431
                %v4433 = vld [vmem:[%s4313 + $0x1d8] sm:$0xff]
                %4434 = vst [vmem:[%s4314 + $0x2d8] sm:$0xff] %v4433
                %v4435 = vld [vmem:[%s4313 + $0x1e0] sm:$0xff]
                %4436 = vst [vmem:[%s4314 + $0x2e0] sm:$0xff] %v4435
                %v4437 = vld [vmem:[%s4313 + $0x1e8] sm:$0xff]
                %4438 = vst [vmem:[%s4314 + $0x2e8] sm:$0xff] %v4437
                %v4439 = vld [vmem:[%s4313 + $0x1f0] sm:$0xff]
                %4440 = vst [vmem:[%s4314 + $0x2f0] sm:$0xff] %v4439
                %v4441 = vld [vmem:[%s4313 + $0x1f8] sm:$0xff]
                %4442 = vst [vmem:[%s4314 + $0x2f8] sm:$0xff] %v4441
                %v4443 = vld [vmem:[%s4313 + $0x200] sm:$0xff]
                %4444 = vst [vmem:[%s4314 + $0x400] sm:$0xff] %v4443
                %v4445 = vld [vmem:[%s4313 + $0x208] sm:$0xff]
                %4446 = vst [vmem:[%s4314 + $0x408] sm:$0xff] %v4445
                %v4447 = vld [vmem:[%s4313 + $0x210] sm:$0xff]
                %4448 = vst [vmem:[%s4314 + $0x410] sm:$0xff] %v4447
                %v4449 = vld [vmem:[%s4313 + $0x218] sm:$0xff]
                %4450 = vst [vmem:[%s4314 + $0x418] sm:$0xff] %v4449
                %v4451 = vld [vmem:[%s4313 + $0x220] sm:$0xff]
                %4452 = vst [vmem:[%s4314 + $0x420] sm:$0xff] %v4451
                %v4453 = vld [vmem:[%s4313 + $0x228] sm:$0xff]
                %4454 = vst [vmem:[%s4314 + $0x428] sm:$0xff] %v4453
                %v4455 = vld [vmem:[%s4313 + $0x230] sm:$0xff]
                %4456 = vst [vmem:[%s4314 + $0x430] sm:$0xff] %v4455
                %v4457 = vld [vmem:[%s4313 + $0x238] sm:$0xff]
                %4458 = vst [vmem:[%s4314 + $0x438] sm:$0xff] %v4457
                %v4459 = vld [vmem:[%s4313 + $0x240] sm:$0xff]
                %4460 = vst [vmem:[%s4314 + $0x440] sm:$0xff] %v4459
                %v4461 = vld [vmem:[%s4313 + $0x248] sm:$0xff]
                %4462 = vst [vmem:[%s4314 + $0x448] sm:$0xff] %v4461
                %v4463 = vld [vmem:[%s4313 + $0x250] sm:$0xff]
                %4464 = vst [vmem:[%s4314 + $0x450] sm:$0xff] %v4463
                %v4465 = vld [vmem:[%s4313 + $0x258] sm:$0xff]
                %4466 = vst [vmem:[%s4314 + $0x458] sm:$0xff] %v4465
                %v4467 = vld [vmem:[%s4313 + $0x260] sm:$0xff]
                %4468 = vst [vmem:[%s4314 + $0x460] sm:$0xff] %v4467
                %v4469 = vld [vmem:[%s4313 + $0x268] sm:$0xff]
                %4470 = vst [vmem:[%s4314 + $0x468] sm:$0xff] %v4469
                %v4471 = vld [vmem:[%s4313 + $0x270] sm:$0xff]
                %4472 = vst [vmem:[%s4314 + $0x470] sm:$0xff] %v4471
                %v4473 = vld [vmem:[%s4313 + $0x278] sm:$0xff]
                %4474 = vst [vmem:[%s4314 + $0x478] sm:$0xff] %v4473
                %v4475 = vld [vmem:[%s4313 + $0x280] sm:$0xff]
                %4476 = vst [vmem:[%s4314 + $0x480] sm:$0xff] %v4475
                %v4477 = vld [vmem:[%s4313 + $0x288] sm:$0xff]
                %4478 = vst [vmem:[%s4314 + $0x488] sm:$0xff] %v4477
                %v4479 = vld [vmem:[%s4313 + $0x290] sm:$0xff]
                %4480 = vst [vmem:[%s4314 + $0x490] sm:$0xff] %v4479
                %v4481 = vld [vmem:[%s4313 + $0x298] sm:$0xff]
                %4482 = vst [vmem:[%s4314 + $0x498] sm:$0xff] %v4481
                %v4483 = vld [vmem:[%s4313 + $0x2a0] sm:$0xff]
                %4484 = vst [vmem:[%s4314 + $0x4a0] sm:$0xff] %v4483
                %v4485 = vld [vmem:[%s4313 + $0x2a8] sm:$0xff]
                %4486 = vst [vmem:[%s4314 + $0x4a8] sm:$0xff] %v4485
                %v4487 = vld [vmem:[%s4313 + $0x2b0] sm:$0xff]
                %4488 = vst [vmem:[%s4314 + $0x4b0] sm:$0xff] %v4487
                %v4489 = vld [vmem:[%s4313 + $0x2b8] sm:$0xff]
                %4490 = vst [vmem:[%s4314 + $0x4b8] sm:$0xff] %v4489
                %v4491 = vld [vmem:[%s4313 + $0x2c0] sm:$0xff]
                %4492 = vst [vmem:[%s4314 + $0x4c0] sm:$0xff] %v4491
                %v4493 = vld [vmem:[%s4313 + $0x2c8] sm:$0xff]
                %4494 = vst [vmem:[%s4314 + $0x4c8] sm:$0xff] %v4493
                %v4495 = vld [vmem:[%s4313 + $0x2d0] sm:$0xff]
                %4496 = vst [vmem:[%s4314 + $0x4d0] sm:$0xff] %v4495
                %v4497 = vld [vmem:[%s4313 + $0x2d8] sm:$0xff]
                %4498 = vst [vmem:[%s4314 + $0x4d8] sm:$0xff] %v4497
                %v4499 = vld [vmem:[%s4313 + $0x2e0] sm:$0xff]
                %4500 = vst [vmem:[%s4314 + $0x4e0] sm:$0xff] %v4499
                %v4501 = vld [vmem:[%s4313 + $0x2e8] sm:$0xff]
                %4502 = vst [vmem:[%s4314 + $0x4e8] sm:$0xff] %v4501
                %v4503 = vld [vmem:[%s4313 + $0x2f0] sm:$0xff]
                %4504 = vst [vmem:[%s4314 + $0x4f0] sm:$0xff] %v4503
                %v4505 = vld [vmem:[%s4313 + $0x2f8] sm:$0xff]
                %4506 = vst [vmem:[%s4314 + $0x4f8] sm:$0xff] %v4505
                %v4507 = vld [vmem:[%s4313 + $0x300] sm:$0xff]
                %4508 = vst [vmem:[%s4314 + $0x600] sm:$0xff] %v4507
                %v4509 = vld [vmem:[%s4313 + $0x308] sm:$0xff]
                %4510 = vst [vmem:[%s4314 + $0x608] sm:$0xff] %v4509
                %v4511 = vld [vmem:[%s4313 + $0x310] sm:$0xff]
                %4512 = vst [vmem:[%s4314 + $0x610] sm:$0xff] %v4511
                %v4513 = vld [vmem:[%s4313 + $0x318] sm:$0xff]
                %4514 = vst [vmem:[%s4314 + $0x618] sm:$0xff] %v4513
                %v4515 = vld [vmem:[%s4313 + $0x320] sm:$0xff]
                %4516 = vst [vmem:[%s4314 + $0x620] sm:$0xff] %v4515
                %v4517 = vld [vmem:[%s4313 + $0x328] sm:$0xff]
                %4518 = vst [vmem:[%s4314 + $0x628] sm:$0xff] %v4517
                %v4519 = vld [vmem:[%s4313 + $0x330] sm:$0xff]
                %4520 = vst [vmem:[%s4314 + $0x630] sm:$0xff] %v4519
                %v4521 = vld [vmem:[%s4313 + $0x338] sm:$0xff]
                %4522 = vst [vmem:[%s4314 + $0x638] sm:$0xff] %v4521
                %v4523 = vld [vmem:[%s4313 + $0x340] sm:$0xff]
                %4524 = vst [vmem:[%s4314 + $0x640] sm:$0xff] %v4523
                %v4525 = vld [vmem:[%s4313 + $0x348] sm:$0xff]
                %4526 = vst [vmem:[%s4314 + $0x648] sm:$0xff] %v4525
                %v4527 = vld [vmem:[%s4313 + $0x350] sm:$0xff]
                %4528 = vst [vmem:[%s4314 + $0x650] sm:$0xff] %v4527
                %v4529 = vld [vmem:[%s4313 + $0x358] sm:$0xff]
                %4530 = vst [vmem:[%s4314 + $0x658] sm:$0xff] %v4529
                %v4531 = vld [vmem:[%s4313 + $0x360] sm:$0xff]
                %4532 = vst [vmem:[%s4314 + $0x660] sm:$0xff] %v4531
                %v4533 = vld [vmem:[%s4313 + $0x368] sm:$0xff]
                %4534 = vst [vmem:[%s4314 + $0x668] sm:$0xff] %v4533
                %v4535 = vld [vmem:[%s4313 + $0x370] sm:$0xff]
                %4536 = vst [vmem:[%s4314 + $0x670] sm:$0xff] %v4535
                %v4537 = vld [vmem:[%s4313 + $0x378] sm:$0xff]
                %4538 = vst [vmem:[%s4314 + $0x678] sm:$0xff] %v4537
                %v4539 = vld [vmem:[%s4313 + $0x380] sm:$0xff]
                %4540 = vst [vmem:[%s4314 + $0x680] sm:$0xff] %v4539
                %v4541 = vld [vmem:[%s4313 + $0x388] sm:$0xff]
                %4542 = vst [vmem:[%s4314 + $0x688] sm:$0xff] %v4541
                %v4543 = vld [vmem:[%s4313 + $0x390] sm:$0xff]
                %4544 = vst [vmem:[%s4314 + $0x690] sm:$0xff] %v4543
                %v4545 = vld [vmem:[%s4313 + $0x398] sm:$0xff]
                %4546 = vst [vmem:[%s4314 + $0x698] sm:$0xff] %v4545
                %v4547 = vld [vmem:[%s4313 + $0x3a0] sm:$0xff]
                %4548 = vst [vmem:[%s4314 + $0x6a0] sm:$0xff] %v4547
                %v4549 = vld [vmem:[%s4313 + $0x3a8] sm:$0xff]
                %4550 = vst [vmem:[%s4314 + $0x6a8] sm:$0xff] %v4549
                %v4551 = vld [vmem:[%s4313 + $0x3b0] sm:$0xff]
                %4552 = vst [vmem:[%s4314 + $0x6b0] sm:$0xff] %v4551
                %v4553 = vld [vmem:[%s4313 + $0x3b8] sm:$0xff]
                %4554 = vst [vmem:[%s4314 + $0x6b8] sm:$0xff] %v4553
                %v4555 = vld [vmem:[%s4313 + $0x3c0] sm:$0xff]
                %4556 = vst [vmem:[%s4314 + $0x6c0] sm:$0xff] %v4555
                %v4557 = vld [vmem:[%s4313 + $0x3c8] sm:$0xff]
                %4558 = vst [vmem:[%s4314 + $0x6c8] sm:$0xff] %v4557
                %v4559 = vld [vmem:[%s4313 + $0x3d0] sm:$0xff]
                %4560 = vst [vmem:[%s4314 + $0x6d0] sm:$0xff] %v4559
                %v4561 = vld [vmem:[%s4313 + $0x3d8] sm:$0xff]
                %4562 = vst [vmem:[%s4314 + $0x6d8] sm:$0xff] %v4561
                %v4563 = vld [vmem:[%s4313 + $0x3e0] sm:$0xff]
                %4564 = vst [vmem:[%s4314 + $0x6e0] sm:$0xff] %v4563
                %v4565 = vld [vmem:[%s4313 + $0x3e8] sm:$0xff]
                %4566 = vst [vmem:[%s4314 + $0x6e8] sm:$0xff] %v4565
                %v4567 = vld [vmem:[%s4313 + $0x3f0] sm:$0xff]
                %4568 = vst [vmem:[%s4314 + $0x6f0] sm:$0xff] %v4567
                %v4569 = vld [vmem:[%s4313 + $0x3f8] sm:$0xff]
                %4570 = vst [vmem:[%s4314 + $0x6f8] sm:$0xff] %v4569
                %v4571 = vld [vmem:[%s4313 + $0x400] sm:$0xff]
                %4572 = vst [vmem:[%s4314 + $0x800] sm:$0xff] %v4571
                %v4573 = vld [vmem:[%s4313 + $0x408] sm:$0xff]
                %4574 = vst [vmem:[%s4314 + $0x808] sm:$0xff] %v4573
                %v4575 = vld [vmem:[%s4313 + $0x410] sm:$0xff]
                %4576 = vst [vmem:[%s4314 + $0x810] sm:$0xff] %v4575
                %v4577 = vld [vmem:[%s4313 + $0x418] sm:$0xff]
                %4578 = vst [vmem:[%s4314 + $0x818] sm:$0xff] %v4577
                %v4579 = vld [vmem:[%s4313 + $0x420] sm:$0xff]
                %4580 = vst [vmem:[%s4314 + $0x820] sm:$0xff] %v4579
                %v4581 = vld [vmem:[%s4313 + $0x428] sm:$0xff]
                %4582 = vst [vmem:[%s4314 + $0x828] sm:$0xff] %v4581
                %v4583 = vld [vmem:[%s4313 + $0x430] sm:$0xff]
                %4584 = vst [vmem:[%s4314 + $0x830] sm:$0xff] %v4583
                %v4585 = vld [vmem:[%s4313 + $0x438] sm:$0xff]
                %4586 = vst [vmem:[%s4314 + $0x838] sm:$0xff] %v4585
                %v4587 = vld [vmem:[%s4313 + $0x440] sm:$0xff]
                %4588 = vst [vmem:[%s4314 + $0x840] sm:$0xff] %v4587
                %v4589 = vld [vmem:[%s4313 + $0x448] sm:$0xff]
                %4590 = vst [vmem:[%s4314 + $0x848] sm:$0xff] %v4589
                %v4591 = vld [vmem:[%s4313 + $0x450] sm:$0xff]
                %4592 = vst [vmem:[%s4314 + $0x850] sm:$0xff] %v4591
                %v4593 = vld [vmem:[%s4313 + $0x458] sm:$0xff]
                %4594 = vst [vmem:[%s4314 + $0x858] sm:$0xff] %v4593
                %v4595 = vld [vmem:[%s4313 + $0x460] sm:$0xff]
                %4596 = vst [vmem:[%s4314 + $0x860] sm:$0xff] %v4595
                %v4597 = vld [vmem:[%s4313 + $0x468] sm:$0xff]
                %4598 = vst [vmem:[%s4314 + $0x868] sm:$0xff] %v4597
                %v4599 = vld [vmem:[%s4313 + $0x470] sm:$0xff]
                %4600 = vst [vmem:[%s4314 + $0x870] sm:$0xff] %v4599
                %v4601 = vld [vmem:[%s4313 + $0x478] sm:$0xff]
                %4602 = vst [vmem:[%s4314 + $0x878] sm:$0xff] %v4601
                %v4603 = vld [vmem:[%s4313 + $0x480] sm:$0xff]
                %4604 = vst [vmem:[%s4314 + $0x880] sm:$0xff] %v4603
                %v4605 = vld [vmem:[%s4313 + $0x488] sm:$0xff]
                %4606 = vst [vmem:[%s4314 + $0x888] sm:$0xff] %v4605
                %v4607 = vld [vmem:[%s4313 + $0x490] sm:$0xff]
                %4608 = vst [vmem:[%s4314 + $0x890] sm:$0xff] %v4607
                %v4609 = vld [vmem:[%s4313 + $0x498] sm:$0xff]
                %4610 = vst [vmem:[%s4314 + $0x898] sm:$0xff] %v4609
                %v4611 = vld [vmem:[%s4313 + $0x4a0] sm:$0xff]
                %4612 = vst [vmem:[%s4314 + $0x8a0] sm:$0xff] %v4611
                %v4613 = vld [vmem:[%s4313 + $0x4a8] sm:$0xff]
                %4614 = vst [vmem:[%s4314 + $0x8a8] sm:$0xff] %v4613
                %v4615 = vld [vmem:[%s4313 + $0x4b0] sm:$0xff]
                %4616 = vst [vmem:[%s4314 + $0x8b0] sm:$0xff] %v4615
                %v4617 = vld [vmem:[%s4313 + $0x4b8] sm:$0xff]
                %4618 = vst [vmem:[%s4314 + $0x8b8] sm:$0xff] %v4617
                %v4619 = vld [vmem:[%s4313 + $0x4c0] sm:$0xff]
                %4620 = vst [vmem:[%s4314 + $0x8c0] sm:$0xff] %v4619
                %v4621 = vld [vmem:[%s4313 + $0x4c8] sm:$0xff]
                %4622 = vst [vmem:[%s4314 + $0x8c8] sm:$0xff] %v4621
                %v4623 = vld [vmem:[%s4313 + $0x4d0] sm:$0xff]
                %4624 = vst [vmem:[%s4314 + $0x8d0] sm:$0xff] %v4623
                %v4625 = vld [vmem:[%s4313 + $0x4d8] sm:$0xff]
                %4626 = vst [vmem:[%s4314 + $0x8d8] sm:$0xff] %v4625
                %v4627 = vld [vmem:[%s4313 + $0x4e0] sm:$0xff]
                %4628 = vst [vmem:[%s4314 + $0x8e0] sm:$0xff] %v4627
                %v4629 = vld [vmem:[%s4313 + $0x4e8] sm:$0xff]
                %4630 = vst [vmem:[%s4314 + $0x8e8] sm:$0xff] %v4629
                %v4631 = vld [vmem:[%s4313 + $0x4f0] sm:$0xff]
                %4632 = vst [vmem:[%s4314 + $0x8f0] sm:$0xff] %v4631
                %v4633 = vld [vmem:[%s4313 + $0x4f8] sm:$0xff]
                %4634 = vst [vmem:[%s4314 + $0x8f8] sm:$0xff] %v4633
                %v4635 = vld [vmem:[%s4313 + $0x500] sm:$0xff]
                %4636 = vst [vmem:[%s4314 + $0xa00] sm:$0xff] %v4635
                %v4637 = vld [vmem:[%s4313 + $0x508] sm:$0xff]
                %4638 = vst [vmem:[%s4314 + $0xa08] sm:$0xff] %v4637
                %v4639 = vld [vmem:[%s4313 + $0x510] sm:$0xff]
                %4640 = vst [vmem:[%s4314 + $0xa10] sm:$0xff] %v4639
                %v4641 = vld [vmem:[%s4313 + $0x518] sm:$0xff]
                %4642 = vst [vmem:[%s4314 + $0xa18] sm:$0xff] %v4641
                %v4643 = vld [vmem:[%s4313 + $0x520] sm:$0xff]
                %4644 = vst [vmem:[%s4314 + $0xa20] sm:$0xff] %v4643
                %v4645 = vld [vmem:[%s4313 + $0x528] sm:$0xff]
                %4646 = vst [vmem:[%s4314 + $0xa28] sm:$0xff] %v4645
                %v4647 = vld [vmem:[%s4313 + $0x530] sm:$0xff]
                %4648 = vst [vmem:[%s4314 + $0xa30] sm:$0xff] %v4647
                %v4649 = vld [vmem:[%s4313 + $0x538] sm:$0xff]
                %4650 = vst [vmem:[%s4314 + $0xa38] sm:$0xff] %v4649
                %v4651 = vld [vmem:[%s4313 + $0x540] sm:$0xff]
                %4652 = vst [vmem:[%s4314 + $0xa40] sm:$0xff] %v4651
                %v4653 = vld [vmem:[%s4313 + $0x548] sm:$0xff]
                %4654 = vst [vmem:[%s4314 + $0xa48] sm:$0xff] %v4653
                %v4655 = vld [vmem:[%s4313 + $0x550] sm:$0xff]
                %4656 = vst [vmem:[%s4314 + $0xa50] sm:$0xff] %v4655
                %v4657 = vld [vmem:[%s4313 + $0x558] sm:$0xff]
                %4658 = vst [vmem:[%s4314 + $0xa58] sm:$0xff] %v4657
                %v4659 = vld [vmem:[%s4313 + $0x560] sm:$0xff]
                %4660 = vst [vmem:[%s4314 + $0xa60] sm:$0xff] %v4659
                %v4661 = vld [vmem:[%s4313 + $0x568] sm:$0xff]
                %4662 = vst [vmem:[%s4314 + $0xa68] sm:$0xff] %v4661
                %v4663 = vld [vmem:[%s4313 + $0x570] sm:$0xff]
                %4664 = vst [vmem:[%s4314 + $0xa70] sm:$0xff] %v4663
                %v4665 = vld [vmem:[%s4313 + $0x578] sm:$0xff]
                %4666 = vst [vmem:[%s4314 + $0xa78] sm:$0xff] %v4665
                %v4667 = vld [vmem:[%s4313 + $0x580] sm:$0xff]
                %4668 = vst [vmem:[%s4314 + $0xa80] sm:$0xff] %v4667
                %v4669 = vld [vmem:[%s4313 + $0x588] sm:$0xff]
                %4670 = vst [vmem:[%s4314 + $0xa88] sm:$0xff] %v4669
                %v4671 = vld [vmem:[%s4313 + $0x590] sm:$0xff]
                %4672 = vst [vmem:[%s4314 + $0xa90] sm:$0xff] %v4671
                %v4673 = vld [vmem:[%s4313 + $0x598] sm:$0xff]
                %4674 = vst [vmem:[%s4314 + $0xa98] sm:$0xff] %v4673
                %v4675 = vld [vmem:[%s4313 + $0x5a0] sm:$0xff]
                %4676 = vst [vmem:[%s4314 + $0xaa0] sm:$0xff] %v4675
                %v4677 = vld [vmem:[%s4313 + $0x5a8] sm:$0xff]
                %4678 = vst [vmem:[%s4314 + $0xaa8] sm:$0xff] %v4677
                %v4679 = vld [vmem:[%s4313 + $0x5b0] sm:$0xff]
                %4680 = vst [vmem:[%s4314 + $0xab0] sm:$0xff] %v4679
                %v4681 = vld [vmem:[%s4313 + $0x5b8] sm:$0xff]
                %4682 = vst [vmem:[%s4314 + $0xab8] sm:$0xff] %v4681
                %v4683 = vld [vmem:[%s4313 + $0x5c0] sm:$0xff]
                %4684 = vst [vmem:[%s4314 + $0xac0] sm:$0xff] %v4683
                %v4685 = vld [vmem:[%s4313 + $0x5c8] sm:$0xff]
                %4686 = vst [vmem:[%s4314 + $0xac8] sm:$0xff] %v4685
                %v4687 = vld [vmem:[%s4313 + $0x5d0] sm:$0xff]
                %4688 = vst [vmem:[%s4314 + $0xad0] sm:$0xff] %v4687
                %v4689 = vld [vmem:[%s4313 + $0x5d8] sm:$0xff]
                %4690 = vst [vmem:[%s4314 + $0xad8] sm:$0xff] %v4689
                %v4691 = vld [vmem:[%s4313 + $0x5e0] sm:$0xff]
                %4692 = vst [vmem:[%s4314 + $0xae0] sm:$0xff] %v4691
                %v4693 = vld [vmem:[%s4313 + $0x5e8] sm:$0xff]
                %4694 = vst [vmem:[%s4314 + $0xae8] sm:$0xff] %v4693
                %v4695 = vld [vmem:[%s4313 + $0x5f0] sm:$0xff]
                %4696 = vst [vmem:[%s4314 + $0xaf0] sm:$0xff] %v4695
                %v4697 = vld [vmem:[%s4313 + $0x5f8] sm:$0xff]
                %4698 = vst [vmem:[%s4314 + $0xaf8] sm:$0xff] %v4697
              $region103: #{dictionary_encoder.1} parent=97 // loop_footer
                %s4312 = sadd.s32 1, %s4308
              $region104: #{dictionary_encoder.1} parent=97 // loop_footer_branch
                %4307 = sbr.rel target = $region100
              $region105: #{dictionary_encoder.1} parent=97 // loop_exit
                _
            $region98: #{dictionary_encoder.1} parent=93 // pred_fallthru
              _
            // Predicated region
            $region106: #{dictionary_encoder.1} parent=93 // pred_check
              _
            $region107: #{dictionary_encoder.1} parent=93 // pred_check_branch
              %4700 = sbr.rel target = $region109
            $region108: #{dictionary_encoder.1} parent=93 // pred_region
              _
            $region109: #{dictionary_encoder.1} parent=93 // pred_fallthru
              _
          $region94: #{dictionary_encoder.1} parent=89 // pred_fallthru
            _
          %4701 = vnop
        $region90: #{dictionary_encoder.1} parent=81 // pred_fallthru
          _
      $region82: #{dictionary_encoder.1} parent=5 // pred_fallthru
        _
      %p4702 = scmp.le.s32.totalorder 2, %s13
      // Predicated region
      $region110: #{dictionary_encoder.1} parent=5 // pred_check
        %p4703 = pneg %p4702
      $region111: #{dictionary_encoder.1} parent=5 // pred_check_branch
        %4705 = sbr.rel (%p4703) target = $region113
      $region112: #{dictionary_encoder.1} parent=5 // pred_region
        %s4706 = ssub.s32 %s13, 2
        // Predicated region
        $region114: #{dictionary_encoder.1} parent=112 // pred_check
          %p4707 = pneg %p194
        $region115: #{dictionary_encoder.1} parent=112 // pred_check_branch
          %4709 = sbr.rel (%p4707) target = $region117
        $region116: #{dictionary_encoder.1} parent=112 // pred_region
          %s4710 = sand.u32 %s179, 1
          %s4711 = sand.u32 %s179, 1
          %s4712 = smul.addr %s4711, 1536
          %s4713 = scalar_lea.vmem [#allocation4], %s4712
        $region117: #{dictionary_encoder.1} parent=112 // pred_fallthru
          _
      $region113: #{dictionary_encoder.1} parent=5 // pred_fallthru
        _
    $region6: #{dictionary_encoder.1} parent=1 // loop_footer
      %s17 = sadd.s32 1, %s13
    $region7: #{dictionary_encoder.1} parent=1 // loop_footer_branch
      %12 = sbr.rel target = $region3
    $region8: #{dictionary_encoder.1} parent=1 // loop_exit
      _

// kernel: mul.65
$region0: #{mul.65}
  #allocation0 [shape = 's32[1]{0}', space=sflag, size = 0x4, scoped, tag = 'scoped memory for mul.65']
  %s0 = inlined_call_operand.vmem [shape: f32[98,7], index: 0, kind: input, shape index: {}]
  %s1 = inlined_call_operand.vmem [shape: f32[98,7,8,8], index: 1, kind: output, shape index: {}]
  // Predicated region
  $region2: #{mul.65} parent=0 // pred_check
    _
  $region3: #{mul.65} parent=0 // pred_check_branch
    %3 = sbr.rel (0) target = $region5
  $region4: #{mul.65} parent=0 // pred_region
    _
  $region5: #{mul.65} parent=0 // pred_fallthru
    _
  %v4 = vld [vmem:[%s0] sm:$0x7f]
  %5 = vst [vmem:[%s1] sm:$0xff] %v4
  %s6 = scalar_lea.vmem %s1, 64
  %7 = vst [vmem:[%s6] sm:$0xff] %v4
  %s8 = scalar_lea.vmem %s1, 128
  %9 = vst [vmem:[%s8] sm:$0xff] %v4
  %s10 = scalar_lea.vmem %s1, 192
  %11 = vst [vmem:[%s10] sm:$0xff] %v4
  %s12 = scalar_lea.vmem %s1, 256
  %13 = vst [vmem:[%s12] sm:$0xff] %v4
  %s14 = scalar_lea.vmem %s1, 320
  %15 = vst [vmem:[%s14] sm:$0xff] %v4
  %s16 = scalar_lea.vmem %s1, 384
  %17 = vst [vmem:[%s16] sm:$0xff] %v4
  %s18 = scalar_lea.vmem %s1, 448
  %19 = vst [vmem:[%s18] sm:$0xff] %v4
  %s20 = scalar_lea.vmem %s1, 8
  %21 = vst [vmem:[%s20] sm:$0xff] %v4
  %s22 = scalar_lea.vmem %s1, 72
  %23 = vst [vmem:[%s22] sm:$0xff] %v4
  %s24 = scalar_lea.vmem %s1, 136
  %25 = vst [vmem:[%s24] sm:$0xff] %v4
  %s26 = scalar_lea.vmem %s1, 200
  %27 = vst [vmem:[%s26] sm:$0xff] %v4
  %s28 = scalar_lea.vmem %s1, 264
  %29 = vst [vmem:[%s28] sm:$0xff] %v4
  %s30 = scalar_lea.vmem %s1, 328
  %31 = vst [vmem:[%s30] sm:$0xff] %v4
  %s32 = scalar_lea.vmem %s1, 392
  %33 = vst [vmem:[%s32] sm:$0xff] %v4
  %s34 = scalar_lea.vmem %s1, 456
  %35 = vst [vmem:[%s34] sm:$0xff] %v4
  %s36 = scalar_lea.vmem %s1, 16
  %37 = vst [vmem:[%s36] sm:$0xff] %v4
  %s38 = scalar_lea.vmem %s1, 80
  %39 = vst [vmem:[%s38] sm:$0xff] %v4
  %s40 = scalar_lea.vmem %s1, 144
  %41 = vst [vmem:[%s40] sm:$0xff] %v4
  %s42 = scalar_lea.vmem %s1, 208
  %43 = vst [vmem:[%s42] sm:$0xff] %v4
  %s44 = scalar_lea.vmem %s1, 272
  %45 = vst [vmem:[%s44] sm:$0xff] %v4
  %s46 = scalar_lea.vmem %s1, 336
  %47 = vst [vmem:[%s46] sm:$0xff] %v4
  %s48 = scalar_lea.vmem %s1, 400
  %49 = vst [vmem:[%s48] sm:$0xff] %v4
  %s50 = scalar_lea.vmem %s1, 464
  %51 = vst [vmem:[%s50] sm:$0xff] %v4
  %s52 = scalar_lea.vmem %s1, 24
  %53 = vst [vmem:[%s52] sm:$0xff] %v4
  %s54 = scalar_lea.vmem %s1, 88
  %55 = vst [vmem:[%s54] sm:$0xff] %v4
  %s56 = scalar_lea.vmem %s1, 152
  %57 = vst [vmem:[%s56] sm:$0xff] %v4
  %s58 = scalar_lea.vmem %s1, 216
  %59 = vst [vmem:[%s58] sm:$0xff] %v4
  %s60 = scalar_lea.vmem %s1, 280
  %61 = vst [vmem:[%s60] sm:$0xff] %v4
  %s62 = scalar_lea.vmem %s1, 344
  %63 = vst [vmem:[%s62] sm:$0xff] %v4
  %s64 = scalar_lea.vmem %s1, 408
  %65 = vst [vmem:[%s64] sm:$0xff] %v4
  %s66 = scalar_lea.vmem %s1, 472
  %67 = vst [vmem:[%s66] sm:$0xff] %v4
  %s68 = scalar_lea.vmem %s1, 32
  %69 = vst [vmem:[%s68] sm:$0xff] %v4
  %s70 = scalar_lea.vmem %s1, 96
  %71 = vst [vmem:[%s70] sm:$0xff] %v4
  %s72 = scalar_lea.vmem %s1, 160
  %73 = vst [vmem:[%s72] sm:$0xff] %v4
  %s74 = scalar_lea.vmem %s1, 224
  %75 = vst [vmem:[%s74] sm:$0xff] %v4
  %s76 = scalar_lea.vmem %s1, 288
  %77 = vst [vmem:[%s76] sm:$0xff] %v4
  %s78 = scalar_lea.vmem %s1, 352
  %79 = vst [vmem:[%s78] sm:$0xff] %v4
  %s80 = scalar_lea.vmem %s1, 416
  %81 = vst [vmem:[%s80] sm:$0xff] %v4
  %s82 = scalar_lea.vmem %s1, 480
  %83 = vst [vmem:[%s82] sm:$0xff] %v4
  %s84 = scalar_lea.vmem %s1, 40
  %85 = vst [vmem:[%s84] sm:$0xff] %v4
  %s86 = scalar_lea.vmem %s1, 104
  %87 = vst [vmem:[%s86] sm:$0xff] %v4
  %s88 = scalar_lea.vmem %s1, 168
  %89 = vst [vmem:[%s88] sm:$0xff] %v4
  %s90 = scalar_lea.vmem %s1, 232
  %91 = vst [vmem:[%s90] sm:$0xff] %v4
  %s92 = scalar_lea.vmem %s1, 296
  %93 = vst [vmem:[%s92] sm:$0xff] %v4
  %s94 = scalar_lea.vmem %s1, 360
  %95 = vst [vmem:[%s94] sm:$0xff] %v4
  %s96 = scalar_lea.vmem %s1, 424
  %97 = vst [vmem:[%s96] sm:$0xff] %v4
  %s98 = scalar_lea.vmem %s1, 488
  %99 = vst [vmem:[%s98] sm:$0xff] %v4
  %s100 = scalar_lea.vmem %s1, 48
  %101 = vst [vmem:[%s100] sm:$0xff] %v4
  %s102 = scalar_lea.vmem %s1, 112
  %103 = vst [vmem:[%s102] sm:$0xff] %v4
  %s104 = scalar_lea.vmem %s1, 176
  %105 = vst [vmem:[%s104] sm:$0xff] %v4
  %s106 = scalar_lea.vmem %s1, 240
  %107 = vst [vmem:[%s106] sm:$0xff] %v4
  %s108 = scalar_lea.vmem %s1, 304
  %109 = vst [vmem:[%s108] sm:$0xff] %v4
  %s110 = scalar_lea.vmem %s1, 368
  %111 = vst [vmem:[%s110] sm:$0xff] %v4
  %s112 = scalar_lea.vmem %s1, 432
  %113 = vst [vmem:[%s112] sm:$0xff] %v4
  %s114 = scalar_lea.vmem %s1, 496
  %115 = vst [vmem:[%s114] sm:$0xff] %v4
  %s116 = scalar_lea.vmem %s1, 56
  %117 = vst [vmem:[%s116] sm:$0xff] %v4
  %s118 = scalar_lea.vmem %s1, 120
  %119 = vst [vmem:[%s118] sm:$0xff] %v4
  %s120 = scalar_lea.vmem %s1, 184
  %121 = vst [vmem:[%s120] sm:$0xff] %v4
  %s122 = scalar_lea.vmem %s1, 248
  %123 = vst [vmem:[%s122] sm:$0xff] %v4
  %s124 = scalar_lea.vmem %s1, 312
  %125 = vst [vmem:[%s124] sm:$0xff] %v4
  %s126 = scalar_lea.vmem %s1, 376
  %127 = vst [vmem:[%s126] sm:$0xff] %v4
  %s128 = scalar_lea.vmem %s1, 440
  %129 = vst [vmem:[%s128] sm:$0xff] %v4
  %s130 = scalar_lea.vmem %s1, 504
  %131 = vst [vmem:[%s130] sm:$0xff] %v4

// kernel: tile.50
$region0: #{tile.50}
  #allocation0 [shape = 's32[1]{0}', space=sflag, size = 0x4, scoped, tag = 'scoped memory for tile.50']
  %s0 = inlined_call_operand.vmem [shape: f32[49], index: 0, kind: input, shape index: {}]
  %s1 = inlined_call_operand.vmem [shape: f32[2,49], index: 1, kind: output, shape index: {}]
  // Predicated region
  $region2: #{tile.50} parent=0 // pred_check
    _
  $region3: #{tile.50} parent=0 // pred_check_branch
    %3 = sbr.rel (0) target = $region5
  $region4: #{tile.50} parent=0 // pred_region
    _
  $region5: #{tile.50} parent=0 // pred_fallthru
    _
  %v4 = vld [vmem:[%s0] ss:$0 sm:$0xff]
  %5 = vst [vmem:[%s1] sm:$0x3] %v4

// kernel: mul.59
$region0: #{mul.59}
  #allocation0 [shape = 's32[1]{0}', space=sflag, size = 0x4, scoped, tag = 'scoped memory for mul.59']
  %s0 = inlined_call_operand.vmem [shape: f32[98], index: 0, kind: input, shape index: {}]
  %s1 = inlined_call_operand.vmem [shape: f32[98,1,8,8], index: 1, kind: output, shape index: {}]
  // Predicated region
  $region2: #{mul.59} parent=0 // pred_check
    _
  $region3: #{mul.59} parent=0 // pred_check_branch
    %3 = sbr.rel (0) target = $region5
  $region4: #{mul.59} parent=0 // pred_region
    _
  $region5: #{mul.59} parent=0 // pred_fallthru
    _
  %v4 = vld [vmem:[%s0] ss:$0 sm:$0xff]
  %5 = vst [vmem:[%s1] sm:$0x1] %v4
  %s6 = scalar_lea.vmem %s1, 8
  %7 = vst [vmem:[%s6] sm:$0x1] %v4
  %s8 = scalar_lea.vmem %s1, 16
  %9 = vst [vmem:[%s8] sm:$0x1] %v4
  %s10 = scalar_lea.vmem %s1, 24
  %11 = vst [vmem:[%s10] sm:$0x1] %v4
  %s12 = scalar_lea.vmem %s1, 32
  %13 = vst [vmem:[%s12] sm:$0x1] %v4
  %s14 = scalar_lea.vmem %s1, 40
  %15 = vst [vmem:[%s14] sm:$0x1] %v4
  %s16 = scalar_lea.vmem %s1, 48
  %17 = vst [vmem:[%s16] sm:$0x1] %v4
  %s18 = scalar_lea.vmem %s1, 56
  %19 = vst [vmem:[%s18] sm:$0x1] %v4
  %s20 = scalar_lea.vmem %s1, 1
  %21 = vst [vmem:[%s20] sm:$0x1] %v4
  %s22 = scalar_lea.vmem %s1, 9
  %23 = vst [vmem:[%s22] sm:$0x1] %v4
  %s24 = scalar_lea.vmem %s1, 17
  %25 = vst [vmem:[%s24] sm:$0x1] %v4
  %s26 = scalar_lea.vmem %s1, 25
  %27 = vst [vmem:[%s26] sm:$0x1] %v4
  %s28 = scalar_lea.vmem %s1, 33
  %29 = vst [vmem:[%s28] sm:$0x1] %v4
  %s30 = scalar_lea.vmem %s1, 41
  %31 = vst [vmem:[%s30] sm:$0x1] %v4
  %s32 = scalar_lea.vmem %s1, 49
  %33 = vst [vmem:[%s32] sm:$0x1] %v4
  %s34 = scalar_lea.vmem %s1, 57
  %35 = vst [vmem:[%s34] sm:$0x1] %v4
  %s36 = scalar_lea.vmem %s1, 2
  %37 = vst [vmem:[%s36] sm:$0x1] %v4
  %s38 = scalar_lea.vmem %s1, 10
  %39 = vst [vmem:[%s38] sm:$0x1] %v4
  %s40 = scalar_lea.vmem %s1, 18
  %41 = vst [vmem:[%s40] sm:$0x1] %v4
  %s42 = scalar_lea.vmem %s1, 26
  %43 = vst [vmem:[%s42] sm:$0x1] %v4
  %s44 = scalar_lea.vmem %s1, 34
  %45 = vst [vmem:[%s44] sm:$0x1] %v4
  %s46 = scalar_lea.vmem %s1, 42
  %47 = vst [vmem:[%s46] sm:$0x1] %v4
  %s48 = scalar_lea.vmem %s1, 50
  %49 = vst [vmem:[%s48] sm:$0x1] %v4
  %s50 = scalar_lea.vmem %s1, 58
  %51 = vst [vmem:[%s50] sm:$0x1] %v4
  %s52 = scalar_lea.vmem %s1, 3
  %53 = vst [vmem:[%s52] sm:$0x1] %v4
  %s54 = scalar_lea.vmem %s1, 11
  %55 = vst [vmem:[%s54] sm:$0x1] %v4
  %s56 = scalar_lea.vmem %s1, 19
  %57 = vst [vmem:[%s56] sm:$0x1] %v4
  %s58 = scalar_lea.vmem %s1, 27
  %59 = vst [vmem:[%s58] sm:$0x1] %v4
  %s60 = scalar_lea.vmem %s1, 35
  %61 = vst [vmem:[%s60] sm:$0x1] %v4
  %s62 = scalar_lea.vmem %s1, 43
  %63 = vst [vmem:[%s62] sm:$0x1] %v4
  %s64 = scalar_lea.vmem %s1, 51
  %65 = vst [vmem:[%s64] sm:$0x1] %v4
  %s66 = scalar_lea.vmem %s1, 59
  %67 = vst [vmem:[%s66] sm:$0x1] %v4
  %s68 = scalar_lea.vmem %s1, 4
  %69 = vst [vmem:[%s68] sm:$0x1] %v4
  %s70 = scalar_lea.vmem %s1, 12
  %71 = vst [vmem:[%s70] sm:$0x1] %v4
  %s72 = scalar_lea.vmem %s1, 20
  %73 = vst [vmem:[%s72] sm:$0x1] %v4
  %s74 = scalar_lea.vmem %s1, 28
  %75 = vst [vmem:[%s74] sm:$0x1] %v4
  %s76 = scalar_lea.vmem %s1, 36
  %77 = vst [vmem:[%s76] sm:$0x1] %v4
  %s78 = scalar_lea.vmem %s1, 44
  %79 = vst [vmem:[%s78] sm:$0x1] %v4
  %s80 = scalar_lea.vmem %s1, 52
  %81 = vst [vmem:[%s80] sm:$0x1] %v4
  %s82 = scalar_lea.vmem %s1, 60
  %83 = vst [vmem:[%s82] sm:$0x1] %v4
  %s84 = scalar_lea.vmem %s1, 5
  %85 = vst [vmem:[%s84] sm:$0x1] %v4
  %s86 = scalar_lea.vmem %s1, 13
  %87 = vst [vmem:[%s86] sm:$0x1] %v4
  %s88 = scalar_lea.vmem %s1, 21
  %89 = vst [vmem:[%s88] sm:$0x1] %v4
  %s90 = scalar_lea.vmem %s1, 29
  %91 = vst [vmem:[%s90] sm:$0x1] %v4
  %s92 = scalar_lea.vmem %s1, 37
  %93 = vst [vmem:[%s92] sm:$0x1] %v4
  %s94 = scalar_lea.vmem %s1, 45
  %95 = vst [vmem:[%s94] sm:$0x1] %v4
  %s96 = scalar_lea.vmem %s1, 53
  %97 = vst [vmem:[%s96] sm:$0x1] %v4
  %s98 = scalar_lea.vmem %s1, 61
  %99 = vst [vmem:[%s98] sm:$0x1] %v4
  %s100 = scalar_lea.vmem %s1, 6
  %101 = vst [vmem:[%s100] sm:$0x1] %v4
  %s102 = scalar_lea.vmem %s1, 14
  %103 = vst [vmem:[%s102] sm:$0x1] %v4
  %s104 = scalar_lea.vmem %s1, 22
  %105 = vst [vmem:[%s104] sm:$0x1] %v4
  %s106 = scalar_lea.vmem %s1, 30
  %107 = vst [vmem:[%s106] sm:$0x1] %v4
  %s108 = scalar_lea.vmem %s1, 38
  %109 = vst [vmem:[%s108] sm:$0x1] %v4
  %s110 = scalar_lea.vmem %s1, 46
  %111 = vst [vmem:[%s110] sm:$0x1] %v4
  %s112 = scalar_lea.vmem %s1, 54
  %113 = vst [vmem:[%s112] sm:$0x1] %v4
  %s114 = scalar_lea.vmem %s1, 62
  %115 = vst [vmem:[%s114] sm:$0x1] %v4
  %s116 = scalar_lea.vmem %s1, 7
  %117 = vst [vmem:[%s116] sm:$0x1] %v4
  %s118 = scalar_lea.vmem %s1, 15
  %119 = vst [vmem:[%s118] sm:$0x1] %v4
  %s120 = scalar_lea.vmem %s1, 23
  %121 = vst [vmem:[%s120] sm:$0x1] %v4
  %s122 = scalar_lea.vmem %s1, 31
  %123 = vst [vmem:[%s122] sm:$0x1] %v4
  %s124 = scalar_lea.vmem %s1, 39
  %125 = vst [vmem:[%s124] sm:$0x1] %v4
  %s126 = scalar_lea.vmem %s1, 47
  %127 = vst [vmem:[%s126] sm:$0x1] %v4
  %s128 = scalar_lea.vmem %s1, 55
  %129 = vst [vmem:[%s128] sm:$0x1] %v4
  %s130 = scalar_lea.vmem %s1, 63
  %131 = vst [vmem:[%s130] sm:$0x1] %v4

</llo_original>
